<compile_context>
chip_gen: v7x
topology: tpu7x:2x2x1
jax: 0.10.0
libtpu: 0.0.40
codegen_flags: <defaults>
</compile_context>

<pallas_src>
import functools

import jax
import jax.numpy as jnp
import numpy as np
from jax.experimental import pallas as pl
from jax.experimental.pallas import tpu as pltpu

KSIZE = 3
CHANNELS = 256           # ResBlock hard-codes 256 channels
EPS = 1e-5               # torch.nn.InstanceNorm2d default


def _round_up(x, m):
    return ((x + m - 1) // m) * m


def _resblock_kernel(xpad_ref, w_ref, o_ref, *, true_w):
    # xpad_ref: (Nb, Hp, Wp_r, C) f32   zero-padded NHWC input block
    # w_ref:    (3, 3*C, C)       bf16  w_ref[dy][dx*C + cin, cout]
    # o_ref:    (Nb, H, W_r, C)   f32   output block (width padded to W_r)
    Nb, Hp, Wp_r, C = xpad_ref.shape
    H, W_r = o_ref.shape[1], o_ref.shape[2]
    W = true_w
    M = Nb * H * W_r
    K3 = KSIZE * C

    # ---- 3x3 conv as 3 MXU matmuls (K = 3*C), f32 accumulation. --------------
    #  dx shift: static sublane-offset slice of the f32 block (in-VMEM work,
    #            ~2/9 of the matmul feed volume, hidden under the HBM DMA).
    #  dy shift: free major-dim slice.
    #  bf16 cast hoisted to once per dx slab; W_r % 16 == 0 keeps the bf16
    #  reshape to (M, 3C) layout-free.
    slabs = [xpad_ref[:, :, dx:dx + W_r, :].astype(jnp.bfloat16)
             for dx in range(KSIZE)]
    slab = jnp.concatenate(slabs, axis=-1)                  # (Nb, Hp, W_r, 3C)
    acc = None
    for dy in range(KSIZE):
        patch = slab[:, dy:dy + H, :, :].reshape(M, K3)
        part = jnp.dot(patch, w_ref[dy], preferred_element_type=jnp.float32)
        acc = part if acc is None else acc + part           # init from 1st matmul

    # ---- InstanceNorm2d(affine=False): per-(image, channel) stats over HxW. ---
    # Fused single pass (sum + sum-of-squares); padded columns masked with a
    # sublane iota so the epilogue has no unaligned slices and the store is
    # unmasked / lane-dense.
    acc4 = acc.reshape(Nb, H, W_r, C)
    inv_hw = 1.0 / (H * W)
    if W_r != W:
        col = jax.lax.broadcasted_iota(jnp.int32, (1, 1, W_r, C), 2)
        a_valid = acc4 * (col < W).astype(jnp.float32)
        s1 = jnp.sum(a_valid, axis=(1, 2), keepdims=True)
        s2 = jnp.sum(a_valid * a_valid, axis=(1, 2), keepdims=True)
    else:
        s1 = jnp.sum(acc4, axis=(1, 2), keepdims=True)
        s2 = jnp.sum(acc4 * acc4, axis=(1, 2), keepdims=True)
    mean = s1 * inv_hw
    var = jnp.maximum(s2 * inv_hw - mean * mean, 0.0)       # cancellation guard
    y = jnp.maximum((acc4 - mean) * jax.lax.rsqrt(var + EPS), 0.0)

    # ---- Residual: exact f32 x = interior of the padded block already in VMEM.
    res = xpad_ref[:, 1:1 + H, 1:1 + W_r, :]
    o_ref[...] = (res + y).astype(o_ref.dtype)


def _vmem_budget_bytes():
    """Per-generation VMEM budget: ~1/3 of physical capacity (≈42 MiB on
    128 MiB v5e/v6e, ≈21 MiB on 64 MiB v7x); conservative fallback."""
    try:
        cap = int(pltpu.get_tpu_info().vmem_capacity_bytes)
    except Exception:
        cap = 0
    if cap < 32 * 1024 * 1024:        # unknown / implausible -> assume v7x
        cap = 64 * 1024 * 1024
    return cap // 3


def _images_per_step(N, H, Hp, W_r, Wp_r, C, budget):
    """Largest divisor Nb of N such that (a) the estimated VMEM footprint fits
    the budget, (b) the MXU M dimension Nb*H*W_r stays <= 1024, and (c) the
    parallel grid keeps >= 2 steps whenever possible (both v7x TensorCores
    busy, DMA/compute overlap on all generations)."""
    xin = Hp * Wp_r * C * 4            # f32 input block
    out = H * W_r * C * 4              # f32 output block
    slab = Hp * W_r * (KSIZE * C) * 2  # bf16 dx-stacked slab
    mc = H * W_r * C * 4               # one (M, C) f32 temporary
    per_img = 2 * xin + 2 * out + slab + 5 * mc      # 2x = double-buffered I/O
    fixed = 2 * (KSIZE * KSIZE * C * C * 2)          # bf16 weights, double-buffered
    cands = []
    for d in range(1, N + 1):
        if N % d:
            continue
        fits = (fixed + d * per_img <= budget) and (d * H * W_r <= 1024)
        if d == 1 or fits:
            # d == 1 is always allowed as a fallback (see TODO in header for the
            # H-tiled path once even a single image exceeds the budget).
            cands.append(d)
    pref = [d for d in cands if N // d >= 2] or cands
    return max(pref, key=lambda d: d * H * W_r)


def res_block(x_nchw, w_oihw):
    """ResBlock forward.  x_nchw: (N, 256, H, W) f32; w_oihw: (256, 256, 3, 3) f32."""
    N, C, H, W = x_nchw.shape
    Hp = H + 2
    W_r = _round_up(W, 16)     # matmul/output width: bf16 sublane-tile multiple
    Wp_r = W_r + 8             # padded input width: room for dx in {0,1,2} slices

    # NCHW -> NHWC (channels on lanes) + zero pad once: a single f32 HBM stream,
    # no pre-shifted copies.  For a chain of ResBlocks, keep activations in NHWC
    # between blocks so this transpose is not a per-block full-tensor pass.
    x = jnp.transpose(x_nchw, (0, 2, 3, 1))
    x_pad = jnp.pad(x, ((0, 0), (1, 1), (1, Wp_r - W - 1), (0, 0)))

    # Weights OIHW -> (dy, dx*Cin + cin, cout), bf16 for the MXU (K = 3*Cin).
    w3 = jnp.transpose(w_oihw, (2, 3, 1, 0)).reshape(KSIZE, KSIZE * C, C)
    w3 = w3.astype(jnp.bfloat16)

    budget = _vmem_budget_bytes()
    Nb = _images_per_step(N, H, Hp, W_r, Wp_r, C, budget)
    grid = (N // Nb,)

    out_pad = pl.pallas_call(
        functools.partial(_resblock_kernel, true_w=W),
        out_shape=jax.ShapeDtypeStruct((N, H, W_r, C), jnp.float32),
        grid_spec=pltpu.PrefetchScalarGridSpec(
            num_scalar_prefetch=0,
            grid=grid,
            in_specs=[
                pl.BlockSpec((Nb, Hp, Wp_r, C), lambda i: (i, 0, 0, 0)),
                # constant index_map -> weights fetched once, stay resident
                pl.BlockSpec((KSIZE, KSIZE * C, C), lambda i: (0, 0, 0)),
            ],
            out_specs=pl.BlockSpec((Nb, H, W_r, C), lambda i: (i, 0, 0, 0)),
        ),
        compiler_params=pltpu.CompilerParams(
            dimension_semantics=("parallel",),
            vmem_limit_bytes=int(budget)),
    )(x_pad, w3)

    out = out_pad if W_r == W else out_pad[:, :, :W, :]
    return jnp.transpose(out, (0, 3, 1, 2))


def _ref_forward(x, w):
    # Pure-JAX f32 reference matching the PyTorch forward.
    y = jax.lax.conv_general_dilated(
        x, w, window_strides=(1, 1), padding=((1, 1), (1, 1)),
        dimension_numbers=("NCHW", "OIHW", "NCHW"))
    mean = y.mean(axis=(2, 3), keepdims=True)
    var = ((y - mean) ** 2).mean(axis=(2, 3), keepdims=True)
    y = jnp.maximum((y - mean) / jnp.sqrt(var + EPS), 0.0)
    return x + y


if __name__ == "__main__":
    res_fn = jax.jit(res_block)
    key = jax.random.PRNGKey(0)
    # Two small shapes:
    #   (4, 8, 8)  -> W % 16 != 0: masked-stats path, Nb=2 per step, grid of 2
    #   (2, 6, 16) -> W % 16 == 0: unmasked path, Nb=1, grid of 2
    for (N, H, W) in [(4, 8, 8), (2, 6, 16)]:
        key, kx, kw = jax.random.split(key, 3)
        x = jax.random.normal(kx, (N, CHANNELS, H, W), dtype=jnp.float32)
        w = jax.random.normal(kw, (CHANNELS, CHANNELS, KSIZE, KSIZE),
                              dtype=jnp.float32) * 0.05
        out = jax.block_until_ready(res_fn(x, w))
        ref = jax.block_until_ready(_ref_forward(x, w))
        # bf16 MXU operands (f32 accumulation) -> ~1e-2 relative conv deviation;
        # the residual add stays exact f32.
        np.testing.assert_allclose(np.asarray(out), np.asarray(ref),
                                   rtol=2e-2, atol=2e-2)
    print("KERNEL_OK")
</pallas_src>

<mosaic_0001>
module attributes {stable_mosaic.version = 11 : i64} {
  func.func @_resblock_kernel(%arg0: i32, %arg1: memref<2x10x24x256xf32, #tpu.memory_space<vmem>>, %arg2: memref<3x768x256xbf16, #tpu.memory_space<vmem>>, %arg3: memref<2x8x16x256xf32, #tpu.memory_space<vmem>>) attributes {dimension_semantics = [#tpu.dimension_semantics<parallel>], iteration_bounds = array<i64: 2>, scalar_prefetch = 0 : i64, scratch_operands = 0 : i64, tpu.core_type = #tpu.core_type<tc>, window_params = [{transform_indices = @transform_0, window_bounds = array<i64: 2, 10, 24, 256>}, {pipeline_mode = #tpu.pipeline_mode<synchronous>, transform_indices = @transform_1, window_bounds = array<i64: 3, 768, 256>}, {transform_indices = @transform_2, window_bounds = array<i64: 2, 8, 16, 256>}]} {
    %c0 = arith.constant 0 : index
    %c0_0 = arith.constant 0 : index
    %c0_1 = arith.constant 0 : index
    %c0_2 = arith.constant 0 : index
    %0 = vector.load %arg1[%c0, %c0_0, %c0_1, %c0_2] : memref<2x10x24x256xf32, #tpu.memory_space<vmem>>, vector<2x10x16x256xf32>
    %1 = arith.truncf %0 : vector<2x10x16x256xf32> to vector<2x10x16x256xbf16>
    %c0_3 = arith.constant 0 : index
    %c0_4 = arith.constant 0 : index
    %c1 = arith.constant 1 : index
    %c0_5 = arith.constant 0 : index
    %2 = vector.load %arg1[%c0_3, %c0_4, %c1, %c0_5] : memref<2x10x24x256xf32, #tpu.memory_space<vmem>>, vector<2x10x16x256xf32>
    %3 = arith.truncf %2 : vector<2x10x16x256xf32> to vector<2x10x16x256xbf16>
    %c0_6 = arith.constant 0 : index
    %c0_7 = arith.constant 0 : index
    %c2 = arith.constant 2 : index
    %c0_8 = arith.constant 0 : index
    %4 = vector.load %arg1[%c0_6, %c0_7, %c2, %c0_8] : memref<2x10x24x256xf32, #tpu.memory_space<vmem>>, vector<2x10x16x256xf32>
    %5 = arith.truncf %4 : vector<2x10x16x256xf32> to vector<2x10x16x256xbf16>
    %6 = tpu.concatenate %1, %3, %5 in 3 : vector<2x10x16x256xbf16>, vector<2x10x16x256xbf16>, vector<2x10x16x256xbf16> -> vector<2x10x16x768xbf16>
    %7 = vector.extract_strided_slice %6 {offsets = [0, 0, 0, 0], sizes = [2, 8, 16, 768], strides = [1, 1, 1, 1]} : vector<2x10x16x768xbf16> to vector<2x8x16x768xbf16>
    %8 = vector.shape_cast %7 : vector<2x8x16x768xbf16> to vector<256x768xbf16>
    %c0_9 = arith.constant 0 : index
    %c0_10 = arith.constant 0 : index
    %c0_11 = arith.constant 0 : index
    %9 = vector.load %arg2[%c0_9, %c0_10, %c0_11] : memref<3x768x256xbf16, #tpu.memory_space<vmem>>, vector<1x768x256xbf16>
    %10 = vector.shape_cast %9 : vector<1x768x256xbf16> to vector<768x256xbf16>
    %cst = arith.constant dense<0.000000e+00> : vector<256x256xf32>
    %11 = tpu.matmul %8, %10, %cst {dimension_numbers = #tpu.dot_dimension_numbers<[1], [0], [0], [1], [0, 0, 1, 1], [], []>} : vector<256x768xbf16>, vector<768x256xbf16>, vector<256x256xf32> -> vector<256x256xf32>
    %12 = vector.extract_strided_slice %6 {offsets = [0, 1, 0, 0], sizes = [2, 8, 16, 768], strides = [1, 1, 1, 1]} : vector<2x10x16x768xbf16> to vector<2x8x16x768xbf16>
    %13 = vector.shape_cast %12 : vector<2x8x16x768xbf16> to vector<256x768xbf16>
    %c1_12 = arith.constant 1 : index
    %c0_13 = arith.constant 0 : index
    %c0_14 = arith.constant 0 : index
    %14 = vector.load %arg2[%c1_12, %c0_13, %c0_14] : memref<3x768x256xbf16, #tpu.memory_space<vmem>>, vector<1x768x256xbf16>
    %15 = vector.shape_cast %14 : vector<1x768x256xbf16> to vector<768x256xbf16>
    %cst_15 = arith.constant dense<0.000000e+00> : vector<256x256xf32>
    %16 = tpu.matmul %13, %15, %cst_15 {dimension_numbers = #tpu.dot_dimension_numbers<[1], [0], [0], [1], [0, 0, 1, 1], [], []>} : vector<256x768xbf16>, vector<768x256xbf16>, vector<256x256xf32> -> vector<256x256xf32>
    %17 = arith.addf %11, %16 : vector<256x256xf32>
    %18 = vector.extract_strided_slice %6 {offsets = [0, 2, 0, 0], sizes = [2, 8, 16, 768], strides = [1, 1, 1, 1]} : vector<2x10x16x768xbf16> to vector<2x8x16x768xbf16>
    %19 = vector.shape_cast %18 : vector<2x8x16x768xbf16> to vector<256x768xbf16>
    %c2_16 = arith.constant 2 : index
    %c0_17 = arith.constant 0 : index
    %c0_18 = arith.constant 0 : index
    %20 = vector.load %arg2[%c2_16, %c0_17, %c0_18] : memref<3x768x256xbf16, #tpu.memory_space<vmem>>, vector<1x768x256xbf16>
    %21 = vector.shape_cast %20 : vector<1x768x256xbf16> to vector<768x256xbf16>
    %cst_19 = arith.constant dense<0.000000e+00> : vector<256x256xf32>
    %22 = tpu.matmul %19, %21, %cst_19 {dimension_numbers = #tpu.dot_dimension_numbers<[1], [0], [0], [1], [0, 0, 1, 1], [], []>} : vector<256x768xbf16>, vector<768x256xbf16>, vector<256x256xf32> -> vector<256x256xf32>
    %23 = arith.addf %17, %22 : vector<256x256xf32>
    %24 = vector.shape_cast %23 : vector<256x256xf32> to vector<2x8x16x256xf32>
    %25 = tpu.iota {dimensions = array<i32: 2>} : vector<1x1x16x256xi32>
    %c8_i32 = arith.constant 8 : i32
    %26 = vector.broadcast %c8_i32 : i32 to vector<1x1x16x256xi32>
    %27 = arith.cmpi slt, %25, %26 : vector<1x1x16x256xi32>
    %28 = arith.extui %27 : vector<1x1x16x256xi1> to vector<1x1x16x256xi32>
    %29 = arith.sitofp %28 : vector<1x1x16x256xi32> to vector<1x1x16x256xf32>
    %30 = vector.broadcast %29 : vector<1x1x16x256xf32> to vector<2x8x16x256xf32>
    %31 = arith.mulf %24, %30 : vector<2x8x16x256xf32>
    %cst_20 = arith.constant dense<0.000000e+00> : vector<2x256xf32>
    %32 = vector.multi_reduction <add>, %31, %cst_20 [1, 2] : vector<2x8x16x256xf32> to vector<2x256xf32>
    %33 = vector.shape_cast %32 : vector<2x256xf32> to vector<2x1x1x256xf32>
    %34 = arith.mulf %31, %31 : vector<2x8x16x256xf32>
    %cst_21 = arith.constant dense<0.000000e+00> : vector<2x256xf32>
    %35 = vector.multi_reduction <add>, %34, %cst_21 [1, 2] : vector<2x8x16x256xf32> to vector<2x256xf32>
    %36 = vector.shape_cast %35 : vector<2x256xf32> to vector<2x1x1x256xf32>
    %cst_22 = arith.constant 1.562500e-02 : f32
    %37 = vector.broadcast %cst_22 : f32 to vector<2x1x1x256xf32>
    %38 = arith.mulf %33, %37 : vector<2x1x1x256xf32>
    %cst_23 = arith.constant 1.562500e-02 : f32
    %39 = vector.broadcast %cst_23 : f32 to vector<2x1x1x256xf32>
    %40 = arith.mulf %36, %39 : vector<2x1x1x256xf32>
    %41 = arith.mulf %38, %38 : vector<2x1x1x256xf32>
    %42 = arith.subf %40, %41 : vector<2x1x1x256xf32>
    %cst_24 = arith.constant 0.000000e+00 : f32
    %43 = vector.broadcast %cst_24 : f32 to vector<2x1x1x256xf32>
    %44 = arith.maximumf %42, %43 : vector<2x1x1x256xf32>
    %45 = vector.broadcast %38 : vector<2x1x1x256xf32> to vector<2x8x16x256xf32>
    %46 = arith.subf %24, %45 : vector<2x8x16x256xf32>
    %cst_25 = arith.constant 9.99999974E-6 : f32
    %47 = vector.broadcast %cst_25 : f32 to vector<2x1x1x256xf32>
    %48 = arith.addf %44, %47 : vector<2x1x1x256xf32>
    %49 = math.rsqrt %48 : vector<2x1x1x256xf32>
    %50 = vector.broadcast %49 : vector<2x1x1x256xf32> to vector<2x8x16x256xf32>
    %51 = arith.mulf %46, %50 : vector<2x8x16x256xf32>
    %cst_26 = arith.constant 0.000000e+00 : f32
    %52 = vector.broadcast %cst_26 : f32 to vector<2x8x16x256xf32>
    %53 = arith.maximumf %51, %52 : vector<2x8x16x256xf32>
    %c0_27 = arith.constant 0 : index
    %c1_28 = arith.constant 1 : index
    %c1_29 = arith.constant 1 : index
    %c0_30 = arith.constant 0 : index
    %54 = vector.load %arg1[%c0_27, %c1_28, %c1_29, %c0_30] : memref<2x10x24x256xf32, #tpu.memory_space<vmem>>, vector<2x8x16x256xf32>
    %55 = arith.addf %54, %53 : vector<2x8x16x256xf32>
    %c0_31 = arith.constant 0 : index
    %c0_32 = arith.constant 0 : index
    %c0_33 = arith.constant 0 : index
    %c0_34 = arith.constant 0 : index
    %56 = vector.load %arg3[%c0_31, %c0_32, %c0_33, %c0_34] : memref<2x8x16x256xf32, #tpu.memory_space<vmem>>, vector<2x8x16x256xf32>
    tpu.vector_store %arg3[%c0_31, %c0_32, %c0_33, %c0_34], %55 {strides = array<i32>} : memref<2x8x16x256xf32, #tpu.memory_space<vmem>>, vector<2x8x16x256xf32>,
    return
  }
  func.func @transform_0(%arg0: i32) -> (i32, i32, i32, i32) {
    %c0_i32 = arith.constant 0 : i32
    %c0_i32_0 = arith.constant 0 : i32
    %c0_i32_1 = arith.constant 0 : i32
    %c0_i32_2 = arith.constant 0 : i32
    return %arg0, %c0_i32, %c0_i32_0, %c0_i32_1 : i32, i32, i32, i32
  }
  func.func @transform_1(%arg0: i32) -> (i32, i32, i32) {
    %c0_i32 = arith.constant 0 : i32
    %c0_i32_0 = arith.constant 0 : i32
    %c0_i32_1 = arith.constant 0 : i32
    %c0_i32_2 = arith.constant 0 : i32
    return %c0_i32, %c0_i32_0, %c0_i32_1 : i32, i32, i32
  }
  func.func @transform_2(%arg0: i32) -> (i32, i32, i32, i32) {
    %c0_i32 = arith.constant 0 : i32
    %c0_i32_0 = arith.constant 0 : i32
    %c0_i32_1 = arith.constant 0 : i32
    %c0_i32_2 = arith.constant 0 : i32
    return %arg0, %c0_i32, %c0_i32_0, %c0_i32_1 : i32, i32, i32, i32
  }
}

</mosaic_0001>

<llo_original>
// kernel: res_block.1
$region0: #{res_block.1}
  #allocation0 [shape = 'u32[]', space=smem, size = 0x4, offset = 0x4, fixed_abs, tag = 'smem constant byte address 0x4 - core index']
  #allocation1 [shape = 'u32[144,128]{1,0:T(1,128)}', space=vmem, size = 0x12000, scoped, tag = 'internal scratch']
  %s0 = inlined_call_operand.vmem [shape: f32[4,10,24,256], index: 0, kind: input, shape index: {}]
  %s1 = inlined_call_operand.vmem [shape: bf16[3,768,256], index: 1, kind: input, shape index: {}]
  %s2 = inlined_call_operand.vmem [shape: f32[4,8,16,256], index: 2, kind: output, shape index: {}]
  %s3 = sld [smem:[#allocation0]]
  $region41: #{res_block.1} parent=0
    _
  %s5 = ssub.s32 1, %s3
  %s6 = scalar_select 0, %s5, %s3
  loop: start=0, step=1, limit=4
  $region2: #{res_block.1} parent=0 // loop_pre_header
    _
  $region3: #{res_block.1} parent=0 // loop_header
    %s8 = sphi 0, %s12
    %p9 = scmp.ge.s32.totalorder %s8, 4
    %s18 = sphi 0, %s20
    %s21 = sphi 0, %s18
    %s22 = sphi 0, %s21
    %s38 = sphi 0, %s22
    %s42 = sphi 0, %s42
    %s44 = sphi 0, %s42
    %s45 = sphi 0, %s44
    %s59 = sphi 0, %s45
    %s65 = sphi 0, %s67
    %s68 = sphi 0, %s65
    %s69 = sphi 0, %s68
    %s85 = sphi 0, %s69
  $region4: #{res_block.1} parent=0 // loop_header_branch
    %11 = sbr.rel (%p9) target = $region8
  $region5: #{res_block.1} parent=0 // loop_body
    %s13 = ssub.s32 %s8, 1
    %s14 = ssub.s32 %s8, 2
    %s15 = sadd.s32 %s8, 1
    %s16 = ssub.s32 %s8, %s15
    %p17 = scmp.eq.s32.totalorder %s16, 0
    %s19 = sadd.s32 %s18, 1
    %s20 = scalar_select %p17, %s18, %s19
    %p23 = pneg %p17
    %p24 = scmp.eq.s32.totalorder %s8, 1
    %p25 = por %p23, %p24
    %p26 = scmp.ne.s32.totalorder %s18, %s21
    %p27 = scmp.eq.s32.totalorder %s8, 0
    %p28 = por %p26, %p27
    %p29 = scmp.ne.s32.totalorder %s18, %s21
    %p30 = scmp.eq.s32.totalorder %s13, 1
    %p31 = por %p29, %p30
    %p32 = scmp.ne.s32.totalorder %s21, %s22
    %p33 = scmp.eq.s32.totalorder %s13, 0
    %p34 = por %p32, %p33
    %p35 = scmp.ne.s32.totalorder %s21, %s22
    %p36 = scmp.eq.s32.totalorder %s14, 1
    %p37 = por %p35, %p36
    %p39 = scmp.ne.s32.totalorder %s22, %s38
    %p40 = scmp.eq.s32.totalorder %s14, 0
    %p41 = por %p39, %p40
    %s43 = sadd.s32 %s42, 1
    %p46 = scmp.eq.s32.totalorder %s8, 1
    %p47 = scmp.ne.s32.totalorder %s42, %s44
    %p48 = scmp.eq.s32.totalorder %s8, 0
    %p49 = por %p47, %p48
    %p50 = scmp.ne.s32.totalorder %s42, %s44
    %p51 = scmp.eq.s32.totalorder %s13, 1
    %p52 = por %p50, %p51
    %p53 = scmp.ne.s32.totalorder %s44, %s45
    %p54 = scmp.eq.s32.totalorder %s13, 0
    %p55 = por %p53, %p54
    %p56 = scmp.ne.s32.totalorder %s44, %s45
    %p57 = scmp.eq.s32.totalorder %s14, 1
    %p58 = por %p56, %p57
    %p60 = scmp.ne.s32.totalorder %s45, %s59
    %p61 = scmp.eq.s32.totalorder %s14, 0
    %p62 = por %p60, %p61
    %s63 = ssub.s32 %s8, %s15
    %p64 = scmp.eq.s32.totalorder %s63, 0
    %s66 = sadd.s32 %s65, 1
    %s67 = scalar_select %p64, %s65, %s66
    %p70 = pneg %p64
    %p71 = scmp.eq.s32.totalorder %s8, 1
    %p72 = por %p70, %p71
    %p73 = scmp.ne.s32.totalorder %s65, %s68
    %p74 = scmp.eq.s32.totalorder %s8, 0
    %p75 = por %p73, %p74
    %p76 = scmp.ne.s32.totalorder %s65, %s68
    %p77 = scmp.eq.s32.totalorder %s13, 1
    %p78 = por %p76, %p77
    %p79 = scmp.ne.s32.totalorder %s68, %s69
    %p80 = scmp.eq.s32.totalorder %s13, 0
    %p81 = por %p79, %p80
    %p82 = scmp.ne.s32.totalorder %s68, %s69
    %p83 = scmp.eq.s32.totalorder %s14, 1
    %p84 = por %p82, %p83
    %p86 = scmp.ne.s32.totalorder %s69, %s85
    %p87 = scmp.eq.s32.totalorder %s14, 0
    %p88 = por %p86, %p87
    %p89 = scmp.le.s32.totalorder 1, %s8
    %p90 = scmp.lt.s32.totalorder %s8, 3
    %p91 = pnand %p89, %p90
    %p92 = pneg %p91
    // Predicated region
    $region9: #{res_block.1} parent=5 // pred_check
      _
    $region10: #{res_block.1} parent=5 // pred_check_branch
      %94 = sbr.rel (%p91) target = $region12
    $region11: #{res_block.1} parent=5 // pred_region
      %s95 = ssub.s32 %s8, 1
      // Predicated region
      $region13: #{res_block.1} parent=11 // pred_check
        %p96 = pneg %p55
      $region14: #{res_block.1} parent=11 // pred_check_branch
        %98 = sbr.rel (%p96) target = $region16
      $region15: #{res_block.1} parent=11 // pred_region
        _
      $region16: #{res_block.1} parent=11 // pred_fallthru
        _
    $region12: #{res_block.1} parent=5 // pred_fallthru
      _
    %p99 = scmp.lt.s32.totalorder %s8, 2
    // Predicated region
    $region17: #{res_block.1} parent=5 // pred_check
      %p100 = pneg %p99
    $region18: #{res_block.1} parent=5 // pred_check_branch
      %102 = sbr.rel (%p100) target = $region20
    $region19: #{res_block.1} parent=5 // pred_region
      // Predicated region
      $region21: #{res_block.1} parent=19 // pred_check
        %p103 = pneg %p28
      $region22: #{res_block.1} parent=19 // pred_check_branch
        %105 = sbr.rel (%p103) target = $region24
      $region23: #{res_block.1} parent=19 // pred_region
        %s106 = smul.u32 2, %s8
        %p107 = scmp.lt.s32.totalorder %s106, 3
        %s108 = scalar_select %p107, %s106, 3
        %s109 = smul.addr %s108, 60
        %s110 = smul.addr %s109, 8
        %s111 = scalar_lea.vmem %s0, %s110
        %s112 = smul.u32 2, %s8
      $region24: #{res_block.1} parent=19 // pred_fallthru
        _
    $region20: #{res_block.1} parent=5 // pred_fallthru
      _
    %p113 = scmp.le.s32.totalorder 1, %s8
    %p114 = scmp.lt.s32.totalorder %s8, 3
    %p115 = pnand %p113, %p114
    %p116 = pneg %p115
    // Predicated region
    $region25: #{res_block.1} parent=5 // pred_check
      _
    $region26: #{res_block.1} parent=5 // pred_check_branch
      %118 = sbr.rel (%p115) target = $region28
    $region27: #{res_block.1} parent=5 // pred_region
      %s119 = ssub.s32 %s8, 1
      %s120 = smul.u32 2, %s13
      %p121 = scmp.lt.s32.totalorder %s120, 3
      %s122 = scalar_select %p121, %s120, 3
      %s123 = smul.addr %s122, 60
      %s124 = smul.addr %s123, 8
      %s125 = scalar_lea.vmem %s0, %s124
      %p126 = pneg %p34
      %p127 = pneg %p31
      %p128 = pneg %p55
      %p129 = pneg %p52
      %p130 = pneg %p81
      %p131 = pneg %p78
      %s132 = smul.u32 2, %s13
      %p133 = scmp.lt.s32.totalorder %s132, 3
      %s134 = scalar_select %p133, %s132, 3
      %s135 = smul.addr %s134, 32
      %s136 = smul.addr %s135, 8
      %s137 = scalar_lea.vmem %s2, %s136
      %s138 = smul.u32 2, %s13
      %p139 = scmp.lt.s32.totalorder %s138, 3
      %s140 = scalar_select %p139, %s138, 3
      %s141 = smul.addr %s140, 60
      %s142 = smul.addr %s141, 8
      %s143 = scalar_lea.vmem %s0, %s142
      %s144 = smul.u32 2, %s13
      %s145 = smul.u32 2, %s13
      %p146 = scmp.lt.s32.totalorder %s145, 3
      %s147 = scalar_select %p146, %s145, 3
      %s148 = smul.addr %s147, 32
      %s149 = smul.addr %s148, 8
      %s150 = scalar_lea.vmem %s2, %s149
      %s151 = smul.u32 2, %s13
      %v152 = vld [vmem:[%s143] sm:$0xff]
      %v153 = vld [vmem:[%s143 + $0x8] sm:$0xff]
      %v154 = vld [vmem:[%s143 + $0x10] sm:$0xff]
      %v155 = vld [vmem:[%s143 + $0x18] sm:$0xff]
      %v156 = vld [vmem:[%s143 + $0x30] sm:$0xff]
      %v157 = vld [vmem:[%s143 + $0x38] sm:$0xff]
      %v158 = vld [vmem:[%s143 + $0x40] sm:$0xff]
      %v159 = vld [vmem:[%s143 + $0x48] sm:$0xff]
      %v160 = vld [vmem:[%s143 + $0x60] sm:$0xff]
      %v161 = vld [vmem:[%s143 + $0x68] sm:$0xff]
      %v162 = vld [vmem:[%s143 + $0x70] sm:$0xff]
      %v163 = vld [vmem:[%s143 + $0x78] sm:$0xff]
      %v164 = vld [vmem:[%s143 + $0x90] sm:$0xff]
      %v165 = vld [vmem:[%s143 + $0x98] sm:$0xff]
      %v166 = vld [vmem:[%s143 + $0xa0] sm:$0xff]
      %v167 = vld [vmem:[%s143 + $0xa8] sm:$0xff]
      %v168 = vld [vmem:[%s143 + $0xc0] sm:$0xff]
      %v169 = vld [vmem:[%s143 + $0xc8] sm:$0xff]
      %v170 = vld [vmem:[%s143 + $0xd0] sm:$0xff]
      %v171 = vld [vmem:[%s143 + $0xd8] sm:$0xff]
      %v172 = vld [vmem:[%s143 + $0xf0] sm:$0xff]
      %v173 = vld [vmem:[%s143 + $0xf8] sm:$0xff]
      %v174 = vld [vmem:[%s143 + $0x100] sm:$0xff]
      %v175 = vld [vmem:[%s143 + $0x108] sm:$0xff]
      %v176 = vld [vmem:[%s143 + $0x120] sm:$0xff]
      %v177 = vld [vmem:[%s143 + $0x128] sm:$0xff]
      %v178 = vld [vmem:[%s143 + $0x130] sm:$0xff]
      %v179 = vld [vmem:[%s143 + $0x138] sm:$0xff]
      %v180 = vld [vmem:[%s143 + $0x150] sm:$0xff]
      %v181 = vld [vmem:[%s143 + $0x158] sm:$0xff]
      %v182 = vld [vmem:[%s143 + $0x160] sm:$0xff]
      %v183 = vld [vmem:[%s143 + $0x168] sm:$0xff]
      %v184 = vld [vmem:[%s143 + $0x180] sm:$0xff]
      %v185 = vld [vmem:[%s143 + $0x188] sm:$0xff]
      %v186 = vld [vmem:[%s143 + $0x190] sm:$0xff]
      %v187 = vld [vmem:[%s143 + $0x198] sm:$0xff]
      %v188 = vld [vmem:[%s143 + $0x1b0] sm:$0xff]
      %v189 = vld [vmem:[%s143 + $0x1b8] sm:$0xff]
      %v190 = vld [vmem:[%s143 + $0x1c0] sm:$0xff]
      %v191 = vld [vmem:[%s143 + $0x1c8] sm:$0xff]
      %v192 = vld [vmem:[%s143 + $0x1e0] sm:$0xff]
      %v193 = vld [vmem:[%s143 + $0x1e8] sm:$0xff]
      %v194 = vld [vmem:[%s143 + $0x1f0] sm:$0xff]
      %v195 = vld [vmem:[%s143 + $0x1f8] sm:$0xff]
      %v196 = vld [vmem:[%s143 + $0x210] sm:$0xff]
      %v197 = vld [vmem:[%s143 + $0x218] sm:$0xff]
      %v198 = vld [vmem:[%s143 + $0x220] sm:$0xff]
      %v199 = vld [vmem:[%s143 + $0x228] sm:$0xff]
      %v200 = vld [vmem:[%s143 + $0x240] sm:$0xff]
      %v201 = vld [vmem:[%s143 + $0x248] sm:$0xff]
      %v202 = vld [vmem:[%s143 + $0x250] sm:$0xff]
      %v203 = vld [vmem:[%s143 + $0x258] sm:$0xff]
      %v204 = vld [vmem:[%s143 + $0x270] sm:$0xff]
      %v205 = vld [vmem:[%s143 + $0x278] sm:$0xff]
      %v206 = vld [vmem:[%s143 + $0x280] sm:$0xff]
      %v207 = vld [vmem:[%s143 + $0x288] sm:$0xff]
      %v208 = vld [vmem:[%s143 + $0x2a0] sm:$0xff]
      %v209 = vld [vmem:[%s143 + $0x2a8] sm:$0xff]
      %v210 = vld [vmem:[%s143 + $0x2b0] sm:$0xff]
      %v211 = vld [vmem:[%s143 + $0x2b8] sm:$0xff]
      %v212 = vld [vmem:[%s143 + $0x2d0] sm:$0xff]
      %v213 = vld [vmem:[%s143 + $0x2d8] sm:$0xff]
      %v214 = vld [vmem:[%s143 + $0x2e0] sm:$0xff]
      %v215 = vld [vmem:[%s143 + $0x2e8] sm:$0xff]
      %v216 = vld [vmem:[%s143 + $0x300] sm:$0xff]
      %v217 = vld [vmem:[%s143 + $0x308] sm:$0xff]
      %v218 = vld [vmem:[%s143 + $0x310] sm:$0xff]
      %v219 = vld [vmem:[%s143 + $0x318] sm:$0xff]
      %v220 = vld [vmem:[%s143 + $0x330] sm:$0xff]
      %v221 = vld [vmem:[%s143 + $0x338] sm:$0xff]
      %v222 = vld [vmem:[%s143 + $0x340] sm:$0xff]
      %v223 = vld [vmem:[%s143 + $0x348] sm:$0xff]
      %v224 = vld [vmem:[%s143 + $0x360] sm:$0xff]
      %v225 = vld [vmem:[%s143 + $0x368] sm:$0xff]
      %v226 = vld [vmem:[%s143 + $0x370] sm:$0xff]
      %v227 = vld [vmem:[%s143 + $0x378] sm:$0xff]
      %v228 = vld [vmem:[%s143 + $0x390] sm:$0xff]
      %v229 = vld [vmem:[%s143 + $0x398] sm:$0xff]
      %v230 = vld [vmem:[%s143 + $0x3a0] sm:$0xff]
      %v231 = vld [vmem:[%s143 + $0x3a8] sm:$0xff]
      %v232 = vpack.c.bf16 %v154, %v152
      %v233 = vpack.c.bf16 %v155, %v153
      %v234 = vpack.c.bf16 %v158, %v156
      %v235 = vpack.c.bf16 %v159, %v157
      %v236 = vpack.c.bf16 %v162, %v160
      %v237 = vpack.c.bf16 %v163, %v161
      %v238 = vpack.c.bf16 %v166, %v164
      %v239 = vpack.c.bf16 %v167, %v165
      %v240 = vpack.c.bf16 %v170, %v168
      %v241 = vpack.c.bf16 %v171, %v169
      %v242 = vpack.c.bf16 %v174, %v172
      %v243 = vpack.c.bf16 %v175, %v173
      %v244 = vpack.c.bf16 %v178, %v176
      %v245 = vpack.c.bf16 %v179, %v177
      %v246 = vpack.c.bf16 %v182, %v180
      %v247 = vpack.c.bf16 %v183, %v181
      %v248 = vpack.c.bf16 %v186, %v184
      %v249 = vpack.c.bf16 %v187, %v185
      %v250 = vpack.c.bf16 %v190, %v188
      %v251 = vpack.c.bf16 %v191, %v189
      %v252 = vpack.c.bf16 %v194, %v192
      %v253 = vpack.c.bf16 %v195, %v193
      %v254 = vpack.c.bf16 %v198, %v196
      %v255 = vpack.c.bf16 %v199, %v197
      %v256 = vpack.c.bf16 %v202, %v200
      %v257 = vpack.c.bf16 %v203, %v201
      %v258 = vpack.c.bf16 %v206, %v204
      %v259 = vpack.c.bf16 %v207, %v205
      %v260 = vpack.c.bf16 %v210, %v208
      %v261 = vpack.c.bf16 %v211, %v209
      %v262 = vpack.c.bf16 %v214, %v212
      %v263 = vpack.c.bf16 %v215, %v213
      %v264 = vpack.c.bf16 %v218, %v216
      %v265 = vpack.c.bf16 %v219, %v217
      %v266 = vpack.c.bf16 %v222, %v220
      %v267 = vpack.c.bf16 %v223, %v221
      %v268 = vpack.c.bf16 %v226, %v224
      %v269 = vpack.c.bf16 %v227, %v225
      %v270 = vpack.c.bf16 %v230, %v228
      %v271 = vpack.c.bf16 %v231, %v229
      %v272 = vld [vmem:[%s143] sm:$0xfe]
      %v273 = vld [vmem:[%s143 + $0x8] sm:$0xfe]
      %v274 = vld [vmem:[%s143 + $0x10] sm:$0xff]
      %v275 = vld [vmem:[%s143 + $0x18] sm:$0xff]
      %v276 = vld [vmem:[%s143 + $0x20] sm:$0x1]
      %v277 = vld [vmem:[%s143 + $0x28] sm:$0x1]
      %v278 = vld [vmem:[%s143 + $0x30] sm:$0xfe]
      %v279 = vld [vmem:[%s143 + $0x38] sm:$0xfe]
      %v280 = vld [vmem:[%s143 + $0x40] sm:$0xff]
      %v281 = vld [vmem:[%s143 + $0x48] sm:$0xff]
      %v282 = vld [vmem:[%s143 + $0x50] sm:$0x1]
      %v283 = vld [vmem:[%s143 + $0x58] sm:$0x1]
      %v284 = vld [vmem:[%s143 + $0x60] sm:$0xfe]
      %v285 = vld [vmem:[%s143 + $0x68] sm:$0xfe]
      %v286 = vld [vmem:[%s143 + $0x70] sm:$0xff]
      %v287 = vld [vmem:[%s143 + $0x78] sm:$0xff]
      %v288 = vld [vmem:[%s143 + $0x80] sm:$0x1]
      %v289 = vld [vmem:[%s143 + $0x88] sm:$0x1]
      %v290 = vld [vmem:[%s143 + $0x90] sm:$0xfe]
      %v291 = vld [vmem:[%s143 + $0x98] sm:$0xfe]
      %v292 = vld [vmem:[%s143 + $0xa0] sm:$0xff]
      %v293 = vld [vmem:[%s143 + $0xa8] sm:$0xff]
      %v294 = vld [vmem:[%s143 + $0xb0] sm:$0x1]
      %v295 = vld [vmem:[%s143 + $0xb8] sm:$0x1]
      %v296 = vld [vmem:[%s143 + $0xc0] sm:$0xfe]
      %v297 = vld [vmem:[%s143 + $0xc8] sm:$0xfe]
      %v298 = vld [vmem:[%s143 + $0xd0] sm:$0xff]
      %v299 = vld [vmem:[%s143 + $0xd8] sm:$0xff]
      %v300 = vld [vmem:[%s143 + $0xe0] sm:$0x1]
      %v301 = vld [vmem:[%s143 + $0xe8] sm:$0x1]
      %v302 = vld [vmem:[%s143 + $0xf0] sm:$0xfe]
      %v303 = vld [vmem:[%s143 + $0xf8] sm:$0xfe]
      %v304 = vld [vmem:[%s143 + $0x100] sm:$0xff]
      %v305 = vld [vmem:[%s143 + $0x108] sm:$0xff]
      %v306 = vld [vmem:[%s143 + $0x110] sm:$0x1]
      %v307 = vld [vmem:[%s143 + $0x118] sm:$0x1]
      %v308 = vld [vmem:[%s143 + $0x120] sm:$0xfe]
      %v309 = vld [vmem:[%s143 + $0x128] sm:$0xfe]
      %v310 = vld [vmem:[%s143 + $0x130] sm:$0xff]
      %v311 = vld [vmem:[%s143 + $0x138] sm:$0xff]
      %v312 = vld [vmem:[%s143 + $0x140] sm:$0x1]
      %v313 = vld [vmem:[%s143 + $0x148] sm:$0x1]
      %v314 = vld [vmem:[%s143 + $0x150] sm:$0xfe]
      %v315 = vld [vmem:[%s143 + $0x158] sm:$0xfe]
      %v316 = vld [vmem:[%s143 + $0x160] sm:$0xff]
      %v317 = vld [vmem:[%s143 + $0x168] sm:$0xff]
      %v318 = vld [vmem:[%s143 + $0x170] sm:$0x1]
      %v319 = vld [vmem:[%s143 + $0x178] sm:$0x1]
      %v320 = vld [vmem:[%s143 + $0x180] sm:$0xfe]
      %v321 = vld [vmem:[%s143 + $0x188] sm:$0xfe]
      %v322 = vld [vmem:[%s143 + $0x190] sm:$0xff]
      %v323 = vld [vmem:[%s143 + $0x198] sm:$0xff]
      %v324 = vld [vmem:[%s143 + $0x1a0] sm:$0x1]
      %v325 = vld [vmem:[%s143 + $0x1a8] sm:$0x1]
      %v326 = vld [vmem:[%s143 + $0x1b0] sm:$0xfe]
      %v327 = vld [vmem:[%s143 + $0x1b8] sm:$0xfe]
      %v328 = vld [vmem:[%s143 + $0x1c0] sm:$0xff]
      %v329 = vld [vmem:[%s143 + $0x1c8] sm:$0xff]
      %v330 = vld [vmem:[%s143 + $0x1d0] sm:$0x1]
      %v331 = vld [vmem:[%s143 + $0x1d8] sm:$0x1]
      %v332 = vld [vmem:[%s143 + $0x1e0] sm:$0xfe]
      %v333 = vld [vmem:[%s143 + $0x1e8] sm:$0xfe]
      %v334 = vld [vmem:[%s143 + $0x1f0] sm:$0xff]
      %v335 = vld [vmem:[%s143 + $0x1f8] sm:$0xff]
      %v336 = vld [vmem:[%s143 + $0x200] sm:$0x1]
      %v337 = vld [vmem:[%s143 + $0x208] sm:$0x1]
      %v338 = vld [vmem:[%s143 + $0x210] sm:$0xfe]
      %v339 = vld [vmem:[%s143 + $0x218] sm:$0xfe]
      %v340 = vld [vmem:[%s143 + $0x220] sm:$0xff]
      %v341 = vld [vmem:[%s143 + $0x228] sm:$0xff]
      %v342 = vld [vmem:[%s143 + $0x230] sm:$0x1]
      %v343 = vld [vmem:[%s143 + $0x238] sm:$0x1]
      %v344 = vld [vmem:[%s143 + $0x240] sm:$0xfe]
      %v345 = vld [vmem:[%s143 + $0x248] sm:$0xfe]
      %v346 = vld [vmem:[%s143 + $0x250] sm:$0xff]
      %v347 = vld [vmem:[%s143 + $0x258] sm:$0xff]
      %v348 = vld [vmem:[%s143 + $0x260] sm:$0x1]
      %v349 = vld [vmem:[%s143 + $0x268] sm:$0x1]
      %v350 = vld [vmem:[%s143 + $0x270] sm:$0xfe]
      %v351 = vld [vmem:[%s143 + $0x278] sm:$0xfe]
      %v352 = vld [vmem:[%s143 + $0x280] sm:$0xff]
      %v353 = vld [vmem:[%s143 + $0x288] sm:$0xff]
      %v354 = vld [vmem:[%s143 + $0x290] sm:$0x1]
      %v355 = vld [vmem:[%s143 + $0x298] sm:$0x1]
      %v356 = vld [vmem:[%s143 + $0x2a0] sm:$0xfe]
      %v357 = vld [vmem:[%s143 + $0x2a8] sm:$0xfe]
      %v358 = vld [vmem:[%s143 + $0x2b0] sm:$0xff]
      %v359 = vld [vmem:[%s143 + $0x2b8] sm:$0xff]
      %v360 = vld [vmem:[%s143 + $0x2c0] sm:$0x1]
      %v361 = vld [vmem:[%s143 + $0x2c8] sm:$0x1]
      %v362 = vld [vmem:[%s143 + $0x2d0] sm:$0xfe]
      %v363 = vld [vmem:[%s143 + $0x2d8] sm:$0xfe]
      %v364 = vld [vmem:[%s143 + $0x2e0] sm:$0xff]
      %v365 = vld [vmem:[%s143 + $0x2e8] sm:$0xff]
      %v366 = vld [vmem:[%s143 + $0x2f0] sm:$0x1]
      %v367 = vld [vmem:[%s143 + $0x2f8] sm:$0x1]
      %v368 = vld [vmem:[%s143 + $0x300] sm:$0xfe]
      %v369 = vld [vmem:[%s143 + $0x308] sm:$0xfe]
      %v370 = vld [vmem:[%s143 + $0x310] sm:$0xff]
      %v371 = vld [vmem:[%s143 + $0x318] sm:$0xff]
      %v372 = vld [vmem:[%s143 + $0x320] sm:$0x1]
      %v373 = vld [vmem:[%s143 + $0x328] sm:$0x1]
      %v374 = vld [vmem:[%s143 + $0x330] sm:$0xfe]
      %v375 = vld [vmem:[%s143 + $0x338] sm:$0xfe]
      %v376 = vld [vmem:[%s143 + $0x340] sm:$0xff]
      %v377 = vld [vmem:[%s143 + $0x348] sm:$0xff]
      %v378 = vld [vmem:[%s143 + $0x350] sm:$0x1]
      %v379 = vld [vmem:[%s143 + $0x358] sm:$0x1]
      %v380 = vld [vmem:[%s143 + $0x360] sm:$0xfe]
      %v381 = vld [vmem:[%s143 + $0x368] sm:$0xfe]
      %v382 = vld [vmem:[%s143 + $0x370] sm:$0xff]
      %v383 = vld [vmem:[%s143 + $0x378] sm:$0xff]
      %v384 = vld [vmem:[%s143 + $0x380] sm:$0x1]
      %v385 = vld [vmem:[%s143 + $0x388] sm:$0x1]
      %v386 = vld [vmem:[%s143 + $0x390] sm:$0xfe]
      %v387 = vld [vmem:[%s143 + $0x398] sm:$0xfe]
      %v388 = vld [vmem:[%s143 + $0x3a0] sm:$0xff]
      %v389 = vld [vmem:[%s143 + $0x3a8] sm:$0xff]
      %v390 = vld [vmem:[%s143 + $0x3b0] sm:$0x1]
      %v391 = vld [vmem:[%s143 + $0x3b8] sm:$0x1]
      %v392 = vpack.c.bf16 %v274, %v272
      %v393 = vpack.c.bf16 %v275, %v273
      %v394 = vpack.c.bf16 %v276, %v276
      %v395 = vpack.c.bf16 %v277, %v277
      %v396 = vpack.c.bf16 %v280, %v278
      %v397 = vpack.c.bf16 %v281, %v279
      %v398 = vpack.c.bf16 %v282, %v282
      %v399 = vpack.c.bf16 %v283, %v283
      %v400 = vpack.c.bf16 %v286, %v284
      %v401 = vpack.c.bf16 %v287, %v285
      %v402 = vpack.c.bf16 %v288, %v288
      %v403 = vpack.c.bf16 %v289, %v289
      %v404 = vpack.c.bf16 %v292, %v290
      %v405 = vpack.c.bf16 %v293, %v291
      %v406 = vpack.c.bf16 %v294, %v294
      %v407 = vpack.c.bf16 %v295, %v295
      %v408 = vpack.c.bf16 %v298, %v296
      %v409 = vpack.c.bf16 %v299, %v297
      %v410 = vpack.c.bf16 %v300, %v300
      %v411 = vpack.c.bf16 %v301, %v301
      %v412 = vpack.c.bf16 %v304, %v302
      %v413 = vpack.c.bf16 %v305, %v303
      %v414 = vpack.c.bf16 %v306, %v306
      %v415 = vpack.c.bf16 %v307, %v307
      %v416 = vpack.c.bf16 %v310, %v308
      %v417 = vpack.c.bf16 %v311, %v309
      %v418 = vpack.c.bf16 %v312, %v312
      %v419 = vpack.c.bf16 %v313, %v313
      %v420 = vpack.c.bf16 %v316, %v314
      %v421 = vpack.c.bf16 %v317, %v315
      %v422 = vpack.c.bf16 %v318, %v318
      %v423 = vpack.c.bf16 %v319, %v319
      %v424 = vpack.c.bf16 %v322, %v320
      %v425 = vpack.c.bf16 %v323, %v321
      %v426 = vpack.c.bf16 %v324, %v324
      %v427 = vpack.c.bf16 %v325, %v325
      %v428 = vpack.c.bf16 %v328, %v326
      %v429 = vpack.c.bf16 %v329, %v327
      %v430 = vpack.c.bf16 %v330, %v330
      %v431 = vpack.c.bf16 %v331, %v331
      %v432 = vpack.c.bf16 %v334, %v332
      %v433 = vpack.c.bf16 %v335, %v333
      %v434 = vpack.c.bf16 %v336, %v336
      %v435 = vpack.c.bf16 %v337, %v337
      %v436 = vpack.c.bf16 %v340, %v338
      %v437 = vpack.c.bf16 %v341, %v339
      %v438 = vpack.c.bf16 %v342, %v342
      %v439 = vpack.c.bf16 %v343, %v343
      %v440 = vpack.c.bf16 %v346, %v344
      %v441 = vpack.c.bf16 %v347, %v345
      %v442 = vpack.c.bf16 %v348, %v348
      %v443 = vpack.c.bf16 %v349, %v349
      %v444 = vpack.c.bf16 %v352, %v350
      %v445 = vpack.c.bf16 %v353, %v351
      %v446 = vpack.c.bf16 %v354, %v354
      %v447 = vpack.c.bf16 %v355, %v355
      %v448 = vpack.c.bf16 %v358, %v356
      %v449 = vpack.c.bf16 %v359, %v357
      %v450 = vpack.c.bf16 %v360, %v360
      %v451 = vpack.c.bf16 %v361, %v361
      %v452 = vpack.c.bf16 %v364, %v362
      %v453 = vpack.c.bf16 %v365, %v363
      %v454 = vpack.c.bf16 %v366, %v366
      %v455 = vpack.c.bf16 %v367, %v367
      %v456 = vpack.c.bf16 %v370, %v368
      %v457 = vpack.c.bf16 %v371, %v369
      %v458 = vpack.c.bf16 %v372, %v372
      %v459 = vpack.c.bf16 %v373, %v373
      %v460 = vpack.c.bf16 %v376, %v374
      %v461 = vpack.c.bf16 %v377, %v375
      %v462 = vpack.c.bf16 %v378, %v378
      %v463 = vpack.c.bf16 %v379, %v379
      %v464 = vpack.c.bf16 %v382, %v380
      %v465 = vpack.c.bf16 %v383, %v381
      %v466 = vpack.c.bf16 %v384, %v384
      %v467 = vpack.c.bf16 %v385, %v385
      %v468 = vpack.c.bf16 %v388, %v386
      %v469 = vpack.c.bf16 %v389, %v387
      %v470 = vpack.c.bf16 %v390, %v390
      %v471 = vpack.c.bf16 %v391, %v391
      %v472 = vld [vmem:[%s143] sm:$0xfc]
      %v473 = vld [vmem:[%s143 + $0x8] sm:$0xfc]
      %v474 = vld [vmem:[%s143 + $0x20] sm:$0x3]
      %v475 = vld [vmem:[%s143 + $0x28] sm:$0x3]
      %v476 = vld [vmem:[%s143 + $0x30] sm:$0xfc]
      %v477 = vld [vmem:[%s143 + $0x38] sm:$0xfc]
      %v478 = vld [vmem:[%s143 + $0x50] sm:$0x3]
      %v479 = vld [vmem:[%s143 + $0x58] sm:$0x3]
      %v480 = vld [vmem:[%s143 + $0x60] sm:$0xfc]
      %v481 = vld [vmem:[%s143 + $0x68] sm:$0xfc]
      %v482 = vld [vmem:[%s143 + $0x80] sm:$0x3]
      %v483 = vld [vmem:[%s143 + $0x88] sm:$0x3]
      %v484 = vld [vmem:[%s143 + $0x90] sm:$0xfc]
      %v485 = vld [vmem:[%s143 + $0x98] sm:$0xfc]
      %v486 = vld [vmem:[%s143 + $0xb0] sm:$0x3]
      %v487 = vld [vmem:[%s143 + $0xb8] sm:$0x3]
      %v488 = vld [vmem:[%s143 + $0xc0] sm:$0xfc]
      %v489 = vld [vmem:[%s143 + $0xc8] sm:$0xfc]
      %v490 = vld [vmem:[%s143 + $0xe0] sm:$0x3]
      %v491 = vld [vmem:[%s143 + $0xe8] sm:$0x3]
      %v492 = vld [vmem:[%s143 + $0xf0] sm:$0xfc]
      %v493 = vld [vmem:[%s143 + $0xf8] sm:$0xfc]
      %v494 = vld [vmem:[%s143 + $0x110] sm:$0x3]
      %v495 = vld [vmem:[%s143 + $0x118] sm:$0x3]
      %v496 = vld [vmem:[%s143 + $0x120] sm:$0xfc]
      %v497 = vld [vmem:[%s143 + $0x128] sm:$0xfc]
      %v498 = vld [vmem:[%s143 + $0x140] sm:$0x3]
      %v499 = vld [vmem:[%s143 + $0x148] sm:$0x3]
      %v500 = vld [vmem:[%s143 + $0x150] sm:$0xfc]
      %v501 = vld [vmem:[%s143 + $0x158] sm:$0xfc]
      %v502 = vld [vmem:[%s143 + $0x170] sm:$0x3]
      %v503 = vld [vmem:[%s143 + $0x178] sm:$0x3]
      %v504 = vld [vmem:[%s143 + $0x180] sm:$0xfc]
      %v505 = vld [vmem:[%s143 + $0x188] sm:$0xfc]
      %v506 = vld [vmem:[%s143 + $0x1a0] sm:$0x3]
      %v507 = vld [vmem:[%s143 + $0x1a8] sm:$0x3]
      %v508 = vld [vmem:[%s143 + $0x1b0] sm:$0xfc]
      %v509 = vld [vmem:[%s143 + $0x1b8] sm:$0xfc]
      %v510 = vld [vmem:[%s143 + $0x1d0] sm:$0x3]
      %v511 = vld [vmem:[%s143 + $0x1d8] sm:$0x3]
      %v512 = vld [vmem:[%s143 + $0x1e0] sm:$0xfc]
      %v513 = vld [vmem:[%s143 + $0x1e8] sm:$0xfc]
      %v514 = vld [vmem:[%s143 + $0x200] sm:$0x3]
      %v515 = vld [vmem:[%s143 + $0x208] sm:$0x3]
      %v516 = vld [vmem:[%s143 + $0x210] sm:$0xfc]
      %v517 = vld [vmem:[%s143 + $0x218] sm:$0xfc]
      %v518 = vld [vmem:[%s143 + $0x230] sm:$0x3]
      %v519 = vld [vmem:[%s143 + $0x238] sm:$0x3]
      %v520 = vld [vmem:[%s143 + $0x240] sm:$0xfc]
      %v521 = vld [vmem:[%s143 + $0x248] sm:$0xfc]
      %v522 = vld [vmem:[%s143 + $0x260] sm:$0x3]
      %v523 = vld [vmem:[%s143 + $0x268] sm:$0x3]
      %v524 = vld [vmem:[%s143 + $0x270] sm:$0xfc]
      %v525 = vld [vmem:[%s143 + $0x278] sm:$0xfc]
      %v526 = vld [vmem:[%s143 + $0x290] sm:$0x3]
      %v527 = vld [vmem:[%s143 + $0x298] sm:$0x3]
      %v528 = vld [vmem:[%s143 + $0x2a0] sm:$0xfc]
      %v529 = vld [vmem:[%s143 + $0x2a8] sm:$0xfc]
      %v530 = vld [vmem:[%s143 + $0x2c0] sm:$0x3]
      %v531 = vld [vmem:[%s143 + $0x2c8] sm:$0x3]
      %v532 = vld [vmem:[%s143 + $0x2d0] sm:$0xfc]
      %v533 = vld [vmem:[%s143 + $0x2d8] sm:$0xfc]
      %v534 = vld [vmem:[%s143 + $0x2f0] sm:$0x3]
      %v535 = vld [vmem:[%s143 + $0x2f8] sm:$0x3]
      %v536 = vld [vmem:[%s143 + $0x300] sm:$0xfc]
      %v537 = vld [vmem:[%s143 + $0x308] sm:$0xfc]
      %v538 = vld [vmem:[%s143 + $0x320] sm:$0x3]
      %v539 = vld [vmem:[%s143 + $0x328] sm:$0x3]
      %v540 = vld [vmem:[%s143 + $0x330] sm:$0xfc]
      %v541 = vld [vmem:[%s143 + $0x338] sm:$0xfc]
      %v542 = vld [vmem:[%s143 + $0x350] sm:$0x3]
      %v543 = vld [vmem:[%s143 + $0x358] sm:$0x3]
      %v544 = vld [vmem:[%s143 + $0x360] sm:$0xfc]
      %v545 = vld [vmem:[%s143 + $0x368] sm:$0xfc]
      %v546 = vld [vmem:[%s143 + $0x380] sm:$0x3]
      %v547 = vld [vmem:[%s143 + $0x388] sm:$0x3]
      %v548 = vld [vmem:[%s143 + $0x390] sm:$0xfc]
      %v549 = vld [vmem:[%s143 + $0x398] sm:$0xfc]
      %v550 = vld [vmem:[%s143 + $0x3b0] sm:$0x3]
      %v551 = vld [vmem:[%s143 + $0x3b8] sm:$0x3]
      %v552 = vpack.c.bf16 %v274, %v472
      %v553 = vpack.c.bf16 %v275, %v473
      %v554 = vpack.c.bf16 %v474, %v474
      %v555 = vpack.c.bf16 %v475, %v475
      %v556 = vpack.c.bf16 %v280, %v476
      %v557 = vpack.c.bf16 %v281, %v477
      %v558 = vpack.c.bf16 %v478, %v478
      %v559 = vpack.c.bf16 %v479, %v479
      %v560 = vpack.c.bf16 %v286, %v480
      %v561 = vpack.c.bf16 %v287, %v481
      %v562 = vpack.c.bf16 %v482, %v482
      %v563 = vpack.c.bf16 %v483, %v483
      %v564 = vpack.c.bf16 %v292, %v484
      %v565 = vpack.c.bf16 %v293, %v485
      %v566 = vpack.c.bf16 %v486, %v486
      %v567 = vpack.c.bf16 %v487, %v487
      %v568 = vpack.c.bf16 %v298, %v488
      %v569 = vpack.c.bf16 %v299, %v489
      %v570 = vpack.c.bf16 %v490, %v490
      %v571 = vpack.c.bf16 %v491, %v491
      %v572 = vpack.c.bf16 %v304, %v492
      %v573 = vpack.c.bf16 %v305, %v493
      %v574 = vpack.c.bf16 %v494, %v494
      %v575 = vpack.c.bf16 %v495, %v495
      %v576 = vpack.c.bf16 %v310, %v496
      %v577 = vpack.c.bf16 %v311, %v497
      %v578 = vpack.c.bf16 %v498, %v498
      %v579 = vpack.c.bf16 %v499, %v499
      %v580 = vpack.c.bf16 %v316, %v500
      %v581 = vpack.c.bf16 %v317, %v501
      %v582 = vpack.c.bf16 %v502, %v502
      %v583 = vpack.c.bf16 %v503, %v503
      %v584 = vpack.c.bf16 %v322, %v504
      %v585 = vpack.c.bf16 %v323, %v505
      %v586 = vpack.c.bf16 %v506, %v506
      %v587 = vpack.c.bf16 %v507, %v507
      %v588 = vpack.c.bf16 %v328, %v508
      %v589 = vpack.c.bf16 %v329, %v509
      %v590 = vpack.c.bf16 %v510, %v510
      %v591 = vpack.c.bf16 %v511, %v511
      %v592 = vpack.c.bf16 %v334, %v512
      %v593 = vpack.c.bf16 %v335, %v513
      %v594 = vpack.c.bf16 %v514, %v514
      %v595 = vpack.c.bf16 %v515, %v515
      %v596 = vpack.c.bf16 %v340, %v516
      %v597 = vpack.c.bf16 %v341, %v517
      %v598 = vpack.c.bf16 %v518, %v518
      %v599 = vpack.c.bf16 %v519, %v519
      %v600 = vpack.c.bf16 %v346, %v520
      %v601 = vpack.c.bf16 %v347, %v521
      %v602 = vpack.c.bf16 %v522, %v522
      %v603 = vpack.c.bf16 %v523, %v523
      %v604 = vpack.c.bf16 %v352, %v524
      %v605 = vpack.c.bf16 %v353, %v525
      %v606 = vpack.c.bf16 %v526, %v526
      %v607 = vpack.c.bf16 %v527, %v527
      %v608 = vpack.c.bf16 %v358, %v528
      %v609 = vpack.c.bf16 %v359, %v529
      %v610 = vpack.c.bf16 %v530, %v530
      %v611 = vpack.c.bf16 %v531, %v531
      %v612 = vpack.c.bf16 %v364, %v532
      %v613 = vpack.c.bf16 %v365, %v533
      %v614 = vpack.c.bf16 %v534, %v534
      %v615 = vpack.c.bf16 %v535, %v535
      %v616 = vpack.c.bf16 %v370, %v536
      %v617 = vpack.c.bf16 %v371, %v537
      %v618 = vpack.c.bf16 %v538, %v538
      %v619 = vpack.c.bf16 %v539, %v539
      %v620 = vpack.c.bf16 %v376, %v540
      %v621 = vpack.c.bf16 %v377, %v541
      %v622 = vpack.c.bf16 %v542, %v542
      %v623 = vpack.c.bf16 %v543, %v543
      %v624 = vpack.c.bf16 %v382, %v544
      %v625 = vpack.c.bf16 %v383, %v545
      %v626 = vpack.c.bf16 %v546, %v546
      %v627 = vpack.c.bf16 %v547, %v547
      %v628 = vpack.c.bf16 %v388, %v548
      %v629 = vpack.c.bf16 %v389, %v549
      %v630 = vpack.c.bf16 %v550, %v550
      %v631 = vpack.c.bf16 %v551, %v551
      %vm632 = vsmask.f32 7424
      %v634 = vshrl.u32 %v392, 16
      %v636 = vshll.u32 %v392, 16
      %v638 = vrot.slane %v636, 1
      %v639 = vor.u32 %v634, %v638
      %v641 = vshll.u32 %v394, 16
      %v643 = vrot.slane %v641, 1
      %v644 = vsel %vm632, %v639, %v643
      %v646 = vshrl.u32 %v393, 16
      %v648 = vshll.u32 %v393, 16
      %v650 = vrot.slane %v648, 1
      %v651 = vor.u32 %v646, %v650
      %v653 = vshll.u32 %v395, 16
      %v655 = vrot.slane %v653, 1
      %v656 = vsel %vm632, %v651, %v655
      %v658 = vshrl.u32 %v396, 16
      %v660 = vshll.u32 %v396, 16
      %v662 = vrot.slane %v660, 1
      %v663 = vor.u32 %v658, %v662
      %v665 = vshll.u32 %v398, 16
      %v667 = vrot.slane %v665, 1
      %v668 = vsel %vm632, %v663, %v667
      %v670 = vshrl.u32 %v397, 16
      %v672 = vshll.u32 %v397, 16
      %v674 = vrot.slane %v672, 1
      %v675 = vor.u32 %v670, %v674
      %v677 = vshll.u32 %v399, 16
      %v679 = vrot.slane %v677, 1
      %v680 = vsel %vm632, %v675, %v679
      %v682 = vshrl.u32 %v400, 16
      %v684 = vshll.u32 %v400, 16
      %v686 = vrot.slane %v684, 1
      %v687 = vor.u32 %v682, %v686
      %v689 = vshll.u32 %v402, 16
      %v691 = vrot.slane %v689, 1
      %v692 = vsel %vm632, %v687, %v691
      %v694 = vshrl.u32 %v401, 16
      %v696 = vshll.u32 %v401, 16
      %v698 = vrot.slane %v696, 1
      %v699 = vor.u32 %v694, %v698
      %v701 = vshll.u32 %v403, 16
      %v703 = vrot.slane %v701, 1
      %v704 = vsel %vm632, %v699, %v703
      %v706 = vshrl.u32 %v404, 16
      %v708 = vshll.u32 %v404, 16
      %v710 = vrot.slane %v708, 1
      %v711 = vor.u32 %v706, %v710
      %v713 = vshll.u32 %v406, 16
      %v715 = vrot.slane %v713, 1
      %v716 = vsel %vm632, %v711, %v715
      %v718 = vshrl.u32 %v405, 16
      %v720 = vshll.u32 %v405, 16
      %v722 = vrot.slane %v720, 1
      %v723 = vor.u32 %v718, %v722
      %v725 = vshll.u32 %v407, 16
      %v727 = vrot.slane %v725, 1
      %v728 = vsel %vm632, %v723, %v727
      %v730 = vshrl.u32 %v408, 16
      %v732 = vshll.u32 %v408, 16
      %v734 = vrot.slane %v732, 1
      %v735 = vor.u32 %v730, %v734
      %v737 = vshll.u32 %v410, 16
      %v739 = vrot.slane %v737, 1
      %v740 = vsel %vm632, %v735, %v739
      %v742 = vshrl.u32 %v409, 16
      %v744 = vshll.u32 %v409, 16
      %v746 = vrot.slane %v744, 1
      %v747 = vor.u32 %v742, %v746
      %v749 = vshll.u32 %v411, 16
      %v751 = vrot.slane %v749, 1
      %v752 = vsel %vm632, %v747, %v751
      %v754 = vshrl.u32 %v412, 16
      %v756 = vshll.u32 %v412, 16
      %v758 = vrot.slane %v756, 1
      %v759 = vor.u32 %v754, %v758
      %v761 = vshll.u32 %v414, 16
      %v763 = vrot.slane %v761, 1
      %v764 = vsel %vm632, %v759, %v763
      %v766 = vshrl.u32 %v413, 16
      %v768 = vshll.u32 %v413, 16
      %v770 = vrot.slane %v768, 1
      %v771 = vor.u32 %v766, %v770
      %v773 = vshll.u32 %v415, 16
      %v775 = vrot.slane %v773, 1
      %v776 = vsel %vm632, %v771, %v775
      %v778 = vshrl.u32 %v416, 16
      %v780 = vshll.u32 %v416, 16
      %v782 = vrot.slane %v780, 1
      %v783 = vor.u32 %v778, %v782
      %v785 = vshll.u32 %v418, 16
      %v787 = vrot.slane %v785, 1
      %v788 = vsel %vm632, %v783, %v787
      %v790 = vshrl.u32 %v417, 16
      %v792 = vshll.u32 %v417, 16
      %v794 = vrot.slane %v792, 1
      %v795 = vor.u32 %v790, %v794
      %v797 = vshll.u32 %v419, 16
      %v799 = vrot.slane %v797, 1
      %v800 = vsel %vm632, %v795, %v799
      %v802 = vshrl.u32 %v420, 16
      %v804 = vshll.u32 %v420, 16
      %v806 = vrot.slane %v804, 1
      %v807 = vor.u32 %v802, %v806
      %v809 = vshll.u32 %v422, 16
      %v811 = vrot.slane %v809, 1
      %v812 = vsel %vm632, %v807, %v811
      %v814 = vshrl.u32 %v421, 16
      %v816 = vshll.u32 %v421, 16
      %v818 = vrot.slane %v816, 1
      %v819 = vor.u32 %v814, %v818
      %v821 = vshll.u32 %v423, 16
      %v823 = vrot.slane %v821, 1
      %v824 = vsel %vm632, %v819, %v823
      %v826 = vshrl.u32 %v424, 16
      %v828 = vshll.u32 %v424, 16
      %v830 = vrot.slane %v828, 1
      %v831 = vor.u32 %v826, %v830
      %v833 = vshll.u32 %v426, 16
      %v835 = vrot.slane %v833, 1
      %v836 = vsel %vm632, %v831, %v835
      %v838 = vshrl.u32 %v425, 16
      %v840 = vshll.u32 %v425, 16
      %v842 = vrot.slane %v840, 1
      %v843 = vor.u32 %v838, %v842
      %v845 = vshll.u32 %v427, 16
      %v847 = vrot.slane %v845, 1
      %v848 = vsel %vm632, %v843, %v847
      %v850 = vshrl.u32 %v428, 16
      %v852 = vshll.u32 %v428, 16
      %v854 = vrot.slane %v852, 1
      %v855 = vor.u32 %v850, %v854
      %v857 = vshll.u32 %v430, 16
      %v859 = vrot.slane %v857, 1
      %v860 = vsel %vm632, %v855, %v859
      %v862 = vshrl.u32 %v429, 16
      %v864 = vshll.u32 %v429, 16
      %v866 = vrot.slane %v864, 1
      %v867 = vor.u32 %v862, %v866
      %v869 = vshll.u32 %v431, 16
      %v871 = vrot.slane %v869, 1
      %v872 = vsel %vm632, %v867, %v871
      %v874 = vshrl.u32 %v432, 16
      %v876 = vshll.u32 %v432, 16
      %v878 = vrot.slane %v876, 1
      %v879 = vor.u32 %v874, %v878
      %v881 = vshll.u32 %v434, 16
      %v883 = vrot.slane %v881, 1
      %v884 = vsel %vm632, %v879, %v883
      %v886 = vshrl.u32 %v433, 16
      %v888 = vshll.u32 %v433, 16
      %v890 = vrot.slane %v888, 1
      %v891 = vor.u32 %v886, %v890
      %v893 = vshll.u32 %v435, 16
      %v895 = vrot.slane %v893, 1
      %v896 = vsel %vm632, %v891, %v895
      %v898 = vshrl.u32 %v436, 16
      %v900 = vshll.u32 %v436, 16
      %v902 = vrot.slane %v900, 1
      %v903 = vor.u32 %v898, %v902
      %v905 = vshll.u32 %v438, 16
      %v907 = vrot.slane %v905, 1
      %v908 = vsel %vm632, %v903, %v907
      %v910 = vshrl.u32 %v437, 16
      %v912 = vshll.u32 %v437, 16
      %v914 = vrot.slane %v912, 1
      %v915 = vor.u32 %v910, %v914
      %v917 = vshll.u32 %v439, 16
      %v919 = vrot.slane %v917, 1
      %v920 = vsel %vm632, %v915, %v919
      %v922 = vshrl.u32 %v440, 16
      %v924 = vshll.u32 %v440, 16
      %v926 = vrot.slane %v924, 1
      %v927 = vor.u32 %v922, %v926
      %v929 = vshll.u32 %v442, 16
      %v931 = vrot.slane %v929, 1
      %v932 = vsel %vm632, %v927, %v931
      %v934 = vshrl.u32 %v441, 16
      %v936 = vshll.u32 %v441, 16
      %v938 = vrot.slane %v936, 1
      %v939 = vor.u32 %v934, %v938
      %v941 = vshll.u32 %v443, 16
      %v943 = vrot.slane %v941, 1
      %v944 = vsel %vm632, %v939, %v943
      %v946 = vshrl.u32 %v444, 16
      %v948 = vshll.u32 %v444, 16
      %v950 = vrot.slane %v948, 1
      %v951 = vor.u32 %v946, %v950
      %v953 = vshll.u32 %v446, 16
      %v955 = vrot.slane %v953, 1
      %v956 = vsel %vm632, %v951, %v955
      %v958 = vshrl.u32 %v445, 16
      %v960 = vshll.u32 %v445, 16
      %v962 = vrot.slane %v960, 1
      %v963 = vor.u32 %v958, %v962
      %v965 = vshll.u32 %v447, 16
      %v967 = vrot.slane %v965, 1
      %v968 = vsel %vm632, %v963, %v967
      %v970 = vshrl.u32 %v448, 16
      %v972 = vshll.u32 %v448, 16
      %v974 = vrot.slane %v972, 1
      %v975 = vor.u32 %v970, %v974
      %v977 = vshll.u32 %v450, 16
      %v979 = vrot.slane %v977, 1
      %v980 = vsel %vm632, %v975, %v979
      %v982 = vshrl.u32 %v449, 16
      %v984 = vshll.u32 %v449, 16
      %v986 = vrot.slane %v984, 1
      %v987 = vor.u32 %v982, %v986
      %v989 = vshll.u32 %v451, 16
      %v991 = vrot.slane %v989, 1
      %v992 = vsel %vm632, %v987, %v991
      %v994 = vshrl.u32 %v452, 16
      %v996 = vshll.u32 %v452, 16
      %v998 = vrot.slane %v996, 1
      %v999 = vor.u32 %v994, %v998
      %v1001 = vshll.u32 %v454, 16
      %v1003 = vrot.slane %v1001, 1
      %v1004 = vsel %vm632, %v999, %v1003
      %v1006 = vshrl.u32 %v453, 16
      %v1008 = vshll.u32 %v453, 16
      %v1010 = vrot.slane %v1008, 1
      %v1011 = vor.u32 %v1006, %v1010
      %v1013 = vshll.u32 %v455, 16
      %v1015 = vrot.slane %v1013, 1
      %v1016 = vsel %vm632, %v1011, %v1015
      %v1018 = vshrl.u32 %v456, 16
      %v1020 = vshll.u32 %v456, 16
      %v1022 = vrot.slane %v1020, 1
      %v1023 = vor.u32 %v1018, %v1022
      %v1025 = vshll.u32 %v458, 16
      %v1027 = vrot.slane %v1025, 1
      %v1028 = vsel %vm632, %v1023, %v1027
      %v1030 = vshrl.u32 %v457, 16
      %v1032 = vshll.u32 %v457, 16
      %v1034 = vrot.slane %v1032, 1
      %v1035 = vor.u32 %v1030, %v1034
      %v1037 = vshll.u32 %v459, 16
      %v1039 = vrot.slane %v1037, 1
      %v1040 = vsel %vm632, %v1035, %v1039
      %v1042 = vshrl.u32 %v460, 16
      %v1044 = vshll.u32 %v460, 16
      %v1046 = vrot.slane %v1044, 1
      %v1047 = vor.u32 %v1042, %v1046
      %v1049 = vshll.u32 %v462, 16
      %v1051 = vrot.slane %v1049, 1
      %v1052 = vsel %vm632, %v1047, %v1051
      %v1054 = vshrl.u32 %v461, 16
      %v1056 = vshll.u32 %v461, 16
      %v1058 = vrot.slane %v1056, 1
      %v1059 = vor.u32 %v1054, %v1058
      %v1061 = vshll.u32 %v463, 16
      %v1063 = vrot.slane %v1061, 1
      %v1064 = vsel %vm632, %v1059, %v1063
      %v1066 = vshrl.u32 %v464, 16
      %v1068 = vshll.u32 %v464, 16
      %v1070 = vrot.slane %v1068, 1
      %v1071 = vor.u32 %v1066, %v1070
      %v1073 = vshll.u32 %v466, 16
      %v1075 = vrot.slane %v1073, 1
      %v1076 = vsel %vm632, %v1071, %v1075
      %v1078 = vshrl.u32 %v465, 16
      %v1080 = vshll.u32 %v465, 16
      %v1082 = vrot.slane %v1080, 1
      %v1083 = vor.u32 %v1078, %v1082
      %v1085 = vshll.u32 %v467, 16
      %v1087 = vrot.slane %v1085, 1
      %v1088 = vsel %vm632, %v1083, %v1087
      %v1090 = vshrl.u32 %v468, 16
      %v1092 = vshll.u32 %v468, 16
      %v1094 = vrot.slane %v1092, 1
      %v1095 = vor.u32 %v1090, %v1094
      %v1097 = vshll.u32 %v470, 16
      %v1099 = vrot.slane %v1097, 1
      %v1100 = vsel %vm632, %v1095, %v1099
      %v1102 = vshrl.u32 %v469, 16
      %v1104 = vshll.u32 %v469, 16
      %v1106 = vrot.slane %v1104, 1
      %v1107 = vor.u32 %v1102, %v1106
      %v1109 = vshll.u32 %v471, 16
      %v1111 = vrot.slane %v1109, 1
      %v1112 = vsel %vm632, %v1107, %v1111
      %vm1233 = vcmask 1046528
      %v1234 = vrot.slane %v552, 1
      %v1235 = vrot.slane %v554, 1
      %v1236 = vsel %vm1233, %v1234, %v1235
      %v1237 = vrot.slane %v553, 1
      %v1238 = vrot.slane %v555, 1
      %v1239 = vsel %vm1233, %v1237, %v1238
      %v1240 = vrot.slane %v556, 1
      %v1241 = vrot.slane %v558, 1
      %v1242 = vsel %vm1233, %v1240, %v1241
      %v1243 = vrot.slane %v557, 1
      %v1244 = vrot.slane %v559, 1
      %v1245 = vsel %vm1233, %v1243, %v1244
      %v1246 = vrot.slane %v560, 1
      %v1247 = vrot.slane %v562, 1
      %v1248 = vsel %vm1233, %v1246, %v1247
      %v1249 = vrot.slane %v561, 1
      %v1250 = vrot.slane %v563, 1
      %v1251 = vsel %vm1233, %v1249, %v1250
      %v1252 = vrot.slane %v564, 1
      %v1253 = vrot.slane %v566, 1
      %v1254 = vsel %vm1233, %v1252, %v1253
      %v1255 = vrot.slane %v565, 1
      %v1256 = vrot.slane %v567, 1
      %v1257 = vsel %vm1233, %v1255, %v1256
      %v1258 = vrot.slane %v568, 1
      %v1259 = vrot.slane %v570, 1
      %v1260 = vsel %vm1233, %v1258, %v1259
      %v1261 = vrot.slane %v569, 1
      %v1262 = vrot.slane %v571, 1
      %v1263 = vsel %vm1233, %v1261, %v1262
      %v1264 = vrot.slane %v572, 1
      %v1265 = vrot.slane %v574, 1
      %v1266 = vsel %vm1233, %v1264, %v1265
      %v1267 = vrot.slane %v573, 1
      %v1268 = vrot.slane %v575, 1
      %v1269 = vsel %vm1233, %v1267, %v1268
      %v1270 = vrot.slane %v576, 1
      %v1271 = vrot.slane %v578, 1
      %v1272 = vsel %vm1233, %v1270, %v1271
      %v1273 = vrot.slane %v577, 1
      %v1274 = vrot.slane %v579, 1
      %v1275 = vsel %vm1233, %v1273, %v1274
      %v1276 = vrot.slane %v580, 1
      %v1277 = vrot.slane %v582, 1
      %v1278 = vsel %vm1233, %v1276, %v1277
      %v1279 = vrot.slane %v581, 1
      %v1280 = vrot.slane %v583, 1
      %v1281 = vsel %vm1233, %v1279, %v1280
      %v1282 = vrot.slane %v584, 1
      %v1283 = vrot.slane %v586, 1
      %v1284 = vsel %vm1233, %v1282, %v1283
      %v1285 = vrot.slane %v585, 1
      %v1286 = vrot.slane %v587, 1
      %v1287 = vsel %vm1233, %v1285, %v1286
      %v1288 = vrot.slane %v588, 1
      %v1289 = vrot.slane %v590, 1
      %v1290 = vsel %vm1233, %v1288, %v1289
      %v1291 = vrot.slane %v589, 1
      %v1292 = vrot.slane %v591, 1
      %v1293 = vsel %vm1233, %v1291, %v1292
      %v1294 = vrot.slane %v592, 1
      %v1295 = vrot.slane %v594, 1
      %v1296 = vsel %vm1233, %v1294, %v1295
      %v1297 = vrot.slane %v593, 1
      %v1298 = vrot.slane %v595, 1
      %v1299 = vsel %vm1233, %v1297, %v1298
      %v1300 = vrot.slane %v596, 1
      %v1301 = vrot.slane %v598, 1
      %v1302 = vsel %vm1233, %v1300, %v1301
      %v1303 = vrot.slane %v597, 1
      %v1304 = vrot.slane %v599, 1
      %v1305 = vsel %vm1233, %v1303, %v1304
      %v1306 = vrot.slane %v600, 1
      %v1307 = vrot.slane %v602, 1
      %v1308 = vsel %vm1233, %v1306, %v1307
      %v1309 = vrot.slane %v601, 1
      %v1310 = vrot.slane %v603, 1
      %v1311 = vsel %vm1233, %v1309, %v1310
      %v1312 = vrot.slane %v604, 1
      %v1313 = vrot.slane %v606, 1
      %v1314 = vsel %vm1233, %v1312, %v1313
      %v1315 = vrot.slane %v605, 1
      %v1316 = vrot.slane %v607, 1
      %v1317 = vsel %vm1233, %v1315, %v1316
      %v1318 = vrot.slane %v608, 1
      %v1319 = vrot.slane %v610, 1
      %v1320 = vsel %vm1233, %v1318, %v1319
      %v1321 = vrot.slane %v609, 1
      %v1322 = vrot.slane %v611, 1
      %v1323 = vsel %vm1233, %v1321, %v1322
      %v1324 = vrot.slane %v612, 1
      %v1325 = vrot.slane %v614, 1
      %v1326 = vsel %vm1233, %v1324, %v1325
      %v1327 = vrot.slane %v613, 1
      %v1328 = vrot.slane %v615, 1
      %v1329 = vsel %vm1233, %v1327, %v1328
      %v1330 = vrot.slane %v616, 1
      %v1331 = vrot.slane %v618, 1
      %v1332 = vsel %vm1233, %v1330, %v1331
      %v1333 = vrot.slane %v617, 1
      %v1334 = vrot.slane %v619, 1
      %v1335 = vsel %vm1233, %v1333, %v1334
      %v1336 = vrot.slane %v620, 1
      %v1337 = vrot.slane %v622, 1
      %v1338 = vsel %vm1233, %v1336, %v1337
      %v1339 = vrot.slane %v621, 1
      %v1340 = vrot.slane %v623, 1
      %v1341 = vsel %vm1233, %v1339, %v1340
      %v1342 = vrot.slane %v624, 1
      %v1343 = vrot.slane %v626, 1
      %v1344 = vsel %vm1233, %v1342, %v1343
      %v1345 = vrot.slane %v625, 1
      %v1346 = vrot.slane %v627, 1
      %v1347 = vsel %vm1233, %v1345, %v1346
      %v1348 = vrot.slane %v628, 1
      %v1349 = vrot.slane %v630, 1
      %v1350 = vsel %vm1233, %v1348, %v1349
      %v1351 = vrot.slane %v629, 1
      %v1352 = vrot.slane %v631, 1
      %v1353 = vsel %vm1233, %v1351, %v1352
      %v1394 = vld [vmem:[%s1] sm:$0xff]
      %v1395 = vld [vmem:[%s1 + $0x8] sm:$0xff]
      %v1396 = vld [vmem:[%s1 + $0x10] sm:$0xff]
      %v1397 = vld [vmem:[%s1 + $0x18] sm:$0xff]
      %v1398 = vld [vmem:[%s1 + $0x20] sm:$0xff]
      %v1399 = vld [vmem:[%s1 + $0x28] sm:$0xff]
      %v1400 = vld [vmem:[%s1 + $0x30] sm:$0xff]
      %v1401 = vld [vmem:[%s1 + $0x38] sm:$0xff]
      %v1402 = vld [vmem:[%s1 + $0x40] sm:$0xff]
      %v1403 = vld [vmem:[%s1 + $0x48] sm:$0xff]
      %v1404 = vld [vmem:[%s1 + $0x50] sm:$0xff]
      %v1405 = vld [vmem:[%s1 + $0x58] sm:$0xff]
      %v1406 = vld [vmem:[%s1 + $0x60] sm:$0xff]
      %v1407 = vld [vmem:[%s1 + $0x68] sm:$0xff]
      %v1408 = vld [vmem:[%s1 + $0x70] sm:$0xff]
      %v1409 = vld [vmem:[%s1 + $0x78] sm:$0xff]
      %v1410 = vld [vmem:[%s1 + $0x80] sm:$0xff]
      %v1411 = vld [vmem:[%s1 + $0x88] sm:$0xff]
      %v1412 = vld [vmem:[%s1 + $0x90] sm:$0xff]
      %v1413 = vld [vmem:[%s1 + $0x98] sm:$0xff]
      %v1414 = vld [vmem:[%s1 + $0xa0] sm:$0xff]
      %v1415 = vld [vmem:[%s1 + $0xa8] sm:$0xff]
      %v1416 = vld [vmem:[%s1 + $0xb0] sm:$0xff]
      %v1417 = vld [vmem:[%s1 + $0xb8] sm:$0xff]
      %v1418 = vld [vmem:[%s1 + $0xc0] sm:$0xff]
      %v1419 = vld [vmem:[%s1 + $0xc8] sm:$0xff]
      %v1420 = vld [vmem:[%s1 + $0xd0] sm:$0xff]
      %v1421 = vld [vmem:[%s1 + $0xd8] sm:$0xff]
      %v1422 = vld [vmem:[%s1 + $0xe0] sm:$0xff]
      %v1423 = vld [vmem:[%s1 + $0xe8] sm:$0xff]
      %v1424 = vld [vmem:[%s1 + $0xf0] sm:$0xff]
      %v1425 = vld [vmem:[%s1 + $0xf8] sm:$0xff]
      %v1426 = vld [vmem:[%s1 + $0x100] sm:$0xff]
      %v1427 = vld [vmem:[%s1 + $0x108] sm:$0xff]
      %v1428 = vld [vmem:[%s1 + $0x110] sm:$0xff]
      %v1429 = vld [vmem:[%s1 + $0x118] sm:$0xff]
      %v1430 = vld [vmem:[%s1 + $0x120] sm:$0xff]
      %v1431 = vld [vmem:[%s1 + $0x128] sm:$0xff]
      %v1432 = vld [vmem:[%s1 + $0x130] sm:$0xff]
      %v1433 = vld [vmem:[%s1 + $0x138] sm:$0xff]
      %v1434 = vld [vmem:[%s1 + $0x140] sm:$0xff]
      %v1435 = vld [vmem:[%s1 + $0x148] sm:$0xff]
      %v1436 = vld [vmem:[%s1 + $0x150] sm:$0xff]
      %v1437 = vld [vmem:[%s1 + $0x158] sm:$0xff]
      %v1438 = vld [vmem:[%s1 + $0x160] sm:$0xff]
      %v1439 = vld [vmem:[%s1 + $0x168] sm:$0xff]
      %v1440 = vld [vmem:[%s1 + $0x170] sm:$0xff]
      %v1441 = vld [vmem:[%s1 + $0x178] sm:$0xff]
      %v1442 = vld [vmem:[%s1 + $0x180] sm:$0xff]
      %v1443 = vld [vmem:[%s1 + $0x188] sm:$0xff]
      %v1444 = vld [vmem:[%s1 + $0x190] sm:$0xff]
      %v1445 = vld [vmem:[%s1 + $0x198] sm:$0xff]
      %v1446 = vld [vmem:[%s1 + $0x1a0] sm:$0xff]
      %v1447 = vld [vmem:[%s1 + $0x1a8] sm:$0xff]
      %v1448 = vld [vmem:[%s1 + $0x1b0] sm:$0xff]
      %v1449 = vld [vmem:[%s1 + $0x1b8] sm:$0xff]
      %v1450 = vld [vmem:[%s1 + $0x1c0] sm:$0xff]
      %v1451 = vld [vmem:[%s1 + $0x1c8] sm:$0xff]
      %v1452 = vld [vmem:[%s1 + $0x1d0] sm:$0xff]
      %v1453 = vld [vmem:[%s1 + $0x1d8] sm:$0xff]
      %v1454 = vld [vmem:[%s1 + $0x1e0] sm:$0xff]
      %v1455 = vld [vmem:[%s1 + $0x1e8] sm:$0xff]
      %v1456 = vld [vmem:[%s1 + $0x1f0] sm:$0xff]
      %v1457 = vld [vmem:[%s1 + $0x1f8] sm:$0xff]
      %v1458 = vld [vmem:[%s1 + $0x200] sm:$0xff]
      %v1459 = vld [vmem:[%s1 + $0x208] sm:$0xff]
      %v1460 = vld [vmem:[%s1 + $0x210] sm:$0xff]
      %v1461 = vld [vmem:[%s1 + $0x218] sm:$0xff]
      %v1462 = vld [vmem:[%s1 + $0x220] sm:$0xff]
      %v1463 = vld [vmem:[%s1 + $0x228] sm:$0xff]
      %v1464 = vld [vmem:[%s1 + $0x230] sm:$0xff]
      %v1465 = vld [vmem:[%s1 + $0x238] sm:$0xff]
      %v1466 = vld [vmem:[%s1 + $0x240] sm:$0xff]
      %v1467 = vld [vmem:[%s1 + $0x248] sm:$0xff]
      %v1468 = vld [vmem:[%s1 + $0x250] sm:$0xff]
      %v1469 = vld [vmem:[%s1 + $0x258] sm:$0xff]
      %v1470 = vld [vmem:[%s1 + $0x260] sm:$0xff]
      %v1471 = vld [vmem:[%s1 + $0x268] sm:$0xff]
      %v1472 = vld [vmem:[%s1 + $0x270] sm:$0xff]
      %v1473 = vld [vmem:[%s1 + $0x278] sm:$0xff]
      %v1474 = vld [vmem:[%s1 + $0x280] sm:$0xff]
      %v1475 = vld [vmem:[%s1 + $0x288] sm:$0xff]
      %v1476 = vld [vmem:[%s1 + $0x290] sm:$0xff]
      %v1477 = vld [vmem:[%s1 + $0x298] sm:$0xff]
      %v1478 = vld [vmem:[%s1 + $0x2a0] sm:$0xff]
      %v1479 = vld [vmem:[%s1 + $0x2a8] sm:$0xff]
      %v1480 = vld [vmem:[%s1 + $0x2b0] sm:$0xff]
      %v1481 = vld [vmem:[%s1 + $0x2b8] sm:$0xff]
      %v1482 = vld [vmem:[%s1 + $0x2c0] sm:$0xff]
      %v1483 = vld [vmem:[%s1 + $0x2c8] sm:$0xff]
      %v1484 = vld [vmem:[%s1 + $0x2d0] sm:$0xff]
      %v1485 = vld [vmem:[%s1 + $0x2d8] sm:$0xff]
      %v1486 = vld [vmem:[%s1 + $0x2e0] sm:$0xff]
      %v1487 = vld [vmem:[%s1 + $0x2e8] sm:$0xff]
      %v1488 = vld [vmem:[%s1 + $0x2f0] sm:$0xff]
      %v1489 = vld [vmem:[%s1 + $0x2f8] sm:$0xff]
      %s1490 = scalar_lea.vmem %s1, 768
      %v1491 = vld [vmem:[%s1490] sm:$0xff]
      %v1492 = vld [vmem:[%s1490 + $0x8] sm:$0xff]
      %v1493 = vld [vmem:[%s1490 + $0x10] sm:$0xff]
      %v1494 = vld [vmem:[%s1490 + $0x18] sm:$0xff]
      %v1495 = vld [vmem:[%s1490 + $0x20] sm:$0xff]
      %v1496 = vld [vmem:[%s1490 + $0x28] sm:$0xff]
      %v1497 = vld [vmem:[%s1490 + $0x30] sm:$0xff]
      %v1498 = vld [vmem:[%s1490 + $0x38] sm:$0xff]
      %v1499 = vld [vmem:[%s1490 + $0x40] sm:$0xff]
      %v1500 = vld [vmem:[%s1490 + $0x48] sm:$0xff]
      %v1501 = vld [vmem:[%s1490 + $0x50] sm:$0xff]
      %v1502 = vld [vmem:[%s1490 + $0x58] sm:$0xff]
      %v1503 = vld [vmem:[%s1490 + $0x60] sm:$0xff]
      %v1504 = vld [vmem:[%s1490 + $0x68] sm:$0xff]
      %v1505 = vld [vmem:[%s1490 + $0x70] sm:$0xff]
      %v1506 = vld [vmem:[%s1490 + $0x78] sm:$0xff]
      %v1507 = vld [vmem:[%s1490 + $0x80] sm:$0xff]
      %v1508 = vld [vmem:[%s1490 + $0x88] sm:$0xff]
      %v1509 = vld [vmem:[%s1490 + $0x90] sm:$0xff]
      %v1510 = vld [vmem:[%s1490 + $0x98] sm:$0xff]
      %v1511 = vld [vmem:[%s1490 + $0xa0] sm:$0xff]
      %v1512 = vld [vmem:[%s1490 + $0xa8] sm:$0xff]
      %v1513 = vld [vmem:[%s1490 + $0xb0] sm:$0xff]
      %v1514 = vld [vmem:[%s1490 + $0xb8] sm:$0xff]
      %v1515 = vld [vmem:[%s1490 + $0xc0] sm:$0xff]
      %v1516 = vld [vmem:[%s1490 + $0xc8] sm:$0xff]
      %v1517 = vld [vmem:[%s1490 + $0xd0] sm:$0xff]
      %v1518 = vld [vmem:[%s1490 + $0xd8] sm:$0xff]
      %v1519 = vld [vmem:[%s1490 + $0xe0] sm:$0xff]
      %v1520 = vld [vmem:[%s1490 + $0xe8] sm:$0xff]
      %v1521 = vld [vmem:[%s1490 + $0xf0] sm:$0xff]
      %v1522 = vld [vmem:[%s1490 + $0xf8] sm:$0xff]
      %v1523 = vld [vmem:[%s1490 + $0x100] sm:$0xff]
      %v1524 = vld [vmem:[%s1490 + $0x108] sm:$0xff]
      %v1525 = vld [vmem:[%s1490 + $0x110] sm:$0xff]
      %v1526 = vld [vmem:[%s1490 + $0x118] sm:$0xff]
      %v1527 = vld [vmem:[%s1490 + $0x120] sm:$0xff]
      %v1528 = vld [vmem:[%s1490 + $0x128] sm:$0xff]
      %v1529 = vld [vmem:[%s1490 + $0x130] sm:$0xff]
      %v1530 = vld [vmem:[%s1490 + $0x138] sm:$0xff]
      %v1531 = vld [vmem:[%s1490 + $0x140] sm:$0xff]
      %v1532 = vld [vmem:[%s1490 + $0x148] sm:$0xff]
      %v1533 = vld [vmem:[%s1490 + $0x150] sm:$0xff]
      %v1534 = vld [vmem:[%s1490 + $0x158] sm:$0xff]
      %v1535 = vld [vmem:[%s1490 + $0x160] sm:$0xff]
      %v1536 = vld [vmem:[%s1490 + $0x168] sm:$0xff]
      %v1537 = vld [vmem:[%s1490 + $0x170] sm:$0xff]
      %v1538 = vld [vmem:[%s1490 + $0x178] sm:$0xff]
      %v1539 = vld [vmem:[%s1490 + $0x180] sm:$0xff]
      %v1540 = vld [vmem:[%s1490 + $0x188] sm:$0xff]
      %v1541 = vld [vmem:[%s1490 + $0x190] sm:$0xff]
      %v1542 = vld [vmem:[%s1490 + $0x198] sm:$0xff]
      %v1543 = vld [vmem:[%s1490 + $0x1a0] sm:$0xff]
      %v1544 = vld [vmem:[%s1490 + $0x1a8] sm:$0xff]
      %v1545 = vld [vmem:[%s1490 + $0x1b0] sm:$0xff]
      %v1546 = vld [vmem:[%s1490 + $0x1b8] sm:$0xff]
      %v1547 = vld [vmem:[%s1490 + $0x1c0] sm:$0xff]
      %v1548 = vld [vmem:[%s1490 + $0x1c8] sm:$0xff]
      %v1549 = vld [vmem:[%s1490 + $0x1d0] sm:$0xff]
      %v1550 = vld [vmem:[%s1490 + $0x1d8] sm:$0xff]
      %v1551 = vld [vmem:[%s1490 + $0x1e0] sm:$0xff]
      %v1552 = vld [vmem:[%s1490 + $0x1e8] sm:$0xff]
      %v1553 = vld [vmem:[%s1490 + $0x1f0] sm:$0xff]
      %v1554 = vld [vmem:[%s1490 + $0x1f8] sm:$0xff]
      %v1555 = vld [vmem:[%s1490 + $0x200] sm:$0xff]
      %v1556 = vld [vmem:[%s1490 + $0x208] sm:$0xff]
      %v1557 = vld [vmem:[%s1490 + $0x210] sm:$0xff]
      %v1558 = vld [vmem:[%s1490 + $0x218] sm:$0xff]
      %v1559 = vld [vmem:[%s1490 + $0x220] sm:$0xff]
      %v1560 = vld [vmem:[%s1490 + $0x228] sm:$0xff]
      %v1561 = vld [vmem:[%s1490 + $0x230] sm:$0xff]
      %v1562 = vld [vmem:[%s1490 + $0x238] sm:$0xff]
      %v1563 = vld [vmem:[%s1490 + $0x240] sm:$0xff]
      %v1564 = vld [vmem:[%s1490 + $0x248] sm:$0xff]
      %v1565 = vld [vmem:[%s1490 + $0x250] sm:$0xff]
      %v1566 = vld [vmem:[%s1490 + $0x258] sm:$0xff]
      %v1567 = vld [vmem:[%s1490 + $0x260] sm:$0xff]
      %v1568 = vld [vmem:[%s1490 + $0x268] sm:$0xff]
      %v1569 = vld [vmem:[%s1490 + $0x270] sm:$0xff]
      %v1570 = vld [vmem:[%s1490 + $0x278] sm:$0xff]
      %v1571 = vld [vmem:[%s1490 + $0x280] sm:$0xff]
      %v1572 = vld [vmem:[%s1490 + $0x288] sm:$0xff]
      %v1573 = vld [vmem:[%s1490 + $0x290] sm:$0xff]
      %v1574 = vld [vmem:[%s1490 + $0x298] sm:$0xff]
      %v1575 = vld [vmem:[%s1490 + $0x2a0] sm:$0xff]
      %v1576 = vld [vmem:[%s1490 + $0x2a8] sm:$0xff]
      %v1577 = vld [vmem:[%s1490 + $0x2b0] sm:$0xff]
      %v1578 = vld [vmem:[%s1490 + $0x2b8] sm:$0xff]
      %v1579 = vld [vmem:[%s1490 + $0x2c0] sm:$0xff]
      %v1580 = vld [vmem:[%s1490 + $0x2c8] sm:$0xff]
      %v1581 = vld [vmem:[%s1490 + $0x2d0] sm:$0xff]
      %v1582 = vld [vmem:[%s1490 + $0x2d8] sm:$0xff]
      %v1583 = vld [vmem:[%s1490 + $0x2e0] sm:$0xff]
      %v1584 = vld [vmem:[%s1490 + $0x2e8] sm:$0xff]
      %v1585 = vld [vmem:[%s1490 + $0x2f0] sm:$0xff]
      %v1586 = vld [vmem:[%s1490 + $0x2f8] sm:$0xff]
      %v1683 = vunpack.c.l.b16 %v1491
      %v1684 = vunpack.c.h.b16 %v1491
      %v1685 = vunpack.c.l.b16 %v1492
      %v1686 = vunpack.c.h.b16 %v1492
      %v1687 = vunpack.c.l.b16 %v1493
      %v1688 = vunpack.c.h.b16 %v1493
      %v1689 = vunpack.c.l.b16 %v1494
      %v1690 = vunpack.c.h.b16 %v1494
      %v1691 = vunpack.c.l.b16 %v1495
      %v1692 = vunpack.c.h.b16 %v1495
      %v1693 = vunpack.c.l.b16 %v1496
      %v1694 = vunpack.c.h.b16 %v1496
      %v1695 = vunpack.c.l.b16 %v1497
      %v1696 = vunpack.c.h.b16 %v1497
      %v1697 = vunpack.c.l.b16 %v1498
      %v1698 = vunpack.c.h.b16 %v1498
      %v1699 = vunpack.c.l.b16 %v1499
      %v1700 = vunpack.c.h.b16 %v1499
      %v1701 = vunpack.c.l.b16 %v1500
      %v1702 = vunpack.c.h.b16 %v1500
      %v1703 = vunpack.c.l.b16 %v1501
      %v1704 = vunpack.c.h.b16 %v1501
      %v1705 = vunpack.c.l.b16 %v1502
      %v1706 = vunpack.c.h.b16 %v1502
      %v1707 = vunpack.c.l.b16 %v1503
      %v1708 = vunpack.c.h.b16 %v1503
      %v1709 = vunpack.c.l.b16 %v1504
      %v1710 = vunpack.c.h.b16 %v1504
      %v1711 = vunpack.c.l.b16 %v1505
      %v1712 = vunpack.c.h.b16 %v1505
      %v1713 = vunpack.c.l.b16 %v1506
      %v1714 = vunpack.c.h.b16 %v1506
      %v1715 = vunpack.c.l.b16 %v1507
      %v1716 = vunpack.c.h.b16 %v1507
      %v1717 = vunpack.c.l.b16 %v1508
      %v1718 = vunpack.c.h.b16 %v1508
      %v1719 = vunpack.c.l.b16 %v1509
      %v1720 = vunpack.c.h.b16 %v1509
      %v1721 = vunpack.c.l.b16 %v1510
      %v1722 = vunpack.c.h.b16 %v1510
      %v1723 = vunpack.c.l.b16 %v1511
      %v1724 = vunpack.c.h.b16 %v1511
      %v1725 = vunpack.c.l.b16 %v1512
      %v1726 = vunpack.c.h.b16 %v1512
      %v1727 = vunpack.c.l.b16 %v1513
      %v1728 = vunpack.c.h.b16 %v1513
      %v1729 = vunpack.c.l.b16 %v1514
      %v1730 = vunpack.c.h.b16 %v1514
      %v1731 = vunpack.c.l.b16 %v1515
      %v1732 = vunpack.c.h.b16 %v1515
      %v1733 = vunpack.c.l.b16 %v1516
      %v1734 = vunpack.c.h.b16 %v1516
      %v1735 = vunpack.c.l.b16 %v1517
      %v1736 = vunpack.c.h.b16 %v1517
      %v1737 = vunpack.c.l.b16 %v1518
      %v1738 = vunpack.c.h.b16 %v1518
      %v1739 = vunpack.c.l.b16 %v1519
      %v1740 = vunpack.c.h.b16 %v1519
      %v1741 = vunpack.c.l.b16 %v1520
      %v1742 = vunpack.c.h.b16 %v1520
      %v1743 = vunpack.c.l.b16 %v1521
      %v1744 = vunpack.c.h.b16 %v1521
      %v1745 = vunpack.c.l.b16 %v1522
      %v1746 = vunpack.c.h.b16 %v1522
      %v1747 = vunpack.c.l.b16 %v1523
      %v1748 = vunpack.c.h.b16 %v1523
      %v1749 = vunpack.c.l.b16 %v1524
      %v1750 = vunpack.c.h.b16 %v1524
      %v1751 = vunpack.c.l.b16 %v1525
      %v1752 = vunpack.c.h.b16 %v1525
      %v1753 = vunpack.c.l.b16 %v1526
      %v1754 = vunpack.c.h.b16 %v1526
      %v1755 = vunpack.c.l.b16 %v1527
      %v1756 = vunpack.c.h.b16 %v1527
      %v1757 = vunpack.c.l.b16 %v1528
      %v1758 = vunpack.c.h.b16 %v1528
      %v1759 = vunpack.c.l.b16 %v1529
      %v1760 = vunpack.c.h.b16 %v1529
      %v1761 = vunpack.c.l.b16 %v1530
      %v1762 = vunpack.c.h.b16 %v1530
      %v1763 = vunpack.c.l.b16 %v1531
      %v1764 = vunpack.c.h.b16 %v1531
      %v1765 = vunpack.c.l.b16 %v1532
      %v1766 = vunpack.c.h.b16 %v1532
      %v1767 = vunpack.c.l.b16 %v1533
      %v1768 = vunpack.c.h.b16 %v1533
      %v1769 = vunpack.c.l.b16 %v1534
      %v1770 = vunpack.c.h.b16 %v1534
      %v1771 = vunpack.c.l.b16 %v1535
      %v1772 = vunpack.c.h.b16 %v1535
      %v1773 = vunpack.c.l.b16 %v1536
      %v1774 = vunpack.c.h.b16 %v1536
      %v1775 = vunpack.c.l.b16 %v1537
      %v1776 = vunpack.c.h.b16 %v1537
      %v1777 = vunpack.c.l.b16 %v1538
      %v1778 = vunpack.c.h.b16 %v1538
      %v1779 = vunpack.c.l.b16 %v1539
      %v1780 = vunpack.c.h.b16 %v1539
      %v1781 = vunpack.c.l.b16 %v1540
      %v1782 = vunpack.c.h.b16 %v1540
      %v1783 = vunpack.c.l.b16 %v1541
      %v1784 = vunpack.c.h.b16 %v1541
      %v1785 = vunpack.c.l.b16 %v1542
      %v1786 = vunpack.c.h.b16 %v1542
      %v1787 = vunpack.c.l.b16 %v1543
      %v1788 = vunpack.c.h.b16 %v1543
      %v1789 = vunpack.c.l.b16 %v1544
      %v1790 = vunpack.c.h.b16 %v1544
      %v1791 = vunpack.c.l.b16 %v1545
      %v1792 = vunpack.c.h.b16 %v1545
      %v1793 = vunpack.c.l.b16 %v1546
      %v1794 = vunpack.c.h.b16 %v1546
      %v1795 = vunpack.c.l.b16 %v1547
      %v1796 = vunpack.c.h.b16 %v1547
      %v1797 = vunpack.c.l.b16 %v1548
      %v1798 = vunpack.c.h.b16 %v1548
      %v1799 = vunpack.c.l.b16 %v1549
      %v1800 = vunpack.c.h.b16 %v1549
      %v1801 = vunpack.c.l.b16 %v1550
      %v1802 = vunpack.c.h.b16 %v1550
      %v1803 = vunpack.c.l.b16 %v1551
      %v1804 = vunpack.c.h.b16 %v1551
      %v1805 = vunpack.c.l.b16 %v1552
      %v1806 = vunpack.c.h.b16 %v1552
      %v1807 = vunpack.c.l.b16 %v1553
      %v1808 = vunpack.c.h.b16 %v1553
      %v1809 = vunpack.c.l.b16 %v1554
      %v1810 = vunpack.c.h.b16 %v1554
      %v1811 = vunpack.c.l.b16 %v1555
      %v1812 = vunpack.c.h.b16 %v1555
      %v1813 = vunpack.c.l.b16 %v1556
      %v1814 = vunpack.c.h.b16 %v1556
      %v1815 = vunpack.c.l.b16 %v1557
      %v1816 = vunpack.c.h.b16 %v1557
      %v1817 = vunpack.c.l.b16 %v1558
      %v1818 = vunpack.c.h.b16 %v1558
      %v1819 = vunpack.c.l.b16 %v1559
      %v1820 = vunpack.c.h.b16 %v1559
      %v1821 = vunpack.c.l.b16 %v1560
      %v1822 = vunpack.c.h.b16 %v1560
      %v1823 = vunpack.c.l.b16 %v1561
      %v1824 = vunpack.c.h.b16 %v1561
      %v1825 = vunpack.c.l.b16 %v1562
      %v1826 = vunpack.c.h.b16 %v1562
      %v1827 = vunpack.c.l.b16 %v1563
      %v1828 = vunpack.c.h.b16 %v1563
      %v1829 = vunpack.c.l.b16 %v1564
      %v1830 = vunpack.c.h.b16 %v1564
      %v1831 = vunpack.c.l.b16 %v1565
      %v1832 = vunpack.c.h.b16 %v1565
      %v1833 = vunpack.c.l.b16 %v1566
      %v1834 = vunpack.c.h.b16 %v1566
      %v1835 = vunpack.c.l.b16 %v1567
      %v1836 = vunpack.c.h.b16 %v1567
      %v1837 = vunpack.c.l.b16 %v1568
      %v1838 = vunpack.c.h.b16 %v1568
      %v1839 = vunpack.c.l.b16 %v1569
      %v1840 = vunpack.c.h.b16 %v1569
      %v1841 = vunpack.c.l.b16 %v1570
      %v1842 = vunpack.c.h.b16 %v1570
      %v1843 = vunpack.c.l.b16 %v1571
      %v1844 = vunpack.c.h.b16 %v1571
      %v1845 = vunpack.c.l.b16 %v1572
      %v1846 = vunpack.c.h.b16 %v1572
      %v1847 = vunpack.c.l.b16 %v1573
      %v1848 = vunpack.c.h.b16 %v1573
      %v1849 = vunpack.c.l.b16 %v1574
      %v1850 = vunpack.c.h.b16 %v1574
      %v1851 = vunpack.c.l.b16 %v1575
      %v1852 = vunpack.c.h.b16 %v1575
      %v1853 = vunpack.c.l.b16 %v1576
      %v1854 = vunpack.c.h.b16 %v1576
      %v1855 = vunpack.c.l.b16 %v1577
      %v1856 = vunpack.c.h.b16 %v1577
      %v1857 = vunpack.c.l.b16 %v1578
      %v1858 = vunpack.c.h.b16 %v1578
      %v1859 = vunpack.c.l.b16 %v1579
      %v1860 = vunpack.c.h.b16 %v1579
      %v1861 = vunpack.c.l.b16 %v1580
      %v1862 = vunpack.c.h.b16 %v1580
      %v1863 = vunpack.c.l.b16 %v1581
      %v1864 = vunpack.c.h.b16 %v1581
      %v1865 = vunpack.c.l.b16 %v1582
      %v1866 = vunpack.c.h.b16 %v1582
      %v1867 = vunpack.c.l.b16 %v1583
      %v1868 = vunpack.c.h.b16 %v1583
      %v1869 = vunpack.c.l.b16 %v1584
      %v1870 = vunpack.c.h.b16 %v1584
      %v1871 = vunpack.c.l.b16 %v1585
      %v1872 = vunpack.c.h.b16 %v1585
      %v1873 = vunpack.c.l.b16 %v1586
      %v1874 = vunpack.c.h.b16 %v1586
      %v1875 = vpack.c.b16 %v1685, %v1683
      %v1876 = vpack.c.b16 %v1686, %v1684
      %v1877 = vpack.c.b16 %v1689, %v1687
      %v1878 = vpack.c.b16 %v1690, %v1688
      %v1879 = vpack.c.b16 %v1693, %v1691
      %v1880 = vpack.c.b16 %v1694, %v1692
      %v1881 = vpack.c.b16 %v1697, %v1695
      %v1882 = vpack.c.b16 %v1698, %v1696
      %v1883 = vpack.c.b16 %v1701, %v1699
      %v1884 = vpack.c.b16 %v1702, %v1700
      %v1885 = vpack.c.b16 %v1705, %v1703
      %v1886 = vpack.c.b16 %v1706, %v1704
      %v1887 = vpack.c.b16 %v1709, %v1707
      %v1888 = vpack.c.b16 %v1710, %v1708
      %v1889 = vpack.c.b16 %v1713, %v1711
      %v1890 = vpack.c.b16 %v1714, %v1712
      %v1891 = vpack.c.b16 %v1717, %v1715
      %v1892 = vpack.c.b16 %v1718, %v1716
      %v1893 = vpack.c.b16 %v1721, %v1719
      %v1894 = vpack.c.b16 %v1722, %v1720
      %v1895 = vpack.c.b16 %v1725, %v1723
      %v1896 = vpack.c.b16 %v1726, %v1724
      %v1897 = vpack.c.b16 %v1729, %v1727
      %v1898 = vpack.c.b16 %v1730, %v1728
      %v1899 = vpack.c.b16 %v1733, %v1731
      %v1900 = vpack.c.b16 %v1734, %v1732
      %v1901 = vpack.c.b16 %v1737, %v1735
      %v1902 = vpack.c.b16 %v1738, %v1736
      %v1903 = vpack.c.b16 %v1741, %v1739
      %v1904 = vpack.c.b16 %v1742, %v1740
      %v1905 = vpack.c.b16 %v1745, %v1743
      %v1906 = vpack.c.b16 %v1746, %v1744
      %v1907 = vpack.c.b16 %v1749, %v1747
      %v1908 = vpack.c.b16 %v1750, %v1748
      %v1909 = vpack.c.b16 %v1753, %v1751
      %v1910 = vpack.c.b16 %v1754, %v1752
      %v1911 = vpack.c.b16 %v1757, %v1755
      %v1912 = vpack.c.b16 %v1758, %v1756
      %v1913 = vpack.c.b16 %v1761, %v1759
      %v1914 = vpack.c.b16 %v1762, %v1760
      %v1915 = vpack.c.b16 %v1765, %v1763
      %v1916 = vpack.c.b16 %v1766, %v1764
      %v1917 = vpack.c.b16 %v1769, %v1767
      %v1918 = vpack.c.b16 %v1770, %v1768
      %v1919 = vpack.c.b16 %v1773, %v1771
      %v1920 = vpack.c.b16 %v1774, %v1772
      %v1921 = vpack.c.b16 %v1777, %v1775
      %v1922 = vpack.c.b16 %v1778, %v1776
      %v1923 = vpack.c.b16 %v1781, %v1779
      %v1924 = vpack.c.b16 %v1782, %v1780
      %v1925 = vpack.c.b16 %v1785, %v1783
      %v1926 = vpack.c.b16 %v1786, %v1784
      %v1927 = vpack.c.b16 %v1789, %v1787
      %v1928 = vpack.c.b16 %v1790, %v1788
      %v1929 = vpack.c.b16 %v1793, %v1791
      %v1930 = vpack.c.b16 %v1794, %v1792
      %v1931 = vpack.c.b16 %v1797, %v1795
      %v1932 = vpack.c.b16 %v1798, %v1796
      %v1933 = vpack.c.b16 %v1801, %v1799
      %v1934 = vpack.c.b16 %v1802, %v1800
      %v1935 = vpack.c.b16 %v1805, %v1803
      %v1936 = vpack.c.b16 %v1806, %v1804
      %v1937 = vpack.c.b16 %v1809, %v1807
      %v1938 = vpack.c.b16 %v1810, %v1808
      %v1939 = vpack.c.b16 %v1813, %v1811
      %v1940 = vpack.c.b16 %v1814, %v1812
      %v1941 = vpack.c.b16 %v1817, %v1815
      %v1942 = vpack.c.b16 %v1818, %v1816
      %v1943 = vpack.c.b16 %v1821, %v1819
      %v1944 = vpack.c.b16 %v1822, %v1820
      %v1945 = vpack.c.b16 %v1825, %v1823
      %v1946 = vpack.c.b16 %v1826, %v1824
      %v1947 = vpack.c.b16 %v1829, %v1827
      %v1948 = vpack.c.b16 %v1830, %v1828
      %v1949 = vpack.c.b16 %v1833, %v1831
      %v1950 = vpack.c.b16 %v1834, %v1832
      %v1951 = vpack.c.b16 %v1837, %v1835
      %v1952 = vpack.c.b16 %v1838, %v1836
      %v1953 = vpack.c.b16 %v1841, %v1839
      %v1954 = vpack.c.b16 %v1842, %v1840
      %v1955 = vpack.c.b16 %v1845, %v1843
      %v1956 = vpack.c.b16 %v1846, %v1844
      %v1957 = vpack.c.b16 %v1849, %v1847
      %v1958 = vpack.c.b16 %v1850, %v1848
      %v1959 = vpack.c.b16 %v1853, %v1851
      %v1960 = vpack.c.b16 %v1854, %v1852
      %v1961 = vpack.c.b16 %v1857, %v1855
      %v1962 = vpack.c.b16 %v1858, %v1856
      %v1963 = vpack.c.b16 %v1861, %v1859
      %v1964 = vpack.c.b16 %v1862, %v1860
      %v1965 = vpack.c.b16 %v1865, %v1863
      %v1966 = vpack.c.b16 %v1866, %v1864
      %v1967 = vpack.c.b16 %v1869, %v1867
      %v1968 = vpack.c.b16 %v1870, %v1868
      %v1969 = vpack.c.b16 %v1873, %v1871
      %v1970 = vpack.c.b16 %v1874, %v1872
      %2067 = vmatprep.subr.bf16.mxu0 %v1876
      %2068 = vmatpush1.bf16.msra.mxu0 %v1875
      %2069 = vmatprep.subr.bf16.mxu0 %v1878
      %2070 = vmatpush1.bf16.msra.mxu0 %v1877
      %2071 = vmatprep.subr.bf16.mxu0 %v1880
      %2072 = vmatpush1.bf16.msra.mxu0 %v1879
      %2073 = vmatprep.subr.bf16.mxu0 %v1882
      %2074 = vmatpush1.bf16.msra.mxu0 %v1881
      %2075 = vmatprep.subr.bf16.mxu0 %v1884
      %2076 = vmatpush1.bf16.msra.mxu0 %v1883
      %2077 = vmatprep.subr.bf16.mxu0 %v1886
      %2078 = vmatpush1.bf16.msra.mxu0 %v1885
      %2079 = vmatprep.subr.bf16.mxu0 %v1888
      %2080 = vmatpush1.bf16.msra.mxu0 %v1887
      %2081 = vmatprep.subr.bf16.mxu0 %v1890
      %2082 = vmatpush1.bf16.msra.mxu0 %v1889
      %2083 = vmatprep.subr.bf16.mxu0 %v1892
      %2084 = vmatpush1.bf16.msra.mxu0 %v1891
      %2085 = vmatprep.subr.bf16.mxu0 %v1894
      %2086 = vmatpush1.bf16.msra.mxu0 %v1893
      %2087 = vmatprep.subr.bf16.mxu0 %v1896
      %2088 = vmatpush1.bf16.msra.mxu0 %v1895
      %2089 = vmatprep.subr.bf16.mxu0 %v1898
      %2090 = vmatpush1.bf16.msra.mxu0 %v1897
      %2091 = vmatprep.subr.bf16.mxu0 %v1900
      %2092 = vmatpush1.bf16.msra.mxu0 %v1899
      %2093 = vmatprep.subr.bf16.mxu0 %v1902
      %2094 = vmatpush1.bf16.msra.mxu0 %v1901
      %2095 = vmatprep.subr.bf16.mxu0 %v1904
      %2096 = vmatpush1.bf16.msra.mxu0 %v1903
      %2097 = vmatprep.subr.bf16.mxu0 %v1906
      %2098 = vmatpush1.bf16.msra.mxu0 %v1905
      %2099 = vmatprep.mubr.bf16.mxu0 %v235
      %2100 = vmatmul.mubr.bf16.gmra.mrb[0].mxu0 %v234
      %v2101 = vpop.f32.mrb[0].mxu0
      %v2102 = vadd.f32 0.0, %v2101
      %v2103 = vpop.f32.mrb[0].mxu0
      %v2104 = vadd.f32 0.0, %v2103
      %v2105 = vpop.f32.mrb[0].mxu0
      %v2106 = vadd.f32 0.0, %v2105
      %v2107 = vpop.f32.mrb[0].mxu0
      %v2108 = vadd.f32 0.0, %v2107
      %2109 = vmatprep.mubr.bf16.mxu0 %v237
      %2110 = vmatmul.mubr.bf16.gmra.mrb[0].mxu0 %v236
      %v2111 = vpop.f32.mrb[0].mxu0
      %v2112 = vadd.f32 0.0, %v2111
      %v2113 = vpop.f32.mrb[0].mxu0
      %v2114 = vadd.f32 0.0, %v2113
      %v2115 = vpop.f32.mrb[0].mxu0
      %v2116 = vadd.f32 0.0, %v2115
      %v2117 = vpop.f32.mrb[0].mxu0
      %v2118 = vadd.f32 0.0, %v2117
      %2119 = vmatprep.mubr.bf16.mxu0 %v239
      %2120 = vmatmul.mubr.bf16.gmra.mrb[0].mxu0 %v238
      %v2121 = vpop.f32.mrb[0].mxu0
      %v2122 = vadd.f32 0.0, %v2121
      %v2123 = vpop.f32.mrb[0].mxu0
      %v2124 = vadd.f32 0.0, %v2123
      %v2125 = vpop.f32.mrb[0].mxu0
      %v2126 = vadd.f32 0.0, %v2125
      %v2127 = vpop.f32.mrb[0].mxu0
      %v2128 = vadd.f32 0.0, %v2127
      %2129 = vmatprep.mubr.bf16.mxu0 %v241
      %2130 = vmatmul.mubr.bf16.gmra.mrb[0].mxu0 %v240
      %v2131 = vpop.f32.mrb[0].mxu0
      %v2132 = vadd.f32 0.0, %v2131
      %v2133 = vpop.f32.mrb[0].mxu0
      %v2134 = vadd.f32 0.0, %v2133
      %v2135 = vpop.f32.mrb[0].mxu0
      %v2136 = vadd.f32 0.0, %v2135
      %v2137 = vpop.f32.mrb[0].mxu0
      %v2138 = vadd.f32 0.0, %v2137
      %2139 = vmatprep.mubr.bf16.mxu0 %v243
      %2140 = vmatmul.mubr.bf16.gmra.mrb[0].mxu0 %v242
      %v2141 = vpop.f32.mrb[0].mxu0
      %v2142 = vadd.f32 0.0, %v2141
      %v2143 = vpop.f32.mrb[0].mxu0
      %v2144 = vadd.f32 0.0, %v2143
      %v2145 = vpop.f32.mrb[0].mxu0
      %v2146 = vadd.f32 0.0, %v2145
      %v2147 = vpop.f32.mrb[0].mxu0
      %v2148 = vadd.f32 0.0, %v2147
      %2149 = vmatprep.mubr.bf16.mxu0 %v245
      %2150 = vmatmul.mubr.bf16.gmra.mrb[0].mxu0 %v244
      %v2151 = vpop.f32.mrb[0].mxu0
      %v2152 = vadd.f32 0.0, %v2151
      %v2153 = vpop.f32.mrb[0].mxu0
      %v2154 = vadd.f32 0.0, %v2153
      %v2155 = vpop.f32.mrb[0].mxu0
      %v2156 = vadd.f32 0.0, %v2155
      %v2157 = vpop.f32.mrb[0].mxu0
      %v2158 = vadd.f32 0.0, %v2157
      %2159 = vmatprep.mubr.bf16.mxu0 %v247
      %2160 = vmatmul.mubr.bf16.gmra.mrb[0].mxu0 %v246
      %v2161 = vpop.f32.mrb[0].mxu0
      %v2162 = vadd.f32 0.0, %v2161
      %v2163 = vpop.f32.mrb[0].mxu0
      %v2164 = vadd.f32 0.0, %v2163
      %v2165 = vpop.f32.mrb[0].mxu0
      %v2166 = vadd.f32 0.0, %v2165
      %v2167 = vpop.f32.mrb[0].mxu0
      %v2168 = vadd.f32 0.0, %v2167
      %2169 = vmatprep.mubr.bf16.mxu0 %v249
      %2170 = vmatmul.mubr.bf16.gmra.mrb[0].mxu0 %v248
      %v2171 = vpop.f32.mrb[0].mxu0
      %v2172 = vadd.f32 0.0, %v2171
      %v2173 = vpop.f32.mrb[0].mxu0
      %v2174 = vadd.f32 0.0, %v2173
      %v2175 = vpop.f32.mrb[0].mxu0
      %v2176 = vadd.f32 0.0, %v2175
      %v2177 = vpop.f32.mrb[0].mxu0
      %v2178 = vadd.f32 0.0, %v2177
      %2179 = vmatprep.mubr.bf16.mxu0 %v255
      %2180 = vmatmul.mubr.bf16.gmra.mrb[0].mxu0 %v254
      %v2181 = vpop.f32.mrb[0].mxu0
      %v2182 = vadd.f32 0.0, %v2181
      %v2183 = vpop.f32.mrb[0].mxu0
      %v2184 = vadd.f32 0.0, %v2183
      %v2185 = vpop.f32.mrb[0].mxu0
      %v2186 = vadd.f32 0.0, %v2185
      %v2187 = vpop.f32.mrb[0].mxu0
      %v2188 = vadd.f32 0.0, %v2187
      %2189 = vmatprep.mubr.bf16.mxu0 %v257
      %2190 = vmatmul.mubr.bf16.gmra.mrb[0].mxu0 %v256
      %v2191 = vpop.f32.mrb[0].mxu0
      %v2192 = vadd.f32 0.0, %v2191
      %v2193 = vpop.f32.mrb[0].mxu0
      %v2194 = vadd.f32 0.0, %v2193
      %v2195 = vpop.f32.mrb[0].mxu0
      %v2196 = vadd.f32 0.0, %v2195
      %v2197 = vpop.f32.mrb[0].mxu0
      %v2198 = vadd.f32 0.0, %v2197
      %2199 = vmatprep.mubr.bf16.mxu0 %v259
      %2200 = vmatmul.mubr.bf16.gmra.mrb[0].mxu0 %v258
      %v2201 = vpop.f32.mrb[0].mxu0
      %v2202 = vadd.f32 0.0, %v2201
      %v2203 = vpop.f32.mrb[0].mxu0
      %v2204 = vadd.f32 0.0, %v2203
      %v2205 = vpop.f32.mrb[0].mxu0
      %v2206 = vadd.f32 0.0, %v2205
      %v2207 = vpop.f32.mrb[0].mxu0
      %v2208 = vadd.f32 0.0, %v2207
      %2209 = vmatprep.mubr.bf16.mxu0 %v261
      %2210 = vmatmul.mubr.bf16.gmra.mrb[0].mxu0 %v260
      %v2211 = vpop.f32.mrb[0].mxu0
      %v2212 = vadd.f32 0.0, %v2211
      %v2213 = vpop.f32.mrb[0].mxu0
      %v2214 = vadd.f32 0.0, %v2213
      %v2215 = vpop.f32.mrb[0].mxu0
      %v2216 = vadd.f32 0.0, %v2215
      %v2217 = vpop.f32.mrb[0].mxu0
      %v2218 = vadd.f32 0.0, %v2217
      %2219 = vmatprep.mubr.bf16.mxu0 %v263
      %2220 = vmatmul.mubr.bf16.gmra.mrb[0].mxu0 %v262
      %v2221 = vpop.f32.mrb[0].mxu0
      %v2222 = vadd.f32 0.0, %v2221
      %v2223 = vpop.f32.mrb[0].mxu0
      %v2224 = vadd.f32 0.0, %v2223
      %v2225 = vpop.f32.mrb[0].mxu0
      %v2226 = vadd.f32 0.0, %v2225
      %v2227 = vpop.f32.mrb[0].mxu0
      %v2228 = vadd.f32 0.0, %v2227
      %2229 = vmatprep.mubr.bf16.mxu0 %v265
      %2230 = vmatmul.mubr.bf16.gmra.mrb[0].mxu0 %v264
      %v2231 = vpop.f32.mrb[0].mxu0
      %v2232 = vadd.f32 0.0, %v2231
      %v2233 = vpop.f32.mrb[0].mxu0
      %v2234 = vadd.f32 0.0, %v2233
      %v2235 = vpop.f32.mrb[0].mxu0
      %v2236 = vadd.f32 0.0, %v2235
      %v2237 = vpop.f32.mrb[0].mxu0
      %v2238 = vadd.f32 0.0, %v2237
      %2239 = vmatprep.mubr.bf16.mxu0 %v267
      %2240 = vmatmul.mubr.bf16.gmra.mrb[0].mxu0 %v266
      %v2241 = vpop.f32.mrb[0].mxu0
      %v2242 = vadd.f32 0.0, %v2241
      %v2243 = vpop.f32.mrb[0].mxu0
      %v2244 = vadd.f32 0.0, %v2243
      %v2245 = vpop.f32.mrb[0].mxu0
      %v2246 = vadd.f32 0.0, %v2245
      %v2247 = vpop.f32.mrb[0].mxu0
      %v2248 = vadd.f32 0.0, %v2247
      %2249 = vmatprep.mubr.bf16.mxu0 %v269
      %2250 = vmatmul.mubr.bf16.gmra.mrb[0].mxu0 %v268
      %v2251 = vpop.f32.mrb[0].mxu0
      %v2252 = vadd.f32 0.0, %v2251
      %v2253 = vpop.f32.mrb[0].mxu0
      %v2254 = vadd.f32 0.0, %v2253
      %v2255 = vpop.f32.mrb[0].mxu0
      %v2256 = vadd.f32 0.0, %v2255
      %v2257 = vpop.f32.mrb[0].mxu0
      %v2258 = vadd.f32 0.0, %v2257
      %2259 = vdwg.mxu0
      %2260 = vmatprep.subr.bf16.mxu0 %v1908
      %2261 = vmatpush1.bf16.msra.mxu0 %v1907
      %2262 = vmatprep.subr.bf16.mxu0 %v1910
      %2263 = vmatpush1.bf16.msra.mxu0 %v1909
      %2264 = vmatprep.subr.bf16.mxu0 %v1912
      %2265 = vmatpush1.bf16.msra.mxu0 %v1911
      %2266 = vmatprep.subr.bf16.mxu0 %v1914
      %2267 = vmatpush1.bf16.msra.mxu0 %v1913
      %2268 = vmatprep.subr.bf16.mxu0 %v1916
      %2269 = vmatpush1.bf16.msra.mxu0 %v1915
      %2270 = vmatprep.subr.bf16.mxu0 %v1918
      %2271 = vmatpush1.bf16.msra.mxu0 %v1917
      %2272 = vmatprep.subr.bf16.mxu0 %v1920
      %2273 = vmatpush1.bf16.msra.mxu0 %v1919
      %2274 = vmatprep.subr.bf16.mxu0 %v1922
      %2275 = vmatpush1.bf16.msra.mxu0 %v1921
      %2276 = vmatprep.subr.bf16.mxu0 %v1924
      %2277 = vmatpush1.bf16.msra.mxu0 %v1923
      %2278 = vmatprep.subr.bf16.mxu0 %v1926
      %2279 = vmatpush1.bf16.msra.mxu0 %v1925
      %2280 = vmatprep.subr.bf16.mxu0 %v1928
      %2281 = vmatpush1.bf16.msra.mxu0 %v1927
      %2282 = vmatprep.subr.bf16.mxu0 %v1930
      %2283 = vmatpush1.bf16.msra.mxu0 %v1929
      %2284 = vmatprep.subr.bf16.mxu0 %v1932
      %2285 = vmatpush1.bf16.msra.mxu0 %v1931
      %2286 = vmatprep.subr.bf16.mxu0 %v1934
      %2287 = vmatpush1.bf16.msra.mxu0 %v1933
      %2288 = vmatprep.subr.bf16.mxu0 %v1936
      %2289 = vmatpush1.bf16.msra.mxu0 %v1935
      %2290 = vmatprep.subr.bf16.mxu0 %v1938
      %2291 = vmatpush1.bf16.msra.mxu0 %v1937
      %2292 = vmatprep.mubr.bf16.mxu0 %v680
      %2293 = vmatmul.mubr.bf16.gmra.mrb[0].mxu0 %v668
      %v2294 = vpop.f32.mrb[0].mxu0
      %v2295 = vadd.f32 %v2102, %v2294
      %v2296 = vpop.f32.mrb[0].mxu0
      %v2297 = vadd.f32 %v2104, %v2296
      %v2298 = vpop.f32.mrb[0].mxu0
      %v2299 = vadd.f32 %v2106, %v2298
      %v2300 = vpop.f32.mrb[0].mxu0
      %v2301 = vadd.f32 %v2108, %v2300
      %2302 = vmatprep.mubr.bf16.mxu0 %v704
      %2303 = vmatmul.mubr.bf16.gmra.mrb[0].mxu0 %v692
      %v2304 = vpop.f32.mrb[0].mxu0
      %v2305 = vadd.f32 %v2112, %v2304
      %v2306 = vpop.f32.mrb[0].mxu0
      %v2307 = vadd.f32 %v2114, %v2306
      %v2308 = vpop.f32.mrb[0].mxu0
      %v2309 = vadd.f32 %v2116, %v2308
      %v2310 = vpop.f32.mrb[0].mxu0
      %v2311 = vadd.f32 %v2118, %v2310
      %2312 = vmatprep.mubr.bf16.mxu0 %v728
      %2313 = vmatmul.mubr.bf16.gmra.mrb[0].mxu0 %v716
      %v2314 = vpop.f32.mrb[0].mxu0
      %v2315 = vadd.f32 %v2122, %v2314
      %v2316 = vpop.f32.mrb[0].mxu0
      %v2317 = vadd.f32 %v2124, %v2316
      %v2318 = vpop.f32.mrb[0].mxu0
      %v2319 = vadd.f32 %v2126, %v2318
      %v2320 = vpop.f32.mrb[0].mxu0
      %v2321 = vadd.f32 %v2128, %v2320
      %2322 = vmatprep.mubr.bf16.mxu0 %v752
      %2323 = vmatmul.mubr.bf16.gmra.mrb[0].mxu0 %v740
      %v2324 = vpop.f32.mrb[0].mxu0
      %v2325 = vadd.f32 %v2132, %v2324
      %v2326 = vpop.f32.mrb[0].mxu0
      %v2327 = vadd.f32 %v2134, %v2326
      %v2328 = vpop.f32.mrb[0].mxu0
      %v2329 = vadd.f32 %v2136, %v2328
      %v2330 = vpop.f32.mrb[0].mxu0
      %v2331 = vadd.f32 %v2138, %v2330
      %2332 = vmatprep.mubr.bf16.mxu0 %v776
      %2333 = vmatmul.mubr.bf16.gmra.mrb[0].mxu0 %v764
      %v2334 = vpop.f32.mrb[0].mxu0
      %v2335 = vadd.f32 %v2142, %v2334
      %v2336 = vpop.f32.mrb[0].mxu0
      %v2337 = vadd.f32 %v2144, %v2336
      %v2338 = vpop.f32.mrb[0].mxu0
      %v2339 = vadd.f32 %v2146, %v2338
      %v2340 = vpop.f32.mrb[0].mxu0
      %v2341 = vadd.f32 %v2148, %v2340
      %2342 = vmatprep.mubr.bf16.mxu0 %v800
      %2343 = vmatmul.mubr.bf16.gmra.mrb[0].mxu0 %v788
      %v2344 = vpop.f32.mrb[0].mxu0
      %v2345 = vadd.f32 %v2152, %v2344
      %v2346 = vpop.f32.mrb[0].mxu0
      %v2347 = vadd.f32 %v2154, %v2346
      %v2348 = vpop.f32.mrb[0].mxu0
      %v2349 = vadd.f32 %v2156, %v2348
      %v2350 = vpop.f32.mrb[0].mxu0
      %v2351 = vadd.f32 %v2158, %v2350
      %2352 = vmatprep.mubr.bf16.mxu0 %v824
      %2353 = vmatmul.mubr.bf16.gmra.mrb[0].mxu0 %v812
      %v2354 = vpop.f32.mrb[0].mxu0
      %v2355 = vadd.f32 %v2162, %v2354
      %v2356 = vpop.f32.mrb[0].mxu0
      %v2357 = vadd.f32 %v2164, %v2356
      %v2358 = vpop.f32.mrb[0].mxu0
      %v2359 = vadd.f32 %v2166, %v2358
      %v2360 = vpop.f32.mrb[0].mxu0
      %v2361 = vadd.f32 %v2168, %v2360
      %2362 = vmatprep.mubr.bf16.mxu0 %v848
      %2363 = vmatmul.mubr.bf16.gmra.mrb[0].mxu0 %v836
      %v2364 = vpop.f32.mrb[0].mxu0
      %v2365 = vadd.f32 %v2172, %v2364
      %v2366 = vpop.f32.mrb[0].mxu0
      %v2367 = vadd.f32 %v2174, %v2366
      %v2368 = vpop.f32.mrb[0].mxu0
      %v2369 = vadd.f32 %v2176, %v2368
      %v2370 = vpop.f32.mrb[0].mxu0
      %v2371 = vadd.f32 %v2178, %v2370
      %2372 = vmatprep.mubr.bf16.mxu0 %v920
      %2373 = vmatmul.mubr.bf16.gmra.mrb[0].mxu0 %v908
      %v2374 = vpop.f32.mrb[0].mxu0
      %v2375 = vadd.f32 %v2182, %v2374
      %v2376 = vpop.f32.mrb[0].mxu0
      %v2377 = vadd.f32 %v2184, %v2376
      %v2378 = vpop.f32.mrb[0].mxu0
      %v2379 = vadd.f32 %v2186, %v2378
      %v2380 = vpop.f32.mrb[0].mxu0
      %v2381 = vadd.f32 %v2188, %v2380
      %2382 = vmatprep.mubr.bf16.mxu0 %v944
      %2383 = vmatmul.mubr.bf16.gmra.mrb[0].mxu0 %v932
      %v2384 = vpop.f32.mrb[0].mxu0
      %v2385 = vadd.f32 %v2192, %v2384
      %v2386 = vpop.f32.mrb[0].mxu0
      %v2387 = vadd.f32 %v2194, %v2386
      %v2388 = vpop.f32.mrb[0].mxu0
      %v2389 = vadd.f32 %v2196, %v2388
      %v2390 = vpop.f32.mrb[0].mxu0
      %v2391 = vadd.f32 %v2198, %v2390
      %2392 = vmatprep.mubr.bf16.mxu0 %v968
      %2393 = vmatmul.mubr.bf16.gmra.mrb[0].mxu0 %v956
      %v2394 = vpop.f32.mrb[0].mxu0
      %v2395 = vadd.f32 %v2202, %v2394
      %v2396 = vpop.f32.mrb[0].mxu0
      %v2397 = vadd.f32 %v2204, %v2396
      %v2398 = vpop.f32.mrb[0].mxu0
      %v2399 = vadd.f32 %v2206, %v2398
      %v2400 = vpop.f32.mrb[0].mxu0
      %v2401 = vadd.f32 %v2208, %v2400
      %2402 = vmatprep.mubr.bf16.mxu0 %v992
      %2403 = vmatmul.mubr.bf16.gmra.mrb[0].mxu0 %v980
      %v2404 = vpop.f32.mrb[0].mxu0
      %v2405 = vadd.f32 %v2212, %v2404
      %v2406 = vpop.f32.mrb[0].mxu0
      %v2407 = vadd.f32 %v2214, %v2406
      %v2408 = vpop.f32.mrb[0].mxu0
      %v2409 = vadd.f32 %v2216, %v2408
      %v2410 = vpop.f32.mrb[0].mxu0
      %v2411 = vadd.f32 %v2218, %v2410
      %2412 = vmatprep.mubr.bf16.mxu0 %v1016
      %2413 = vmatmul.mubr.bf16.gmra.mrb[0].mxu0 %v1004
      %v2414 = vpop.f32.mrb[0].mxu0
      %v2415 = vadd.f32 %v2222, %v2414
      %v2416 = vpop.f32.mrb[0].mxu0
      %v2417 = vadd.f32 %v2224, %v2416
      %v2418 = vpop.f32.mrb[0].mxu0
      %v2419 = vadd.f32 %v2226, %v2418
      %v2420 = vpop.f32.mrb[0].mxu0
      %v2421 = vadd.f32 %v2228, %v2420
      %2422 = vmatprep.mubr.bf16.mxu0 %v1040
      %2423 = vmatmul.mubr.bf16.gmra.mrb[0].mxu0 %v1028
      %v2424 = vpop.f32.mrb[0].mxu0
      %v2425 = vadd.f32 %v2232, %v2424
      %v2426 = vpop.f32.mrb[0].mxu0
      %v2427 = vadd.f32 %v2234, %v2426
      %v2428 = vpop.f32.mrb[0].mxu0
      %v2429 = vadd.f32 %v2236, %v2428
      %v2430 = vpop.f32.mrb[0].mxu0
      %v2431 = vadd.f32 %v2238, %v2430
      %2432 = vmatprep.mubr.bf16.mxu0 %v1064
      %2433 = vmatmul.mubr.bf16.gmra.mrb[0].mxu0 %v1052
      %v2434 = vpop.f32.mrb[0].mxu0
      %v2435 = vadd.f32 %v2242, %v2434
      %v2436 = vpop.f32.mrb[0].mxu0
      %v2437 = vadd.f32 %v2244, %v2436
      %v2438 = vpop.f32.mrb[0].mxu0
      %v2439 = vadd.f32 %v2246, %v2438
      %v2440 = vpop.f32.mrb[0].mxu0
      %v2441 = vadd.f32 %v2248, %v2440
      %2442 = vmatprep.mubr.bf16.mxu0 %v1088
      %2443 = vmatmul.mubr.bf16.gmra.mrb[0].mxu0 %v1076
      %v2444 = vpop.f32.mrb[0].mxu0
      %v2445 = vadd.f32 %v2252, %v2444
      %v2446 = vpop.f32.mrb[0].mxu0
      %v2447 = vadd.f32 %v2254, %v2446
      %v2448 = vpop.f32.mrb[0].mxu0
      %v2449 = vadd.f32 %v2256, %v2448
      %v2450 = vpop.f32.mrb[0].mxu0
      %v2451 = vadd.f32 %v2258, %v2450
      %2452 = vdwg.mxu0
      %2453 = vmatprep.subr.bf16.mxu0 %v1940
      %2454 = vmatpush1.bf16.msra.mxu0 %v1939
      %2455 = vmatprep.subr.bf16.mxu0 %v1942
      %2456 = vmatpush1.bf16.msra.mxu0 %v1941
      %2457 = vmatprep.subr.bf16.mxu0 %v1944
      %2458 = vmatpush1.bf16.msra.mxu0 %v1943
      %2459 = vmatprep.subr.bf16.mxu0 %v1946
      %2460 = vmatpush1.bf16.msra.mxu0 %v1945
      %2461 = vmatprep.subr.bf16.mxu0 %v1948
      %2462 = vmatpush1.bf16.msra.mxu0 %v1947
      %2463 = vmatprep.subr.bf16.mxu0 %v1950
      %2464 = vmatpush1.bf16.msra.mxu0 %v1949
      %2465 = vmatprep.subr.bf16.mxu0 %v1952
      %2466 = vmatpush1.bf16.msra.mxu0 %v1951
      %2467 = vmatprep.subr.bf16.mxu0 %v1954
      %2468 = vmatpush1.bf16.msra.mxu0 %v1953
      %2469 = vmatprep.subr.bf16.mxu0 %v1956
      %2470 = vmatpush1.bf16.msra.mxu0 %v1955
      %2471 = vmatprep.subr.bf16.mxu0 %v1958
      %2472 = vmatpush1.bf16.msra.mxu0 %v1957
      %2473 = vmatprep.subr.bf16.mxu0 %v1960
      %2474 = vmatpush1.bf16.msra.mxu0 %v1959
      %2475 = vmatprep.subr.bf16.mxu0 %v1962
      %2476 = vmatpush1.bf16.msra.mxu0 %v1961
      %2477 = vmatprep.subr.bf16.mxu0 %v1964
      %2478 = vmatpush1.bf16.msra.mxu0 %v1963
      %2479 = vmatprep.subr.bf16.mxu0 %v1966
      %2480 = vmatpush1.bf16.msra.mxu0 %v1965
      %2481 = vmatprep.subr.bf16.mxu0 %v1968
      %2482 = vmatpush1.bf16.msra.mxu0 %v1967
      %2483 = vmatprep.subr.bf16.mxu0 %v1970
      %2484 = vmatpush1.bf16.msra.mxu0 %v1969
      %2485 = vmatprep.mubr.bf16.mxu0 %v1245
      %2486 = vmatmul.mubr.bf16.gmra.mrb[0].mxu0 %v1242
      %v2487 = vpop.f32.mrb[0].mxu0
      %v2488 = vadd.f32 %v2295, %v2487
      %v2489 = vpop.f32.mrb[0].mxu0
      %v2490 = vadd.f32 %v2297, %v2489
      %v2491 = vpop.f32.mrb[0].mxu0
      %v2492 = vadd.f32 %v2299, %v2491
      %v2493 = vpop.f32.mrb[0].mxu0
      %v2494 = vadd.f32 %v2301, %v2493
      %2495 = vmatprep.mubr.bf16.mxu0 %v1251
      %2496 = vmatmul.mubr.bf16.gmra.mrb[0].mxu0 %v1248
      %v2497 = vpop.f32.mrb[0].mxu0
      %v2498 = vadd.f32 %v2305, %v2497
      %v2499 = vpop.f32.mrb[0].mxu0
      %v2500 = vadd.f32 %v2307, %v2499
      %v2501 = vpop.f32.mrb[0].mxu0
      %v2502 = vadd.f32 %v2309, %v2501
      %v2503 = vpop.f32.mrb[0].mxu0
      %v2504 = vadd.f32 %v2311, %v2503
      %2505 = vmatprep.mubr.bf16.mxu0 %v1257
      %2506 = vmatmul.mubr.bf16.gmra.mrb[0].mxu0 %v1254
      %v2507 = vpop.f32.mrb[0].mxu0
      %v2508 = vadd.f32 %v2315, %v2507
      %v2509 = vpop.f32.mrb[0].mxu0
      %v2510 = vadd.f32 %v2317, %v2509
      %v2511 = vpop.f32.mrb[0].mxu0
      %v2512 = vadd.f32 %v2319, %v2511
      %v2513 = vpop.f32.mrb[0].mxu0
      %v2514 = vadd.f32 %v2321, %v2513
      %2515 = vmatprep.mubr.bf16.mxu0 %v1263
      %2516 = vmatmul.mubr.bf16.gmra.mrb[0].mxu0 %v1260
      %v2517 = vpop.f32.mrb[0].mxu0
      %v2518 = vadd.f32 %v2325, %v2517
      %v2519 = vpop.f32.mrb[0].mxu0
      %v2520 = vadd.f32 %v2327, %v2519
      %v2521 = vpop.f32.mrb[0].mxu0
      %v2522 = vadd.f32 %v2329, %v2521
      %v2523 = vpop.f32.mrb[0].mxu0
      %v2524 = vadd.f32 %v2331, %v2523
      %2525 = vmatprep.mubr.bf16.mxu0 %v1269
      %2526 = vmatmul.mubr.bf16.gmra.mrb[0].mxu0 %v1266
      %v2527 = vpop.f32.mrb[0].mxu0
      %v2528 = vadd.f32 %v2335, %v2527
      %v2529 = vpop.f32.mrb[0].mxu0
      %v2530 = vadd.f32 %v2337, %v2529
      %v2531 = vpop.f32.mrb[0].mxu0
      %v2532 = vadd.f32 %v2339, %v2531
      %v2533 = vpop.f32.mrb[0].mxu0
      %v2534 = vadd.f32 %v2341, %v2533
      %2535 = vmatprep.mubr.bf16.mxu0 %v1275
      %2536 = vmatmul.mubr.bf16.gmra.mrb[0].mxu0 %v1272
      %v2537 = vpop.f32.mrb[0].mxu0
      %v2538 = vadd.f32 %v2345, %v2537
      %v2539 = vpop.f32.mrb[0].mxu0
      %v2540 = vadd.f32 %v2347, %v2539
      %v2541 = vpop.f32.mrb[0].mxu0
      %v2542 = vadd.f32 %v2349, %v2541
      %v2543 = vpop.f32.mrb[0].mxu0
      %v2544 = vadd.f32 %v2351, %v2543
      %2545 = vmatprep.mubr.bf16.mxu0 %v1281
      %2546 = vmatmul.mubr.bf16.gmra.mrb[0].mxu0 %v1278
      %v2547 = vpop.f32.mrb[0].mxu0
      %v2548 = vadd.f32 %v2355, %v2547
      %v2549 = vpop.f32.mrb[0].mxu0
      %v2550 = vadd.f32 %v2357, %v2549
      %v2551 = vpop.f32.mrb[0].mxu0
      %v2552 = vadd.f32 %v2359, %v2551
      %v2553 = vpop.f32.mrb[0].mxu0
      %v2554 = vadd.f32 %v2361, %v2553
      %2555 = vmatprep.mubr.bf16.mxu0 %v1287
      %2556 = vmatmul.mubr.bf16.gmra.mrb[0].mxu0 %v1284
      %v2557 = vpop.f32.mrb[0].mxu0
      %v2558 = vadd.f32 %v2365, %v2557
      %v2559 = vpop.f32.mrb[0].mxu0
      %v2560 = vadd.f32 %v2367, %v2559
      %v2561 = vpop.f32.mrb[0].mxu0
      %v2562 = vadd.f32 %v2369, %v2561
      %v2563 = vpop.f32.mrb[0].mxu0
      %v2564 = vadd.f32 %v2371, %v2563
      %2565 = vmatprep.mubr.bf16.mxu0 %v1305
      %2566 = vmatmul.mubr.bf16.gmra.mrb[0].mxu0 %v1302
      %v2567 = vpop.f32.mrb[0].mxu0
      %v2568 = vadd.f32 %v2375, %v2567
      %v2569 = vpop.f32.mrb[0].mxu0
      %v2570 = vadd.f32 %v2377, %v2569
      %v2571 = vpop.f32.mrb[0].mxu0
      %v2572 = vadd.f32 %v2379, %v2571
      %v2573 = vpop.f32.mrb[0].mxu0
      %v2574 = vadd.f32 %v2381, %v2573
      %2575 = vmatprep.mubr.bf16.mxu0 %v1311
      %2576 = vmatmul.mubr.bf16.gmra.mrb[0].mxu0 %v1308
      %v2577 = vpop.f32.mrb[0].mxu0
      %v2578 = vadd.f32 %v2385, %v2577
      %v2579 = vpop.f32.mrb[0].mxu0
      %v2580 = vadd.f32 %v2387, %v2579
      %v2581 = vpop.f32.mrb[0].mxu0
      %v2582 = vadd.f32 %v2389, %v2581
      %v2583 = vpop.f32.mrb[0].mxu0
      %v2584 = vadd.f32 %v2391, %v2583
      %2585 = vmatprep.mubr.bf16.mxu0 %v1317
      %2586 = vmatmul.mubr.bf16.gmra.mrb[0].mxu0 %v1314
      %v2587 = vpop.f32.mrb[0].mxu0
      %v2588 = vadd.f32 %v2395, %v2587
      %v2589 = vpop.f32.mrb[0].mxu0
      %v2590 = vadd.f32 %v2397, %v2589
      %v2591 = vpop.f32.mrb[0].mxu0
      %v2592 = vadd.f32 %v2399, %v2591
      %v2593 = vpop.f32.mrb[0].mxu0
      %v2594 = vadd.f32 %v2401, %v2593
      %2595 = vmatprep.mubr.bf16.mxu0 %v1323
      %2596 = vmatmul.mubr.bf16.gmra.mrb[0].mxu0 %v1320
      %v2597 = vpop.f32.mrb[0].mxu0
      %v2598 = vadd.f32 %v2405, %v2597
      %v2599 = vpop.f32.mrb[0].mxu0
      %v2600 = vadd.f32 %v2407, %v2599
      %v2601 = vpop.f32.mrb[0].mxu0
      %v2602 = vadd.f32 %v2409, %v2601
      %v2603 = vpop.f32.mrb[0].mxu0
      %v2604 = vadd.f32 %v2411, %v2603
      %2605 = vmatprep.mubr.bf16.mxu0 %v1329
      %2606 = vmatmul.mubr.bf16.gmra.mrb[0].mxu0 %v1326
      %v2607 = vpop.f32.mrb[0].mxu0
      %v2608 = vadd.f32 %v2415, %v2607
      %v2609 = vpop.f32.mrb[0].mxu0
      %v2610 = vadd.f32 %v2417, %v2609
      %v2611 = vpop.f32.mrb[0].mxu0
      %v2612 = vadd.f32 %v2419, %v2611
      %v2613 = vpop.f32.mrb[0].mxu0
      %v2614 = vadd.f32 %v2421, %v2613
      %2615 = vmatprep.mubr.bf16.mxu0 %v1335
      %2616 = vmatmul.mubr.bf16.gmra.mrb[0].mxu0 %v1332
      %v2617 = vpop.f32.mrb[0].mxu0
      %v2618 = vadd.f32 %v2425, %v2617
      %v2619 = vpop.f32.mrb[0].mxu0
      %v2620 = vadd.f32 %v2427, %v2619
      %v2621 = vpop.f32.mrb[0].mxu0
      %v2622 = vadd.f32 %v2429, %v2621
      %v2623 = vpop.f32.mrb[0].mxu0
      %v2624 = vadd.f32 %v2431, %v2623
      %2625 = vmatprep.mubr.bf16.mxu0 %v1341
      %2626 = vmatmul.mubr.bf16.gmra.mrb[0].mxu0 %v1338
      %v2627 = vpop.f32.mrb[0].mxu0
      %v2628 = vadd.f32 %v2435, %v2627
      %v2629 = vpop.f32.mrb[0].mxu0
      %v2630 = vadd.f32 %v2437, %v2629
      %v2631 = vpop.f32.mrb[0].mxu0
      %v2632 = vadd.f32 %v2439, %v2631
      %v2633 = vpop.f32.mrb[0].mxu0
      %v2634 = vadd.f32 %v2441, %v2633
      %2635 = vmatprep.mubr.bf16.mxu0 %v1347
      %2636 = vmatmul.mubr.bf16.gmra.mrb[0].mxu0 %v1344
      %v2637 = vpop.f32.mrb[0].mxu0
      %v2638 = vadd.f32 %v2445, %v2637
      %v2639 = vpop.f32.mrb[0].mxu0
      %v2640 = vadd.f32 %v2447, %v2639
      %v2641 = vpop.f32.mrb[0].mxu0
      %v2642 = vadd.f32 %v2449, %v2641
      %v2643 = vpop.f32.mrb[0].mxu0
      %v2644 = vadd.f32 %v2451, %v2643
      %2645 = vdwg.mxu0
      %v2742 = vunpack.c.l.b16 %v1394
      %v2743 = vunpack.c.h.b16 %v1394
      %v2744 = vunpack.c.l.b16 %v1395
      %v2745 = vunpack.c.h.b16 %v1395
      %v2746 = vunpack.c.l.b16 %v1396
      %v2747 = vunpack.c.h.b16 %v1396
      %v2748 = vunpack.c.l.b16 %v1397
      %v2749 = vunpack.c.h.b16 %v1397
      %v2750 = vunpack.c.l.b16 %v1398
      %v2751 = vunpack.c.h.b16 %v1398
      %v2752 = vunpack.c.l.b16 %v1399
      %v2753 = vunpack.c.h.b16 %v1399
      %v2754 = vunpack.c.l.b16 %v1400
      %v2755 = vunpack.c.h.b16 %v1400
      %v2756 = vunpack.c.l.b16 %v1401
      %v2757 = vunpack.c.h.b16 %v1401
      %v2758 = vunpack.c.l.b16 %v1402
      %v2759 = vunpack.c.h.b16 %v1402
      %v2760 = vunpack.c.l.b16 %v1403
      %v2761 = vunpack.c.h.b16 %v1403
      %v2762 = vunpack.c.l.b16 %v1404
      %v2763 = vunpack.c.h.b16 %v1404
      %v2764 = vunpack.c.l.b16 %v1405
      %v2765 = vunpack.c.h.b16 %v1405
      %v2766 = vunpack.c.l.b16 %v1406
      %v2767 = vunpack.c.h.b16 %v1406
      %v2768 = vunpack.c.l.b16 %v1407
      %v2769 = vunpack.c.h.b16 %v1407
      %v2770 = vunpack.c.l.b16 %v1408
      %v2771 = vunpack.c.h.b16 %v1408
      %v2772 = vunpack.c.l.b16 %v1409
      %v2773 = vunpack.c.h.b16 %v1409
      %v2774 = vunpack.c.l.b16 %v1410
      %v2775 = vunpack.c.h.b16 %v1410
      %v2776 = vunpack.c.l.b16 %v1411
      %v2777 = vunpack.c.h.b16 %v1411
      %v2778 = vunpack.c.l.b16 %v1412
      %v2779 = vunpack.c.h.b16 %v1412
      %v2780 = vunpack.c.l.b16 %v1413
      %v2781 = vunpack.c.h.b16 %v1413
      %v2782 = vunpack.c.l.b16 %v1414
      %v2783 = vunpack.c.h.b16 %v1414
      %v2784 = vunpack.c.l.b16 %v1415
      %v2785 = vunpack.c.h.b16 %v1415
      %v2786 = vunpack.c.l.b16 %v1416
      %v2787 = vunpack.c.h.b16 %v1416
      %v2788 = vunpack.c.l.b16 %v1417
      %v2789 = vunpack.c.h.b16 %v1417
      %v2790 = vunpack.c.l.b16 %v1418
      %v2791 = vunpack.c.h.b16 %v1418
      %v2792 = vunpack.c.l.b16 %v1419
      %v2793 = vunpack.c.h.b16 %v1419
      %v2794 = vunpack.c.l.b16 %v1420
      %v2795 = vunpack.c.h.b16 %v1420
      %v2796 = vunpack.c.l.b16 %v1421
      %v2797 = vunpack.c.h.b16 %v1421
      %v2798 = vunpack.c.l.b16 %v1422
      %v2799 = vunpack.c.h.b16 %v1422
      %v2800 = vunpack.c.l.b16 %v1423
      %v2801 = vunpack.c.h.b16 %v1423
      %v2802 = vunpack.c.l.b16 %v1424
      %v2803 = vunpack.c.h.b16 %v1424
      %v2804 = vunpack.c.l.b16 %v1425
      %v2805 = vunpack.c.h.b16 %v1425
      %v2806 = vunpack.c.l.b16 %v1426
      %v2807 = vunpack.c.h.b16 %v1426
      %v2808 = vunpack.c.l.b16 %v1427
      %v2809 = vunpack.c.h.b16 %v1427
      %v2810 = vunpack.c.l.b16 %v1428
      %v2811 = vunpack.c.h.b16 %v1428
      %v2812 = vunpack.c.l.b16 %v1429
      %v2813 = vunpack.c.h.b16 %v1429
      %v2814 = vunpack.c.l.b16 %v1430
      %v2815 = vunpack.c.h.b16 %v1430
      %v2816 = vunpack.c.l.b16 %v1431
      %v2817 = vunpack.c.h.b16 %v1431
      %v2818 = vunpack.c.l.b16 %v1432
      %v2819 = vunpack.c.h.b16 %v1432
      %v2820 = vunpack.c.l.b16 %v1433
      %v2821 = vunpack.c.h.b16 %v1433
      %v2822 = vunpack.c.l.b16 %v1434
      %v2823 = vunpack.c.h.b16 %v1434
      %v2824 = vunpack.c.l.b16 %v1435
      %v2825 = vunpack.c.h.b16 %v1435
      %v2826 = vunpack.c.l.b16 %v1436
      %v2827 = vunpack.c.h.b16 %v1436
      %v2828 = vunpack.c.l.b16 %v1437
      %v2829 = vunpack.c.h.b16 %v1437
      %v2830 = vunpack.c.l.b16 %v1438
      %v2831 = vunpack.c.h.b16 %v1438
      %v2832 = vunpack.c.l.b16 %v1439
      %v2833 = vunpack.c.h.b16 %v1439
      %v2834 = vunpack.c.l.b16 %v1440
      %v2835 = vunpack.c.h.b16 %v1440
      %v2836 = vunpack.c.l.b16 %v1441
      %v2837 = vunpack.c.h.b16 %v1441
      %v2838 = vunpack.c.l.b16 %v1442
      %v2839 = vunpack.c.h.b16 %v1442
      %v2840 = vunpack.c.l.b16 %v1443
      %v2841 = vunpack.c.h.b16 %v1443
      %v2842 = vunpack.c.l.b16 %v1444
      %v2843 = vunpack.c.h.b16 %v1444
      %v2844 = vunpack.c.l.b16 %v1445
      %v2845 = vunpack.c.h.b16 %v1445
      %v2846 = vunpack.c.l.b16 %v1446
      %v2847 = vunpack.c.h.b16 %v1446
      %v2848 = vunpack.c.l.b16 %v1447
      %v2849 = vunpack.c.h.b16 %v1447
      %v2850 = vunpack.c.l.b16 %v1448
      %v2851 = vunpack.c.h.b16 %v1448
      %v2852 = vunpack.c.l.b16 %v1449
      %v2853 = vunpack.c.h.b16 %v1449
      %v2854 = vunpack.c.l.b16 %v1450
      %v2855 = vunpack.c.h.b16 %v1450
      %v2856 = vunpack.c.l.b16 %v1451
      %v2857 = vunpack.c.h.b16 %v1451
      %v2858 = vunpack.c.l.b16 %v1452
      %v2859 = vunpack.c.h.b16 %v1452
      %v2860 = vunpack.c.l.b16 %v1453
      %v2861 = vunpack.c.h.b16 %v1453
      %v2862 = vunpack.c.l.b16 %v1454
      %v2863 = vunpack.c.h.b16 %v1454
      %v2864 = vunpack.c.l.b16 %v1455
      %v2865 = vunpack.c.h.b16 %v1455
      %v2866 = vunpack.c.l.b16 %v1456
      %v2867 = vunpack.c.h.b16 %v1456
      %v2868 = vunpack.c.l.b16 %v1457
      %v2869 = vunpack.c.h.b16 %v1457
      %v2870 = vunpack.c.l.b16 %v1458
      %v2871 = vunpack.c.h.b16 %v1458
      %v2872 = vunpack.c.l.b16 %v1459
      %v2873 = vunpack.c.h.b16 %v1459
      %v2874 = vunpack.c.l.b16 %v1460
      %v2875 = vunpack.c.h.b16 %v1460
      %v2876 = vunpack.c.l.b16 %v1461
      %v2877 = vunpack.c.h.b16 %v1461
      %v2878 = vunpack.c.l.b16 %v1462
      %v2879 = vunpack.c.h.b16 %v1462
      %v2880 = vunpack.c.l.b16 %v1463
      %v2881 = vunpack.c.h.b16 %v1463
      %v2882 = vunpack.c.l.b16 %v1464
      %v2883 = vunpack.c.h.b16 %v1464
      %v2884 = vunpack.c.l.b16 %v1465
      %v2885 = vunpack.c.h.b16 %v1465
      %v2886 = vunpack.c.l.b16 %v1466
      %v2887 = vunpack.c.h.b16 %v1466
      %v2888 = vunpack.c.l.b16 %v1467
      %v2889 = vunpack.c.h.b16 %v1467
      %v2890 = vunpack.c.l.b16 %v1468
      %v2891 = vunpack.c.h.b16 %v1468
      %v2892 = vunpack.c.l.b16 %v1469
      %v2893 = vunpack.c.h.b16 %v1469
      %v2894 = vunpack.c.l.b16 %v1470
      %v2895 = vunpack.c.h.b16 %v1470
      %v2896 = vunpack.c.l.b16 %v1471
      %v2897 = vunpack.c.h.b16 %v1471
      %v2898 = vunpack.c.l.b16 %v1472
      %v2899 = vunpack.c.h.b16 %v1472
      %v2900 = vunpack.c.l.b16 %v1473
      %v2901 = vunpack.c.h.b16 %v1473
      %v2902 = vunpack.c.l.b16 %v1474
      %v2903 = vunpack.c.h.b16 %v1474
      %v2904 = vunpack.c.l.b16 %v1475
      %v2905 = vunpack.c.h.b16 %v1475
      %v2906 = vunpack.c.l.b16 %v1476
      %v2907 = vunpack.c.h.b16 %v1476
      %v2908 = vunpack.c.l.b16 %v1477
      %v2909 = vunpack.c.h.b16 %v1477
      %v2910 = vunpack.c.l.b16 %v1478
      %v2911 = vunpack.c.h.b16 %v1478
      %v2912 = vunpack.c.l.b16 %v1479
      %v2913 = vunpack.c.h.b16 %v1479
      %v2914 = vunpack.c.l.b16 %v1480
      %v2915 = vunpack.c.h.b16 %v1480
      %v2916 = vunpack.c.l.b16 %v1481
      %v2917 = vunpack.c.h.b16 %v1481
      %v2918 = vunpack.c.l.b16 %v1482
      %v2919 = vunpack.c.h.b16 %v1482
      %v2920 = vunpack.c.l.b16 %v1483
      %v2921 = vunpack.c.h.b16 %v1483
      %v2922 = vunpack.c.l.b16 %v1484
      %v2923 = vunpack.c.h.b16 %v1484
      %v2924 = vunpack.c.l.b16 %v1485
      %v2925 = vunpack.c.h.b16 %v1485
      %v2926 = vunpack.c.l.b16 %v1486
      %v2927 = vunpack.c.h.b16 %v1486
      %v2928 = vunpack.c.l.b16 %v1487
      %v2929 = vunpack.c.h.b16 %v1487
      %v2930 = vunpack.c.l.b16 %v1488
      %v2931 = vunpack.c.h.b16 %v1488
      %v2932 = vunpack.c.l.b16 %v1489
      %v2933 = vunpack.c.h.b16 %v1489
      %v2934 = vpack.c.b16 %v2744, %v2742
      %v2935 = vpack.c.b16 %v2745, %v2743
      %v2936 = vpack.c.b16 %v2748, %v2746
      %v2937 = vpack.c.b16 %v2749, %v2747
      %v2938 = vpack.c.b16 %v2752, %v2750
      %v2939 = vpack.c.b16 %v2753, %v2751
      %v2940 = vpack.c.b16 %v2756, %v2754
      %v2941 = vpack.c.b16 %v2757, %v2755
      %v2942 = vpack.c.b16 %v2760, %v2758
      %v2943 = vpack.c.b16 %v2761, %v2759
      %v2944 = vpack.c.b16 %v2764, %v2762
      %v2945 = vpack.c.b16 %v2765, %v2763
      %v2946 = vpack.c.b16 %v2768, %v2766
      %v2947 = vpack.c.b16 %v2769, %v2767
      %v2948 = vpack.c.b16 %v2772, %v2770
      %v2949 = vpack.c.b16 %v2773, %v2771
      %v2950 = vpack.c.b16 %v2776, %v2774
      %v2951 = vpack.c.b16 %v2777, %v2775
      %v2952 = vpack.c.b16 %v2780, %v2778
      %v2953 = vpack.c.b16 %v2781, %v2779
      %v2954 = vpack.c.b16 %v2784, %v2782
      %v2955 = vpack.c.b16 %v2785, %v2783
      %v2956 = vpack.c.b16 %v2788, %v2786
      %v2957 = vpack.c.b16 %v2789, %v2787
      %v2958 = vpack.c.b16 %v2792, %v2790
      %v2959 = vpack.c.b16 %v2793, %v2791
      %v2960 = vpack.c.b16 %v2796, %v2794
      %v2961 = vpack.c.b16 %v2797, %v2795
      %v2962 = vpack.c.b16 %v2800, %v2798
      %v2963 = vpack.c.b16 %v2801, %v2799
      %v2964 = vpack.c.b16 %v2804, %v2802
      %v2965 = vpack.c.b16 %v2805, %v2803
      %v2966 = vpack.c.b16 %v2808, %v2806
      %v2967 = vpack.c.b16 %v2809, %v2807
      %v2968 = vpack.c.b16 %v2812, %v2810
      %v2969 = vpack.c.b16 %v2813, %v2811
      %v2970 = vpack.c.b16 %v2816, %v2814
      %v2971 = vpack.c.b16 %v2817, %v2815
      %v2972 = vpack.c.b16 %v2820, %v2818
      %v2973 = vpack.c.b16 %v2821, %v2819
      %v2974 = vpack.c.b16 %v2824, %v2822
      %v2975 = vpack.c.b16 %v2825, %v2823
      %v2976 = vpack.c.b16 %v2828, %v2826
      %v2977 = vpack.c.b16 %v2829, %v2827
      %v2978 = vpack.c.b16 %v2832, %v2830
      %v2979 = vpack.c.b16 %v2833, %v2831
      %v2980 = vpack.c.b16 %v2836, %v2834
      %v2981 = vpack.c.b16 %v2837, %v2835
      %v2982 = vpack.c.b16 %v2840, %v2838
      %v2983 = vpack.c.b16 %v2841, %v2839
      %v2984 = vpack.c.b16 %v2844, %v2842
      %v2985 = vpack.c.b16 %v2845, %v2843
      %v2986 = vpack.c.b16 %v2848, %v2846
      %v2987 = vpack.c.b16 %v2849, %v2847
      %v2988 = vpack.c.b16 %v2852, %v2850
      %v2989 = vpack.c.b16 %v2853, %v2851
      %v2990 = vpack.c.b16 %v2856, %v2854
      %v2991 = vpack.c.b16 %v2857, %v2855
      %v2992 = vpack.c.b16 %v2860, %v2858
      %v2993 = vpack.c.b16 %v2861, %v2859
      %v2994 = vpack.c.b16 %v2864, %v2862
      %v2995 = vpack.c.b16 %v2865, %v2863
      %v2996 = vpack.c.b16 %v2868, %v2866
      %v2997 = vpack.c.b16 %v2869, %v2867
      %v2998 = vpack.c.b16 %v2872, %v2870
      %v2999 = vpack.c.b16 %v2873, %v2871
      %v3000 = vpack.c.b16 %v2876, %v2874
      %v3001 = vpack.c.b16 %v2877, %v2875
      %v3002 = vpack.c.b16 %v2880, %v2878
      %v3003 = vpack.c.b16 %v2881, %v2879
      %v3004 = vpack.c.b16 %v2884, %v2882
      %v3005 = vpack.c.b16 %v2885, %v2883
      %v3006 = vpack.c.b16 %v2888, %v2886
      %v3007 = vpack.c.b16 %v2889, %v2887
      %v3008 = vpack.c.b16 %v2892, %v2890
      %v3009 = vpack.c.b16 %v2893, %v2891
      %v3010 = vpack.c.b16 %v2896, %v2894
      %v3011 = vpack.c.b16 %v2897, %v2895
      %v3012 = vpack.c.b16 %v2900, %v2898
      %v3013 = vpack.c.b16 %v2901, %v2899
      %v3014 = vpack.c.b16 %v2904, %v2902
      %v3015 = vpack.c.b16 %v2905, %v2903
      %v3016 = vpack.c.b16 %v2908, %v2906
      %v3017 = vpack.c.b16 %v2909, %v2907
      %v3018 = vpack.c.b16 %v2912, %v2910
      %v3019 = vpack.c.b16 %v2913, %v2911
      %v3020 = vpack.c.b16 %v2916, %v2914
      %v3021 = vpack.c.b16 %v2917, %v2915
      %v3022 = vpack.c.b16 %v2920, %v2918
      %v3023 = vpack.c.b16 %v2921, %v2919
      %v3024 = vpack.c.b16 %v2924, %v2922
      %v3025 = vpack.c.b16 %v2925, %v2923
      %v3026 = vpack.c.b16 %v2928, %v2926
      %v3027 = vpack.c.b16 %v2929, %v2927
      %v3028 = vpack.c.b16 %v2932, %v2930
      %v3029 = vpack.c.b16 %v2933, %v2931
      %3126 = vmatprep.subr.bf16.mxu0 %v2935
      %3127 = vmatpush1.bf16.msra.mxu0 %v2934
      %3128 = vmatprep.subr.bf16.mxu0 %v2937
      %3129 = vmatpush1.bf16.msra.mxu0 %v2936
      %3130 = vmatprep.subr.bf16.mxu0 %v2939
      %3131 = vmatpush1.bf16.msra.mxu0 %v2938
      %3132 = vmatprep.subr.bf16.mxu0 %v2941
      %3133 = vmatpush1.bf16.msra.mxu0 %v2940
      %3134 = vmatprep.subr.bf16.mxu0 %v2943
      %3135 = vmatpush1.bf16.msra.mxu0 %v2942
      %3136 = vmatprep.subr.bf16.mxu0 %v2945
      %3137 = vmatpush1.bf16.msra.mxu0 %v2944
      %3138 = vmatprep.subr.bf16.mxu0 %v2947
      %3139 = vmatpush1.bf16.msra.mxu0 %v2946
      %3140 = vmatprep.subr.bf16.mxu0 %v2949
      %3141 = vmatpush1.bf16.msra.mxu0 %v2948
      %3142 = vmatprep.subr.bf16.mxu0 %v2951
      %3143 = vmatpush1.bf16.msra.mxu0 %v2950
      %3144 = vmatprep.subr.bf16.mxu0 %v2953
      %3145 = vmatpush1.bf16.msra.mxu0 %v2952
      %3146 = vmatprep.subr.bf16.mxu0 %v2955
      %3147 = vmatpush1.bf16.msra.mxu0 %v2954
      %3148 = vmatprep.subr.bf16.mxu0 %v2957
      %3149 = vmatpush1.bf16.msra.mxu0 %v2956
      %3150 = vmatprep.subr.bf16.mxu0 %v2959
      %3151 = vmatpush1.bf16.msra.mxu0 %v2958
      %3152 = vmatprep.subr.bf16.mxu0 %v2961
      %3153 = vmatpush1.bf16.msra.mxu0 %v2960
      %3154 = vmatprep.subr.bf16.mxu0 %v2963
      %3155 = vmatpush1.bf16.msra.mxu0 %v2962
      %3156 = vmatprep.subr.bf16.mxu0 %v2965
      %3157 = vmatpush1.bf16.msra.mxu0 %v2964
      %3158 = vmatprep.mubr.bf16.mxu0 %v233
      %3159 = vmatmul.mubr.bf16.gmra.mrb[0].mxu0 %v232
      %v3160 = vpop.f32.mrb[0].mxu0
      %v3161 = vadd.f32 %v2488, %v3160
      %v3162 = vpop.f32.mrb[0].mxu0
      %v3163 = vadd.f32 %v2490, %v3162
      %v3164 = vpop.f32.mrb[0].mxu0
      %v3165 = vadd.f32 %v2492, %v3164
      %v3166 = vpop.f32.mrb[0].mxu0
      %v3167 = vadd.f32 %v2494, %v3166
      %3168 = vmatprep.mubr.bf16.mxu0 %v235
      %3169 = vmatmul.mubr.bf16.gmra.mrb[0].mxu0 %v234
      %v3170 = vpop.f32.mrb[0].mxu0
      %v3171 = vadd.f32 %v2498, %v3170
      %v3172 = vpop.f32.mrb[0].mxu0
      %v3173 = vadd.f32 %v2500, %v3172
      %v3174 = vpop.f32.mrb[0].mxu0
      %v3175 = vadd.f32 %v2502, %v3174
      %v3176 = vpop.f32.mrb[0].mxu0
      %v3177 = vadd.f32 %v2504, %v3176
      %3178 = vmatprep.mubr.bf16.mxu0 %v237
      %3179 = vmatmul.mubr.bf16.gmra.mrb[0].mxu0 %v236
      %v3180 = vpop.f32.mrb[0].mxu0
      %v3181 = vadd.f32 %v2508, %v3180
      %v3182 = vpop.f32.mrb[0].mxu0
      %v3183 = vadd.f32 %v2510, %v3182
      %v3184 = vpop.f32.mrb[0].mxu0
      %v3185 = vadd.f32 %v2512, %v3184
      %v3186 = vpop.f32.mrb[0].mxu0
      %v3187 = vadd.f32 %v2514, %v3186
      %3188 = vmatprep.mubr.bf16.mxu0 %v239
      %3189 = vmatmul.mubr.bf16.gmra.mrb[0].mxu0 %v238
      %v3190 = vpop.f32.mrb[0].mxu0
      %v3191 = vadd.f32 %v2518, %v3190
      %v3192 = vpop.f32.mrb[0].mxu0
      %v3193 = vadd.f32 %v2520, %v3192
      %v3194 = vpop.f32.mrb[0].mxu0
      %v3195 = vadd.f32 %v2522, %v3194
      %v3196 = vpop.f32.mrb[0].mxu0
      %v3197 = vadd.f32 %v2524, %v3196
      %3198 = vmatprep.mubr.bf16.mxu0 %v241
      %3199 = vmatmul.mubr.bf16.gmra.mrb[0].mxu0 %v240
      %v3200 = vpop.f32.mrb[0].mxu0
      %v3201 = vadd.f32 %v2528, %v3200
      %v3202 = vpop.f32.mrb[0].mxu0
      %v3203 = vadd.f32 %v2530, %v3202
      %v3204 = vpop.f32.mrb[0].mxu0
      %v3205 = vadd.f32 %v2532, %v3204
      %v3206 = vpop.f32.mrb[0].mxu0
      %v3207 = vadd.f32 %v2534, %v3206
      %3208 = vmatprep.mubr.bf16.mxu0 %v243
      %3209 = vmatmul.mubr.bf16.gmra.mrb[0].mxu0 %v242
      %v3210 = vpop.f32.mrb[0].mxu0
      %v3211 = vadd.f32 %v2538, %v3210
      %v3212 = vpop.f32.mrb[0].mxu0
      %v3213 = vadd.f32 %v2540, %v3212
      %v3214 = vpop.f32.mrb[0].mxu0
      %v3215 = vadd.f32 %v2542, %v3214
      %v3216 = vpop.f32.mrb[0].mxu0
      %v3217 = vadd.f32 %v2544, %v3216
      %3218 = vmatprep.mubr.bf16.mxu0 %v245
      %3219 = vmatmul.mubr.bf16.gmra.mrb[0].mxu0 %v244
      %v3220 = vpop.f32.mrb[0].mxu0
      %v3221 = vadd.f32 %v2548, %v3220
      %v3222 = vpop.f32.mrb[0].mxu0
      %v3223 = vadd.f32 %v2550, %v3222
      %v3224 = vpop.f32.mrb[0].mxu0
      %v3225 = vadd.f32 %v2552, %v3224
      %v3226 = vpop.f32.mrb[0].mxu0
      %v3227 = vadd.f32 %v2554, %v3226
      %3228 = vmatprep.mubr.bf16.mxu0 %v247
      %3229 = vmatmul.mubr.bf16.gmra.mrb[0].mxu0 %v246
      %v3230 = vpop.f32.mrb[0].mxu0
      %v3231 = vadd.f32 %v2558, %v3230
      %v3232 = vpop.f32.mrb[0].mxu0
      %v3233 = vadd.f32 %v2560, %v3232
      %v3234 = vpop.f32.mrb[0].mxu0
      %v3235 = vadd.f32 %v2562, %v3234
      %v3236 = vpop.f32.mrb[0].mxu0
      %v3237 = vadd.f32 %v2564, %v3236
      %3238 = vmatprep.mubr.bf16.mxu0 %v253
      %3239 = vmatmul.mubr.bf16.gmra.mrb[0].mxu0 %v252
      %v3240 = vpop.f32.mrb[0].mxu0
      %v3241 = vadd.f32 %v2568, %v3240
      %v3242 = vpop.f32.mrb[0].mxu0
      %v3243 = vadd.f32 %v2570, %v3242
      %v3244 = vpop.f32.mrb[0].mxu0
      %v3245 = vadd.f32 %v2572, %v3244
      %v3246 = vpop.f32.mrb[0].mxu0
      %v3247 = vadd.f32 %v2574, %v3246
      %3248 = vmatprep.mubr.bf16.mxu0 %v255
      %3249 = vmatmul.mubr.bf16.gmra.mrb[0].mxu0 %v254
      %v3250 = vpop.f32.mrb[0].mxu0
      %v3251 = vadd.f32 %v2578, %v3250
      %v3252 = vpop.f32.mrb[0].mxu0
      %v3253 = vadd.f32 %v2580, %v3252
      %v3254 = vpop.f32.mrb[0].mxu0
      %v3255 = vadd.f32 %v2582, %v3254
      %v3256 = vpop.f32.mrb[0].mxu0
      %v3257 = vadd.f32 %v2584, %v3256
      %3258 = vmatprep.mubr.bf16.mxu0 %v257
      %3259 = vmatmul.mubr.bf16.gmra.mrb[0].mxu0 %v256
      %v3260 = vpop.f32.mrb[0].mxu0
      %v3261 = vadd.f32 %v2588, %v3260
      %v3262 = vpop.f32.mrb[0].mxu0
      %v3263 = vadd.f32 %v2590, %v3262
      %v3264 = vpop.f32.mrb[0].mxu0
      %v3265 = vadd.f32 %v2592, %v3264
      %v3266 = vpop.f32.mrb[0].mxu0
      %v3267 = vadd.f32 %v2594, %v3266
      %3268 = vmatprep.mubr.bf16.mxu0 %v259
      %3269 = vmatmul.mubr.bf16.gmra.mrb[0].mxu0 %v258
      %v3270 = vpop.f32.mrb[0].mxu0
      %v3271 = vadd.f32 %v2598, %v3270
      %v3272 = vpop.f32.mrb[0].mxu0
      %v3273 = vadd.f32 %v2600, %v3272
      %v3274 = vpop.f32.mrb[0].mxu0
      %v3275 = vadd.f32 %v2602, %v3274
      %v3276 = vpop.f32.mrb[0].mxu0
      %v3277 = vadd.f32 %v2604, %v3276
      %3278 = vmatprep.mubr.bf16.mxu0 %v261
      %3279 = vmatmul.mubr.bf16.gmra.mrb[0].mxu0 %v260
      %v3280 = vpop.f32.mrb[0].mxu0
      %v3281 = vadd.f32 %v2608, %v3280
      %v3282 = vpop.f32.mrb[0].mxu0
      %v3283 = vadd.f32 %v2610, %v3282
      %v3284 = vpop.f32.mrb[0].mxu0
      %v3285 = vadd.f32 %v2612, %v3284
      %v3286 = vpop.f32.mrb[0].mxu0
      %v3287 = vadd.f32 %v2614, %v3286
      %3288 = vmatprep.mubr.bf16.mxu0 %v263
      %3289 = vmatmul.mubr.bf16.gmra.mrb[0].mxu0 %v262
      %v3290 = vpop.f32.mrb[0].mxu0
      %v3291 = vadd.f32 %v2618, %v3290
      %v3292 = vpop.f32.mrb[0].mxu0
      %v3293 = vadd.f32 %v2620, %v3292
      %v3294 = vpop.f32.mrb[0].mxu0
      %v3295 = vadd.f32 %v2622, %v3294
      %v3296 = vpop.f32.mrb[0].mxu0
      %v3297 = vadd.f32 %v2624, %v3296
      %3298 = vmatprep.mubr.bf16.mxu0 %v265
      %3299 = vmatmul.mubr.bf16.gmra.mrb[0].mxu0 %v264
      %v3300 = vpop.f32.mrb[0].mxu0
      %v3301 = vadd.f32 %v2628, %v3300
      %v3302 = vpop.f32.mrb[0].mxu0
      %v3303 = vadd.f32 %v2630, %v3302
      %v3304 = vpop.f32.mrb[0].mxu0
      %v3305 = vadd.f32 %v2632, %v3304
      %v3306 = vpop.f32.mrb[0].mxu0
      %v3307 = vadd.f32 %v2634, %v3306
      %3308 = vmatprep.mubr.bf16.mxu0 %v267
      %3309 = vmatmul.mubr.bf16.gmra.mrb[0].mxu0 %v266
      %v3310 = vpop.f32.mrb[0].mxu0
      %v3311 = vadd.f32 %v2638, %v3310
      %v3312 = vpop.f32.mrb[0].mxu0
      %v3313 = vadd.f32 %v2640, %v3312
      %v3314 = vpop.f32.mrb[0].mxu0
      %v3315 = vadd.f32 %v2642, %v3314
      %v3316 = vpop.f32.mrb[0].mxu0
      %v3317 = vadd.f32 %v2644, %v3316
      %3318 = vdwg.mxu0
      %3319 = vmatprep.subr.bf16.mxu0 %v2967
      %3320 = vmatpush1.bf16.msra.mxu0 %v2966
      %3321 = vmatprep.subr.bf16.mxu0 %v2969
      %3322 = vmatpush1.bf16.msra.mxu0 %v2968
      %3323 = vmatprep.subr.bf16.mxu0 %v2971
      %3324 = vmatpush1.bf16.msra.mxu0 %v2970
      %3325 = vmatprep.subr.bf16.mxu0 %v2973
      %3326 = vmatpush1.bf16.msra.mxu0 %v2972
      %3327 = vmatprep.subr.bf16.mxu0 %v2975
      %3328 = vmatpush1.bf16.msra.mxu0 %v2974
      %3329 = vmatprep.subr.bf16.mxu0 %v2977
      %3330 = vmatpush1.bf16.msra.mxu0 %v2976
      %3331 = vmatprep.subr.bf16.mxu0 %v2979
      %3332 = vmatpush1.bf16.msra.mxu0 %v2978
      %3333 = vmatprep.subr.bf16.mxu0 %v2981
      %3334 = vmatpush1.bf16.msra.mxu0 %v2980
      %3335 = vmatprep.subr.bf16.mxu0 %v2983
      %3336 = vmatpush1.bf16.msra.mxu0 %v2982
      %3337 = vmatprep.subr.bf16.mxu0 %v2985
      %3338 = vmatpush1.bf16.msra.mxu0 %v2984
      %3339 = vmatprep.subr.bf16.mxu0 %v2987
      %3340 = vmatpush1.bf16.msra.mxu0 %v2986
      %3341 = vmatprep.subr.bf16.mxu0 %v2989
      %3342 = vmatpush1.bf16.msra.mxu0 %v2988
      %3343 = vmatprep.subr.bf16.mxu0 %v2991
      %3344 = vmatpush1.bf16.msra.mxu0 %v2990
      %3345 = vmatprep.subr.bf16.mxu0 %v2993
      %3346 = vmatpush1.bf16.msra.mxu0 %v2992
      %3347 = vmatprep.subr.bf16.mxu0 %v2995
      %3348 = vmatpush1.bf16.msra.mxu0 %v2994
      %3349 = vmatprep.subr.bf16.mxu0 %v2997
      %3350 = vmatpush1.bf16.msra.mxu0 %v2996
      %3351 = vmatprep.mubr.bf16.mxu0 %v656
      %3352 = vmatmul.mubr.bf16.gmra.mrb[0].mxu0 %v644
      %v3353 = vpop.f32.mrb[0].mxu0
      %v3354 = vadd.f32 %v3161, %v3353
      %v3355 = vpop.f32.mrb[0].mxu0
      %v3356 = vadd.f32 %v3163, %v3355
      %v3357 = vpop.f32.mrb[0].mxu0
      %v3358 = vadd.f32 %v3165, %v3357
      %v3359 = vpop.f32.mrb[0].mxu0
      %v3360 = vadd.f32 %v3167, %v3359
      %3361 = vmatprep.mubr.bf16.mxu0 %v680
      %3362 = vmatmul.mubr.bf16.gmra.mrb[0].mxu0 %v668
      %v3363 = vpop.f32.mrb[0].mxu0
      %v3364 = vadd.f32 %v3171, %v3363
      %v3365 = vpop.f32.mrb[0].mxu0
      %v3366 = vadd.f32 %v3173, %v3365
      %v3367 = vpop.f32.mrb[0].mxu0
      %v3368 = vadd.f32 %v3175, %v3367
      %v3369 = vpop.f32.mrb[0].mxu0
      %v3370 = vadd.f32 %v3177, %v3369
      %3371 = vmatprep.mubr.bf16.mxu0 %v704
      %3372 = vmatmul.mubr.bf16.gmra.mrb[0].mxu0 %v692
      %v3373 = vpop.f32.mrb[0].mxu0
      %v3374 = vadd.f32 %v3181, %v3373
      %v3375 = vpop.f32.mrb[0].mxu0
      %v3376 = vadd.f32 %v3183, %v3375
      %v3377 = vpop.f32.mrb[0].mxu0
      %v3378 = vadd.f32 %v3185, %v3377
      %v3379 = vpop.f32.mrb[0].mxu0
      %v3380 = vadd.f32 %v3187, %v3379
      %3381 = vmatprep.mubr.bf16.mxu0 %v728
      %3382 = vmatmul.mubr.bf16.gmra.mrb[0].mxu0 %v716
      %v3383 = vpop.f32.mrb[0].mxu0
      %v3384 = vadd.f32 %v3191, %v3383
      %v3385 = vpop.f32.mrb[0].mxu0
      %v3386 = vadd.f32 %v3193, %v3385
      %v3387 = vpop.f32.mrb[0].mxu0
      %v3388 = vadd.f32 %v3195, %v3387
      %v3389 = vpop.f32.mrb[0].mxu0
      %v3390 = vadd.f32 %v3197, %v3389
      %3391 = vmatprep.mubr.bf16.mxu0 %v752
      %3392 = vmatmul.mubr.bf16.gmra.mrb[0].mxu0 %v740
      %v3393 = vpop.f32.mrb[0].mxu0
      %v3394 = vadd.f32 %v3201, %v3393
      %v3395 = vpop.f32.mrb[0].mxu0
      %v3396 = vadd.f32 %v3203, %v3395
      %v3397 = vpop.f32.mrb[0].mxu0
      %v3398 = vadd.f32 %v3205, %v3397
      %v3399 = vpop.f32.mrb[0].mxu0
      %v3400 = vadd.f32 %v3207, %v3399
      %3401 = vmatprep.mubr.bf16.mxu0 %v776
      %3402 = vmatmul.mubr.bf16.gmra.mrb[0].mxu0 %v764
      %v3403 = vpop.f32.mrb[0].mxu0
      %v3404 = vadd.f32 %v3211, %v3403
      %v3405 = vpop.f32.mrb[0].mxu0
      %v3406 = vadd.f32 %v3213, %v3405
      %v3407 = vpop.f32.mrb[0].mxu0
      %v3408 = vadd.f32 %v3215, %v3407
      %v3409 = vpop.f32.mrb[0].mxu0
      %v3410 = vadd.f32 %v3217, %v3409
      %3411 = vmatprep.mubr.bf16.mxu0 %v800
      %3412 = vmatmul.mubr.bf16.gmra.mrb[0].mxu0 %v788
      %v3413 = vpop.f32.mrb[0].mxu0
      %v3414 = vadd.f32 %v3221, %v3413
      %v3415 = vpop.f32.mrb[0].mxu0
      %v3416 = vadd.f32 %v3223, %v3415
      %v3417 = vpop.f32.mrb[0].mxu0
      %v3418 = vadd.f32 %v3225, %v3417
      %v3419 = vpop.f32.mrb[0].mxu0
      %v3420 = vadd.f32 %v3227, %v3419
      %3421 = vmatprep.mubr.bf16.mxu0 %v824
      %3422 = vmatmul.mubr.bf16.gmra.mrb[0].mxu0 %v812
      %v3423 = vpop.f32.mrb[0].mxu0
      %v3424 = vadd.f32 %v3231, %v3423
      %v3425 = vpop.f32.mrb[0].mxu0
      %v3426 = vadd.f32 %v3233, %v3425
      %v3427 = vpop.f32.mrb[0].mxu0
      %v3428 = vadd.f32 %v3235, %v3427
      %v3429 = vpop.f32.mrb[0].mxu0
      %v3430 = vadd.f32 %v3237, %v3429
      %3431 = vmatprep.mubr.bf16.mxu0 %v896
      %3432 = vmatmul.mubr.bf16.gmra.mrb[0].mxu0 %v884
      %v3433 = vpop.f32.mrb[0].mxu0
      %v3434 = vadd.f32 %v3241, %v3433
      %v3435 = vpop.f32.mrb[0].mxu0
      %v3436 = vadd.f32 %v3243, %v3435
      %v3437 = vpop.f32.mrb[0].mxu0
      %v3438 = vadd.f32 %v3245, %v3437
      %v3439 = vpop.f32.mrb[0].mxu0
      %v3440 = vadd.f32 %v3247, %v3439
      %3441 = vmatprep.mubr.bf16.mxu0 %v920
      %3442 = vmatmul.mubr.bf16.gmra.mrb[0].mxu0 %v908
      %v3443 = vpop.f32.mrb[0].mxu0
      %v3444 = vadd.f32 %v3251, %v3443
      %v3445 = vpop.f32.mrb[0].mxu0
      %v3446 = vadd.f32 %v3253, %v3445
      %v3447 = vpop.f32.mrb[0].mxu0
      %v3448 = vadd.f32 %v3255, %v3447
      %v3449 = vpop.f32.mrb[0].mxu0
      %v3450 = vadd.f32 %v3257, %v3449
      %3451 = vmatprep.mubr.bf16.mxu0 %v944
      %3452 = vmatmul.mubr.bf16.gmra.mrb[0].mxu0 %v932
      %v3453 = vpop.f32.mrb[0].mxu0
      %v3454 = vadd.f32 %v3261, %v3453
      %v3455 = vpop.f32.mrb[0].mxu0
      %v3456 = vadd.f32 %v3263, %v3455
      %v3457 = vpop.f32.mrb[0].mxu0
      %v3458 = vadd.f32 %v3265, %v3457
      %v3459 = vpop.f32.mrb[0].mxu0
      %v3460 = vadd.f32 %v3267, %v3459
      %3461 = vmatprep.mubr.bf16.mxu0 %v968
      %3462 = vmatmul.mubr.bf16.gmra.mrb[0].mxu0 %v956
      %v3463 = vpop.f32.mrb[0].mxu0
      %v3464 = vadd.f32 %v3271, %v3463
      %v3465 = vpop.f32.mrb[0].mxu0
      %v3466 = vadd.f32 %v3273, %v3465
      %v3467 = vpop.f32.mrb[0].mxu0
      %v3468 = vadd.f32 %v3275, %v3467
      %v3469 = vpop.f32.mrb[0].mxu0
      %v3470 = vadd.f32 %v3277, %v3469
      %3471 = vmatprep.mubr.bf16.mxu0 %v992
      %3472 = vmatmul.mubr.bf16.gmra.mrb[0].mxu0 %v980
      %v3473 = vpop.f32.mrb[0].mxu0
      %v3474 = vadd.f32 %v3281, %v3473
      %v3475 = vpop.f32.mrb[0].mxu0
      %v3476 = vadd.f32 %v3283, %v3475
      %v3477 = vpop.f32.mrb[0].mxu0
      %v3478 = vadd.f32 %v3285, %v3477
      %v3479 = vpop.f32.mrb[0].mxu0
      %v3480 = vadd.f32 %v3287, %v3479
      %3481 = vmatprep.mubr.bf16.mxu0 %v1016
      %3482 = vmatmul.mubr.bf16.gmra.mrb[0].mxu0 %v1004
      %v3483 = vpop.f32.mrb[0].mxu0
      %v3484 = vadd.f32 %v3291, %v3483
      %v3485 = vpop.f32.mrb[0].mxu0
      %v3486 = vadd.f32 %v3293, %v3485
      %v3487 = vpop.f32.mrb[0].mxu0
      %v3488 = vadd.f32 %v3295, %v3487
      %v3489 = vpop.f32.mrb[0].mxu0
      %v3490 = vadd.f32 %v3297, %v3489
      %3491 = vmatprep.mubr.bf16.mxu0 %v1040
      %3492 = vmatmul.mubr.bf16.gmra.mrb[0].mxu0 %v1028
      %v3493 = vpop.f32.mrb[0].mxu0
      %v3494 = vadd.f32 %v3301, %v3493
      %v3495 = vpop.f32.mrb[0].mxu0
      %v3496 = vadd.f32 %v3303, %v3495
      %v3497 = vpop.f32.mrb[0].mxu0
      %v3498 = vadd.f32 %v3305, %v3497
      %v3499 = vpop.f32.mrb[0].mxu0
      %v3500 = vadd.f32 %v3307, %v3499
      %3501 = vmatprep.mubr.bf16.mxu0 %v1064
      %3502 = vmatmul.mubr.bf16.gmra.mrb[0].mxu0 %v1052
      %v3503 = vpop.f32.mrb[0].mxu0
      %v3504 = vadd.f32 %v3311, %v3503
      %v3505 = vpop.f32.mrb[0].mxu0
      %v3506 = vadd.f32 %v3313, %v3505
      %v3507 = vpop.f32.mrb[0].mxu0
      %v3508 = vadd.f32 %v3315, %v3507
      %v3509 = vpop.f32.mrb[0].mxu0
      %v3510 = vadd.f32 %v3317, %v3509
      %3511 = vdwg.mxu0
      %3512 = vmatprep.subr.bf16.mxu0 %v2999
      %3513 = vmatpush1.bf16.msra.mxu0 %v2998
      %3514 = vmatprep.subr.bf16.mxu0 %v3001
      %3515 = vmatpush1.bf16.msra.mxu0 %v3000
      %3516 = vmatprep.subr.bf16.mxu0 %v3003
      %3517 = vmatpush1.bf16.msra.mxu0 %v3002
      %3518 = vmatprep.subr.bf16.mxu0 %v3005
      %3519 = vmatpush1.bf16.msra.mxu0 %v3004
      %3520 = vmatprep.subr.bf16.mxu0 %v3007
      %3521 = vmatpush1.bf16.msra.mxu0 %v3006
      %3522 = vmatprep.subr.bf16.mxu0 %v3009
      %3523 = vmatpush1.bf16.msra.mxu0 %v3008
      %3524 = vmatprep.subr.bf16.mxu0 %v3011
      %3525 = vmatpush1.bf16.msra.mxu0 %v3010
      %3526 = vmatprep.subr.bf16.mxu0 %v3013
      %3527 = vmatpush1.bf16.msra.mxu0 %v3012
      %3528 = vmatprep.subr.bf16.mxu0 %v3015
      %3529 = vmatpush1.bf16.msra.mxu0 %v3014
      %3530 = vmatprep.subr.bf16.mxu0 %v3017
      %3531 = vmatpush1.bf16.msra.mxu0 %v3016
      %3532 = vmatprep.subr.bf16.mxu0 %v3019
      %3533 = vmatpush1.bf16.msra.mxu0 %v3018
      %3534 = vmatprep.subr.bf16.mxu0 %v3021
      %3535 = vmatpush1.bf16.msra.mxu0 %v3020
      %3536 = vmatprep.subr.bf16.mxu0 %v3023
      %3537 = vmatpush1.bf16.msra.mxu0 %v3022
      %3538 = vmatprep.subr.bf16.mxu0 %v3025
      %3539 = vmatpush1.bf16.msra.mxu0 %v3024
      %3540 = vmatprep.subr.bf16.mxu0 %v3027
      %3541 = vmatpush1.bf16.msra.mxu0 %v3026
      %3542 = vmatprep.subr.bf16.mxu0 %v3029
      %3543 = vmatpush1.bf16.msra.mxu0 %v3028
      %3544 = vmatprep.mubr.bf16.mxu0 %v1239
      %3545 = vmatmul.mubr.bf16.gmra.mrb[0].mxu0 %v1236
      %v3546 = vpop.f32.mrb[0].mxu0
      %v3547 = vadd.f32 %v3354, %v3546
      %v3548 = vpop.f32.mrb[0].mxu0
      %v3549 = vadd.f32 %v3356, %v3548
      %v3550 = vpop.f32.mrb[0].mxu0
      %v3551 = vadd.f32 %v3358, %v3550
      %v3552 = vpop.f32.mrb[0].mxu0
      %v3553 = vadd.f32 %v3360, %v3552
      %3554 = vmatprep.mubr.bf16.mxu0 %v1245
      %3555 = vmatmul.mubr.bf16.gmra.mrb[0].mxu0 %v1242
      %v3556 = vpop.f32.mrb[0].mxu0
      %v3557 = vadd.f32 %v3364, %v3556
      %v3558 = vpop.f32.mrb[0].mxu0
      %v3559 = vadd.f32 %v3366, %v3558
      %v3560 = vpop.f32.mrb[0].mxu0
      %v3561 = vadd.f32 %v3368, %v3560
      %v3562 = vpop.f32.mrb[0].mxu0
      %v3563 = vadd.f32 %v3370, %v3562
      %3564 = vmatprep.mubr.bf16.mxu0 %v1251
      %3565 = vmatmul.mubr.bf16.gmra.mrb[0].mxu0 %v1248
      %v3566 = vpop.f32.mrb[0].mxu0
      %v3567 = vadd.f32 %v3374, %v3566
      %v3568 = vpop.f32.mrb[0].mxu0
      %v3569 = vadd.f32 %v3376, %v3568
      %v3570 = vpop.f32.mrb[0].mxu0
      %v3571 = vadd.f32 %v3378, %v3570
      %v3572 = vpop.f32.mrb[0].mxu0
      %v3573 = vadd.f32 %v3380, %v3572
      %3574 = vmatprep.mubr.bf16.mxu0 %v1257
      %3575 = vmatmul.mubr.bf16.gmra.mrb[0].mxu0 %v1254
      %v3576 = vpop.f32.mrb[0].mxu0
      %v3577 = vadd.f32 %v3384, %v3576
      %v3578 = vpop.f32.mrb[0].mxu0
      %v3579 = vadd.f32 %v3386, %v3578
      %v3580 = vpop.f32.mrb[0].mxu0
      %v3581 = vadd.f32 %v3388, %v3580
      %v3582 = vpop.f32.mrb[0].mxu0
      %v3583 = vadd.f32 %v3390, %v3582
      %3584 = vmatprep.mubr.bf16.mxu0 %v1263
      %3585 = vmatmul.mubr.bf16.gmra.mrb[0].mxu0 %v1260
      %v3586 = vpop.f32.mrb[0].mxu0
      %v3587 = vadd.f32 %v3394, %v3586
      %v3588 = vpop.f32.mrb[0].mxu0
      %v3589 = vadd.f32 %v3396, %v3588
      %v3590 = vpop.f32.mrb[0].mxu0
      %v3591 = vadd.f32 %v3398, %v3590
      %v3592 = vpop.f32.mrb[0].mxu0
      %v3593 = vadd.f32 %v3400, %v3592
      %3594 = vmatprep.mubr.bf16.mxu0 %v1269
      %3595 = vmatmul.mubr.bf16.gmra.mrb[0].mxu0 %v1266
      %v3596 = vpop.f32.mrb[0].mxu0
      %v3597 = vadd.f32 %v3404, %v3596
      %v3598 = vpop.f32.mrb[0].mxu0
      %v3599 = vadd.f32 %v3406, %v3598
      %v3600 = vpop.f32.mrb[0].mxu0
      %v3601 = vadd.f32 %v3408, %v3600
      %v3602 = vpop.f32.mrb[0].mxu0
      %v3603 = vadd.f32 %v3410, %v3602
      %3604 = vmatprep.mubr.bf16.mxu0 %v1275
      %3605 = vmatmul.mubr.bf16.gmra.mrb[0].mxu0 %v1272
      %v3606 = vpop.f32.mrb[0].mxu0
      %v3607 = vadd.f32 %v3414, %v3606
      %v3608 = vpop.f32.mrb[0].mxu0
      %v3609 = vadd.f32 %v3416, %v3608
      %v3610 = vpop.f32.mrb[0].mxu0
      %v3611 = vadd.f32 %v3418, %v3610
      %v3612 = vpop.f32.mrb[0].mxu0
      %v3613 = vadd.f32 %v3420, %v3612
      %3614 = vmatprep.mubr.bf16.mxu0 %v1281
      %3615 = vmatmul.mubr.bf16.gmra.mrb[0].mxu0 %v1278
      %v3616 = vpop.f32.mrb[0].mxu0
      %v3617 = vadd.f32 %v3424, %v3616
      %v3618 = vpop.f32.mrb[0].mxu0
      %v3619 = vadd.f32 %v3426, %v3618
      %v3620 = vpop.f32.mrb[0].mxu0
      %v3621 = vadd.f32 %v3428, %v3620
      %v3622 = vpop.f32.mrb[0].mxu0
      %v3623 = vadd.f32 %v3430, %v3622
      %3624 = vmatprep.mubr.bf16.mxu0 %v1299
      %3625 = vmatmul.mubr.bf16.gmra.mrb[0].mxu0 %v1296
      %v3626 = vpop.f32.mrb[0].mxu0
      %v3627 = vadd.f32 %v3434, %v3626
      %v3628 = vpop.f32.mrb[0].mxu0
      %v3629 = vadd.f32 %v3436, %v3628
      %v3630 = vpop.f32.mrb[0].mxu0
      %v3631 = vadd.f32 %v3438, %v3630
      %v3632 = vpop.f32.mrb[0].mxu0
      %v3633 = vadd.f32 %v3440, %v3632
      %3634 = vmatprep.mubr.bf16.mxu0 %v1305
      %3635 = vmatmul.mubr.bf16.gmra.mrb[0].mxu0 %v1302
      %v3636 = vpop.f32.mrb[0].mxu0
      %v3637 = vadd.f32 %v3444, %v3636
      %v3638 = vpop.f32.mrb[0].mxu0
      %v3639 = vadd.f32 %v3446, %v3638
      %v3640 = vpop.f32.mrb[0].mxu0
      %v3641 = vadd.f32 %v3448, %v3640
      %v3642 = vpop.f32.mrb[0].mxu0
      %v3643 = vadd.f32 %v3450, %v3642
      %3644 = vmatprep.mubr.bf16.mxu0 %v1311
      %3645 = vmatmul.mubr.bf16.gmra.mrb[0].mxu0 %v1308
      %v3646 = vpop.f32.mrb[0].mxu0
      %v3647 = vadd.f32 %v3454, %v3646
      %v3648 = vpop.f32.mrb[0].mxu0
      %v3649 = vadd.f32 %v3456, %v3648
      %v3650 = vpop.f32.mrb[0].mxu0
      %v3651 = vadd.f32 %v3458, %v3650
      %v3652 = vpop.f32.mrb[0].mxu0
      %v3653 = vadd.f32 %v3460, %v3652
      %3654 = vmatprep.mubr.bf16.mxu0 %v1317
      %3655 = vmatmul.mubr.bf16.gmra.mrb[0].mxu0 %v1314
      %v3656 = vpop.f32.mrb[0].mxu0
      %v3657 = vadd.f32 %v3464, %v3656
      %v3658 = vpop.f32.mrb[0].mxu0
      %v3659 = vadd.f32 %v3466, %v3658
      %v3660 = vpop.f32.mrb[0].mxu0
      %v3661 = vadd.f32 %v3468, %v3660
      %v3662 = vpop.f32.mrb[0].mxu0
      %v3663 = vadd.f32 %v3470, %v3662
      %3664 = vmatprep.mubr.bf16.mxu0 %v1323
      %3665 = vmatmul.mubr.bf16.gmra.mrb[0].mxu0 %v1320
      %v3666 = vpop.f32.mrb[0].mxu0
      %v3667 = vadd.f32 %v3474, %v3666
      %v3668 = vpop.f32.mrb[0].mxu0
      %v3669 = vadd.f32 %v3476, %v3668
      %v3670 = vpop.f32.mrb[0].mxu0
      %v3671 = vadd.f32 %v3478, %v3670
      %v3672 = vpop.f32.mrb[0].mxu0
      %v3673 = vadd.f32 %v3480, %v3672
      %3674 = vmatprep.mubr.bf16.mxu0 %v1329
      %3675 = vmatmul.mubr.bf16.gmra.mrb[0].mxu0 %v1326
      %v3676 = vpop.f32.mrb[0].mxu0
      %v3677 = vadd.f32 %v3484, %v3676
      %v3678 = vpop.f32.mrb[0].mxu0
      %v3679 = vadd.f32 %v3486, %v3678
      %v3680 = vpop.f32.mrb[0].mxu0
      %v3681 = vadd.f32 %v3488, %v3680
      %v3682 = vpop.f32.mrb[0].mxu0
      %v3683 = vadd.f32 %v3490, %v3682
      %3684 = vmatprep.mubr.bf16.mxu0 %v1335
      %3685 = vmatmul.mubr.bf16.gmra.mrb[0].mxu0 %v1332
      %v3686 = vpop.f32.mrb[0].mxu0
      %v3687 = vadd.f32 %v3494, %v3686
      %v3688 = vpop.f32.mrb[0].mxu0
      %v3689 = vadd.f32 %v3496, %v3688
      %v3690 = vpop.f32.mrb[0].mxu0
      %v3691 = vadd.f32 %v3498, %v3690
      %v3692 = vpop.f32.mrb[0].mxu0
      %v3693 = vadd.f32 %v3500, %v3692
      %3694 = vmatprep.mubr.bf16.mxu0 %v1341
      %3695 = vmatmul.mubr.bf16.gmra.mrb[0].mxu0 %v1338
      %v3696 = vpop.f32.mrb[0].mxu0
      %v3697 = vadd.f32 %v3504, %v3696
      %v3698 = vpop.f32.mrb[0].mxu0
      %v3699 = vadd.f32 %v3506, %v3698
      %v3700 = vpop.f32.mrb[0].mxu0
      %v3701 = vadd.f32 %v3508, %v3700
      %v3702 = vpop.f32.mrb[0].mxu0
      %v3703 = vadd.f32 %v3510, %v3702
      %3704 = vdwg.mxu0
      %s3705 = scalar_lea.vmem %s1, 1536
      %v3706 = vld [vmem:[%s3705] sm:$0xff]
      %v3707 = vld [vmem:[%s3705 + $0x8] sm:$0xff]
      %v3708 = vld [vmem:[%s3705 + $0x10] sm:$0xff]
      %v3709 = vld [vmem:[%s3705 + $0x18] sm:$0xff]
      %v3710 = vld [vmem:[%s3705 + $0x20] sm:$0xff]
      %v3711 = vld [vmem:[%s3705 + $0x28] sm:$0xff]
      %v3712 = vld [vmem:[%s3705 + $0x30] sm:$0xff]
      %v3713 = vld [vmem:[%s3705 + $0x38] sm:$0xff]
      %v3714 = vld [vmem:[%s3705 + $0x40] sm:$0xff]
      %v3715 = vld [vmem:[%s3705 + $0x48] sm:$0xff]
      %v3716 = vld [vmem:[%s3705 + $0x50] sm:$0xff]
      %v3717 = vld [vmem:[%s3705 + $0x58] sm:$0xff]
      %v3718 = vld [vmem:[%s3705 + $0x60] sm:$0xff]
      %v3719 = vld [vmem:[%s3705 + $0x68] sm:$0xff]
      %v3720 = vld [vmem:[%s3705 + $0x70] sm:$0xff]
      %v3721 = vld [vmem:[%s3705 + $0x78] sm:$0xff]
      %v3722 = vld [vmem:[%s3705 + $0x80] sm:$0xff]
      %v3723 = vld [vmem:[%s3705 + $0x88] sm:$0xff]
      %v3724 = vld [vmem:[%s3705 + $0x90] sm:$0xff]
      %v3725 = vld [vmem:[%s3705 + $0x98] sm:$0xff]
      %v3726 = vld [vmem:[%s3705 + $0xa0] sm:$0xff]
      %v3727 = vld [vmem:[%s3705 + $0xa8] sm:$0xff]
      %v3728 = vld [vmem:[%s3705 + $0xb0] sm:$0xff]
      %v3729 = vld [vmem:[%s3705 + $0xb8] sm:$0xff]
      %v3730 = vld [vmem:[%s3705 + $0xc0] sm:$0xff]
      %v3731 = vld [vmem:[%s3705 + $0xc8] sm:$0xff]
      %v3732 = vld [vmem:[%s3705 + $0xd0] sm:$0xff]
      %v3733 = vld [vmem:[%s3705 + $0xd8] sm:$0xff]
      %v3734 = vld [vmem:[%s3705 + $0xe0] sm:$0xff]
      %v3735 = vld [vmem:[%s3705 + $0xe8] sm:$0xff]
      %v3736 = vld [vmem:[%s3705 + $0xf0] sm:$0xff]
      %v3737 = vld [vmem:[%s3705 + $0xf8] sm:$0xff]
      %v3738 = vld [vmem:[%s3705 + $0x100] sm:$0xff]
      %v3739 = vld [vmem:[%s3705 + $0x108] sm:$0xff]
      %v3740 = vld [vmem:[%s3705 + $0x110] sm:$0xff]
      %v3741 = vld [vmem:[%s3705 + $0x118] sm:$0xff]
      %v3742 = vld [vmem:[%s3705 + $0x120] sm:$0xff]
      %v3743 = vld [vmem:[%s3705 + $0x128] sm:$0xff]
      %v3744 = vld [vmem:[%s3705 + $0x130] sm:$0xff]
      %v3745 = vld [vmem:[%s3705 + $0x138] sm:$0xff]
      %v3746 = vld [vmem:[%s3705 + $0x140] sm:$0xff]
      %v3747 = vld [vmem:[%s3705 + $0x148] sm:$0xff]
      %v3748 = vld [vmem:[%s3705 + $0x150] sm:$0xff]
      %v3749 = vld [vmem:[%s3705 + $0x158] sm:$0xff]
      %v3750 = vld [vmem:[%s3705 + $0x160] sm:$0xff]
      %v3751 = vld [vmem:[%s3705 + $0x168] sm:$0xff]
      %v3752 = vld [vmem:[%s3705 + $0x170] sm:$0xff]
      %v3753 = vld [vmem:[%s3705 + $0x178] sm:$0xff]
      %v3754 = vld [vmem:[%s3705 + $0x180] sm:$0xff]
      %v3755 = vld [vmem:[%s3705 + $0x188] sm:$0xff]
      %v3756 = vld [vmem:[%s3705 + $0x190] sm:$0xff]
      %v3757 = vld [vmem:[%s3705 + $0x198] sm:$0xff]
      %v3758 = vld [vmem:[%s3705 + $0x1a0] sm:$0xff]
      %v3759 = vld [vmem:[%s3705 + $0x1a8] sm:$0xff]
      %v3760 = vld [vmem:[%s3705 + $0x1b0] sm:$0xff]
      %v3761 = vld [vmem:[%s3705 + $0x1b8] sm:$0xff]
      %v3762 = vld [vmem:[%s3705 + $0x1c0] sm:$0xff]
      %v3763 = vld [vmem:[%s3705 + $0x1c8] sm:$0xff]
      %v3764 = vld [vmem:[%s3705 + $0x1d0] sm:$0xff]
      %v3765 = vld [vmem:[%s3705 + $0x1d8] sm:$0xff]
      %v3766 = vld [vmem:[%s3705 + $0x1e0] sm:$0xff]
      %v3767 = vld [vmem:[%s3705 + $0x1e8] sm:$0xff]
      %v3768 = vld [vmem:[%s3705 + $0x1f0] sm:$0xff]
      %v3769 = vld [vmem:[%s3705 + $0x1f8] sm:$0xff]
      %v3770 = vld [vmem:[%s3705 + $0x200] sm:$0xff]
      %v3771 = vld [vmem:[%s3705 + $0x208] sm:$0xff]
      %v3772 = vld [vmem:[%s3705 + $0x210] sm:$0xff]
      %v3773 = vld [vmem:[%s3705 + $0x218] sm:$0xff]
      %v3774 = vld [vmem:[%s3705 + $0x220] sm:$0xff]
      %v3775 = vld [vmem:[%s3705 + $0x228] sm:$0xff]
      %v3776 = vld [vmem:[%s3705 + $0x230] sm:$0xff]
      %v3777 = vld [vmem:[%s3705 + $0x238] sm:$0xff]
      %v3778 = vld [vmem:[%s3705 + $0x240] sm:$0xff]
      %v3779 = vld [vmem:[%s3705 + $0x248] sm:$0xff]
      %v3780 = vld [vmem:[%s3705 + $0x250] sm:$0xff]
      %v3781 = vld [vmem:[%s3705 + $0x258] sm:$0xff]
      %v3782 = vld [vmem:[%s3705 + $0x260] sm:$0xff]
      %v3783 = vld [vmem:[%s3705 + $0x268] sm:$0xff]
      %v3784 = vld [vmem:[%s3705 + $0x270] sm:$0xff]
      %v3785 = vld [vmem:[%s3705 + $0x278] sm:$0xff]
      %v3786 = vld [vmem:[%s3705 + $0x280] sm:$0xff]
      %v3787 = vld [vmem:[%s3705 + $0x288] sm:$0xff]
      %v3788 = vld [vmem:[%s3705 + $0x290] sm:$0xff]
      %v3789 = vld [vmem:[%s3705 + $0x298] sm:$0xff]
      %v3790 = vld [vmem:[%s3705 + $0x2a0] sm:$0xff]
      %v3791 = vld [vmem:[%s3705 + $0x2a8] sm:$0xff]
      %v3792 = vld [vmem:[%s3705 + $0x2b0] sm:$0xff]
      %v3793 = vld [vmem:[%s3705 + $0x2b8] sm:$0xff]
      %v3794 = vld [vmem:[%s3705 + $0x2c0] sm:$0xff]
      %v3795 = vld [vmem:[%s3705 + $0x2c8] sm:$0xff]
      %v3796 = vld [vmem:[%s3705 + $0x2d0] sm:$0xff]
      %v3797 = vld [vmem:[%s3705 + $0x2d8] sm:$0xff]
      %v3798 = vld [vmem:[%s3705 + $0x2e0] sm:$0xff]
      %v3799 = vld [vmem:[%s3705 + $0x2e8] sm:$0xff]
      %v3800 = vld [vmem:[%s3705 + $0x2f0] sm:$0xff]
      %v3801 = vld [vmem:[%s3705 + $0x2f8] sm:$0xff]
      %v3898 = vunpack.c.l.b16 %v3706
      %v3899 = vunpack.c.h.b16 %v3706
      %v3900 = vunpack.c.l.b16 %v3707
      %v3901 = vunpack.c.h.b16 %v3707
      %v3902 = vunpack.c.l.b16 %v3708
      %v3903 = vunpack.c.h.b16 %v3708
      %v3904 = vunpack.c.l.b16 %v3709
      %v3905 = vunpack.c.h.b16 %v3709
      %v3906 = vunpack.c.l.b16 %v3710
      %v3907 = vunpack.c.h.b16 %v3710
      %v3908 = vunpack.c.l.b16 %v3711
      %v3909 = vunpack.c.h.b16 %v3711
      %v3910 = vunpack.c.l.b16 %v3712
      %v3911 = vunpack.c.h.b16 %v3712
      %v3912 = vunpack.c.l.b16 %v3713
      %v3913 = vunpack.c.h.b16 %v3713
      %v3914 = vunpack.c.l.b16 %v3714
      %v3915 = vunpack.c.h.b16 %v3714
      %v3916 = vunpack.c.l.b16 %v3715
      %v3917 = vunpack.c.h.b16 %v3715
      %v3918 = vunpack.c.l.b16 %v3716
      %v3919 = vunpack.c.h.b16 %v3716
      %v3920 = vunpack.c.l.b16 %v3717
      %v3921 = vunpack.c.h.b16 %v3717
      %v3922 = vunpack.c.l.b16 %v3718
      %v3923 = vunpack.c.h.b16 %v3718
      %v3924 = vunpack.c.l.b16 %v3719
      %v3925 = vunpack.c.h.b16 %v3719
      %v3926 = vunpack.c.l.b16 %v3720
      %v3927 = vunpack.c.h.b16 %v3720
      %v3928 = vunpack.c.l.b16 %v3721
      %v3929 = vunpack.c.h.b16 %v3721
      %v3930 = vunpack.c.l.b16 %v3722
      %v3931 = vunpack.c.h.b16 %v3722
      %v3932 = vunpack.c.l.b16 %v3723
      %v3933 = vunpack.c.h.b16 %v3723
      %v3934 = vunpack.c.l.b16 %v3724
      %v3935 = vunpack.c.h.b16 %v3724
      %v3936 = vunpack.c.l.b16 %v3725
      %v3937 = vunpack.c.h.b16 %v3725
      %v3938 = vunpack.c.l.b16 %v3726
      %v3939 = vunpack.c.h.b16 %v3726
      %v3940 = vunpack.c.l.b16 %v3727
      %v3941 = vunpack.c.h.b16 %v3727
      %v3942 = vunpack.c.l.b16 %v3728
      %v3943 = vunpack.c.h.b16 %v3728
      %v3944 = vunpack.c.l.b16 %v3729
      %v3945 = vunpack.c.h.b16 %v3729
      %v3946 = vunpack.c.l.b16 %v3730
      %v3947 = vunpack.c.h.b16 %v3730
      %v3948 = vunpack.c.l.b16 %v3731
      %v3949 = vunpack.c.h.b16 %v3731
      %v3950 = vunpack.c.l.b16 %v3732
      %v3951 = vunpack.c.h.b16 %v3732
      %v3952 = vunpack.c.l.b16 %v3733
      %v3953 = vunpack.c.h.b16 %v3733
      %v3954 = vunpack.c.l.b16 %v3734
      %v3955 = vunpack.c.h.b16 %v3734
      %v3956 = vunpack.c.l.b16 %v3735
      %v3957 = vunpack.c.h.b16 %v3735
      %v3958 = vunpack.c.l.b16 %v3736
      %v3959 = vunpack.c.h.b16 %v3736
      %v3960 = vunpack.c.l.b16 %v3737
      %v3961 = vunpack.c.h.b16 %v3737
      %v3962 = vunpack.c.l.b16 %v3738
      %v3963 = vunpack.c.h.b16 %v3738
      %v3964 = vunpack.c.l.b16 %v3739
      %v3965 = vunpack.c.h.b16 %v3739
      %v3966 = vunpack.c.l.b16 %v3740
      %v3967 = vunpack.c.h.b16 %v3740
      %v3968 = vunpack.c.l.b16 %v3741
      %v3969 = vunpack.c.h.b16 %v3741
      %v3970 = vunpack.c.l.b16 %v3742
      %v3971 = vunpack.c.h.b16 %v3742
      %v3972 = vunpack.c.l.b16 %v3743
      %v3973 = vunpack.c.h.b16 %v3743
      %v3974 = vunpack.c.l.b16 %v3744
      %v3975 = vunpack.c.h.b16 %v3744
      %v3976 = vunpack.c.l.b16 %v3745
      %v3977 = vunpack.c.h.b16 %v3745
      %v3978 = vunpack.c.l.b16 %v3746
      %v3979 = vunpack.c.h.b16 %v3746
      %v3980 = vunpack.c.l.b16 %v3747
      %v3981 = vunpack.c.h.b16 %v3747
      %v3982 = vunpack.c.l.b16 %v3748
      %v3983 = vunpack.c.h.b16 %v3748
      %v3984 = vunpack.c.l.b16 %v3749
      %v3985 = vunpack.c.h.b16 %v3749
      %v3986 = vunpack.c.l.b16 %v3750
      %v3987 = vunpack.c.h.b16 %v3750
      %v3988 = vunpack.c.l.b16 %v3751
      %v3989 = vunpack.c.h.b16 %v3751
      %v3990 = vunpack.c.l.b16 %v3752
      %v3991 = vunpack.c.h.b16 %v3752
      %v3992 = vunpack.c.l.b16 %v3753
      %v3993 = vunpack.c.h.b16 %v3753
      %v3994 = vunpack.c.l.b16 %v3754
      %v3995 = vunpack.c.h.b16 %v3754
      %v3996 = vunpack.c.l.b16 %v3755
      %v3997 = vunpack.c.h.b16 %v3755
      %v3998 = vunpack.c.l.b16 %v3756
      %v3999 = vunpack.c.h.b16 %v3756
      %v4000 = vunpack.c.l.b16 %v3757
      %v4001 = vunpack.c.h.b16 %v3757
      %v4002 = vunpack.c.l.b16 %v3758
      %v4003 = vunpack.c.h.b16 %v3758
      %v4004 = vunpack.c.l.b16 %v3759
      %v4005 = vunpack.c.h.b16 %v3759
      %v4006 = vunpack.c.l.b16 %v3760
      %v4007 = vunpack.c.h.b16 %v3760
      %v4008 = vunpack.c.l.b16 %v3761
      %v4009 = vunpack.c.h.b16 %v3761
      %v4010 = vunpack.c.l.b16 %v3762
      %v4011 = vunpack.c.h.b16 %v3762
      %v4012 = vunpack.c.l.b16 %v3763
      %v4013 = vunpack.c.h.b16 %v3763
      %v4014 = vunpack.c.l.b16 %v3764
      %v4015 = vunpack.c.h.b16 %v3764
      %v4016 = vunpack.c.l.b16 %v3765
      %v4017 = vunpack.c.h.b16 %v3765
      %v4018 = vunpack.c.l.b16 %v3766
      %v4019 = vunpack.c.h.b16 %v3766
      %v4020 = vunpack.c.l.b16 %v3767
      %v4021 = vunpack.c.h.b16 %v3767
      %v4022 = vunpack.c.l.b16 %v3768
      %v4023 = vunpack.c.h.b16 %v3768
      %v4024 = vunpack.c.l.b16 %v3769
      %v4025 = vunpack.c.h.b16 %v3769
      %v4026 = vunpack.c.l.b16 %v3770
      %v4027 = vunpack.c.h.b16 %v3770
      %v4028 = vunpack.c.l.b16 %v3771
      %v4029 = vunpack.c.h.b16 %v3771
      %v4030 = vunpack.c.l.b16 %v3772
      %v4031 = vunpack.c.h.b16 %v3772
      %v4032 = vunpack.c.l.b16 %v3773
      %v4033 = vunpack.c.h.b16 %v3773
      %v4034 = vunpack.c.l.b16 %v3774
      %v4035 = vunpack.c.h.b16 %v3774
      %v4036 = vunpack.c.l.b16 %v3775
      %v4037 = vunpack.c.h.b16 %v3775
      %v4038 = vunpack.c.l.b16 %v3776
      %v4039 = vunpack.c.h.b16 %v3776
      %v4040 = vunpack.c.l.b16 %v3777
      %v4041 = vunpack.c.h.b16 %v3777
      %v4042 = vunpack.c.l.b16 %v3778
      %v4043 = vunpack.c.h.b16 %v3778
      %v4044 = vunpack.c.l.b16 %v3779
      %v4045 = vunpack.c.h.b16 %v3779
      %v4046 = vunpack.c.l.b16 %v3780
      %v4047 = vunpack.c.h.b16 %v3780
      %v4048 = vunpack.c.l.b16 %v3781
      %v4049 = vunpack.c.h.b16 %v3781
      %v4050 = vunpack.c.l.b16 %v3782
      %v4051 = vunpack.c.h.b16 %v3782
      %v4052 = vunpack.c.l.b16 %v3783
      %v4053 = vunpack.c.h.b16 %v3783
      %v4054 = vunpack.c.l.b16 %v3784
      %v4055 = vunpack.c.h.b16 %v3784
      %v4056 = vunpack.c.l.b16 %v3785
      %v4057 = vunpack.c.h.b16 %v3785
      %v4058 = vunpack.c.l.b16 %v3786
      %v4059 = vunpack.c.h.b16 %v3786
      %v4060 = vunpack.c.l.b16 %v3787
      %v4061 = vunpack.c.h.b16 %v3787
      %v4062 = vunpack.c.l.b16 %v3788
      %v4063 = vunpack.c.h.b16 %v3788
      %v4064 = vunpack.c.l.b16 %v3789
      %v4065 = vunpack.c.h.b16 %v3789
      %v4066 = vunpack.c.l.b16 %v3790
      %v4067 = vunpack.c.h.b16 %v3790
      %v4068 = vunpack.c.l.b16 %v3791
      %v4069 = vunpack.c.h.b16 %v3791
      %v4070 = vunpack.c.l.b16 %v3792
      %v4071 = vunpack.c.h.b16 %v3792
      %v4072 = vunpack.c.l.b16 %v3793
      %v4073 = vunpack.c.h.b16 %v3793
      %v4074 = vunpack.c.l.b16 %v3794
      %v4075 = vunpack.c.h.b16 %v3794
      %v4076 = vunpack.c.l.b16 %v3795
      %v4077 = vunpack.c.h.b16 %v3795
      %v4078 = vunpack.c.l.b16 %v3796
      %v4079 = vunpack.c.h.b16 %v3796
      %v4080 = vunpack.c.l.b16 %v3797
      %v4081 = vunpack.c.h.b16 %v3797
      %v4082 = vunpack.c.l.b16 %v3798
      %v4083 = vunpack.c.h.b16 %v3798
      %v4084 = vunpack.c.l.b16 %v3799
      %v4085 = vunpack.c.h.b16 %v3799
      %v4086 = vunpack.c.l.b16 %v3800
      %v4087 = vunpack.c.h.b16 %v3800
      %v4088 = vunpack.c.l.b16 %v3801
      %v4089 = vunpack.c.h.b16 %v3801
      %v4090 = vpack.c.b16 %v3900, %v3898
      %v4091 = vpack.c.b16 %v3901, %v3899
      %v4092 = vpack.c.b16 %v3904, %v3902
      %v4093 = vpack.c.b16 %v3905, %v3903
      %v4094 = vpack.c.b16 %v3908, %v3906
      %v4095 = vpack.c.b16 %v3909, %v3907
      %v4096 = vpack.c.b16 %v3912, %v3910
      %v4097 = vpack.c.b16 %v3913, %v3911
      %v4098 = vpack.c.b16 %v3916, %v3914
      %v4099 = vpack.c.b16 %v3917, %v3915
      %v4100 = vpack.c.b16 %v3920, %v3918
      %v4101 = vpack.c.b16 %v3921, %v3919
      %v4102 = vpack.c.b16 %v3924, %v3922
      %v4103 = vpack.c.b16 %v3925, %v3923
      %v4104 = vpack.c.b16 %v3928, %v3926
      %v4105 = vpack.c.b16 %v3929, %v3927
      %v4106 = vpack.c.b16 %v3932, %v3930
      %v4107 = vpack.c.b16 %v3933, %v3931
      %v4108 = vpack.c.b16 %v3936, %v3934
      %v4109 = vpack.c.b16 %v3937, %v3935
      %v4110 = vpack.c.b16 %v3940, %v3938
      %v4111 = vpack.c.b16 %v3941, %v3939
      %v4112 = vpack.c.b16 %v3944, %v3942
      %v4113 = vpack.c.b16 %v3945, %v3943
      %v4114 = vpack.c.b16 %v3948, %v3946
      %v4115 = vpack.c.b16 %v3949, %v3947
      %v4116 = vpack.c.b16 %v3952, %v3950
      %v4117 = vpack.c.b16 %v3953, %v3951
      %v4118 = vpack.c.b16 %v3956, %v3954
      %v4119 = vpack.c.b16 %v3957, %v3955
      %v4120 = vpack.c.b16 %v3960, %v3958
      %v4121 = vpack.c.b16 %v3961, %v3959
      %v4122 = vpack.c.b16 %v3964, %v3962
      %v4123 = vpack.c.b16 %v3965, %v3963
      %v4124 = vpack.c.b16 %v3968, %v3966
      %v4125 = vpack.c.b16 %v3969, %v3967
      %v4126 = vpack.c.b16 %v3972, %v3970
      %v4127 = vpack.c.b16 %v3973, %v3971
      %v4128 = vpack.c.b16 %v3976, %v3974
      %v4129 = vpack.c.b16 %v3977, %v3975
      %v4130 = vpack.c.b16 %v3980, %v3978
      %v4131 = vpack.c.b16 %v3981, %v3979
      %v4132 = vpack.c.b16 %v3984, %v3982
      %v4133 = vpack.c.b16 %v3985, %v3983
      %v4134 = vpack.c.b16 %v3988, %v3986
      %v4135 = vpack.c.b16 %v3989, %v3987
      %v4136 = vpack.c.b16 %v3992, %v3990
      %v4137 = vpack.c.b16 %v3993, %v3991
      %v4138 = vpack.c.b16 %v3996, %v3994
      %v4139 = vpack.c.b16 %v3997, %v3995
      %v4140 = vpack.c.b16 %v4000, %v3998
      %v4141 = vpack.c.b16 %v4001, %v3999
      %v4142 = vpack.c.b16 %v4004, %v4002
      %v4143 = vpack.c.b16 %v4005, %v4003
      %v4144 = vpack.c.b16 %v4008, %v4006
      %v4145 = vpack.c.b16 %v4009, %v4007
      %v4146 = vpack.c.b16 %v4012, %v4010
      %v4147 = vpack.c.b16 %v4013, %v4011
      %v4148 = vpack.c.b16 %v4016, %v4014
      %v4149 = vpack.c.b16 %v4017, %v4015
      %v4150 = vpack.c.b16 %v4020, %v4018
      %v4151 = vpack.c.b16 %v4021, %v4019
      %v4152 = vpack.c.b16 %v4024, %v4022
      %v4153 = vpack.c.b16 %v4025, %v4023
      %v4154 = vpack.c.b16 %v4028, %v4026
      %v4155 = vpack.c.b16 %v4029, %v4027
      %v4156 = vpack.c.b16 %v4032, %v4030
      %v4157 = vpack.c.b16 %v4033, %v4031
      %v4158 = vpack.c.b16 %v4036, %v4034
      %v4159 = vpack.c.b16 %v4037, %v4035
      %v4160 = vpack.c.b16 %v4040, %v4038
      %v4161 = vpack.c.b16 %v4041, %v4039
      %v4162 = vpack.c.b16 %v4044, %v4042
      %v4163 = vpack.c.b16 %v4045, %v4043
      %v4164 = vpack.c.b16 %v4048, %v4046
      %v4165 = vpack.c.b16 %v4049, %v4047
      %v4166 = vpack.c.b16 %v4052, %v4050
      %v4167 = vpack.c.b16 %v4053, %v4051
      %v4168 = vpack.c.b16 %v4056, %v4054
      %v4169 = vpack.c.b16 %v4057, %v4055
      %v4170 = vpack.c.b16 %v4060, %v4058
      %v4171 = vpack.c.b16 %v4061, %v4059
      %v4172 = vpack.c.b16 %v4064, %v4062
      %v4173 = vpack.c.b16 %v4065, %v4063
      %v4174 = vpack.c.b16 %v4068, %v4066
      %v4175 = vpack.c.b16 %v4069, %v4067
      %v4176 = vpack.c.b16 %v4072, %v4070
      %v4177 = vpack.c.b16 %v4073, %v4071
      %v4178 = vpack.c.b16 %v4076, %v4074
      %v4179 = vpack.c.b16 %v4077, %v4075
      %v4180 = vpack.c.b16 %v4080, %v4078
      %v4181 = vpack.c.b16 %v4081, %v4079
      %v4182 = vpack.c.b16 %v4084, %v4082
      %v4183 = vpack.c.b16 %v4085, %v4083
      %v4184 = vpack.c.b16 %v4088, %v4086
      %v4185 = vpack.c.b16 %v4089, %v4087
      %4282 = vmatprep.subr.bf16.mxu0 %v4091
      %4283 = vmatpush1.bf16.msra.mxu0 %v4090
      %4284 = vmatprep.subr.bf16.mxu0 %v4093
      %4285 = vmatpush1.bf16.msra.mxu0 %v4092
      %4286 = vmatprep.subr.bf16.mxu0 %v4095
      %4287 = vmatpush1.bf16.msra.mxu0 %v4094
      %4288 = vmatprep.subr.bf16.mxu0 %v4097
      %4289 = vmatpush1.bf16.msra.mxu0 %v4096
      %4290 = vmatprep.subr.bf16.mxu0 %v4099
      %4291 = vmatpush1.bf16.msra.mxu0 %v4098
      %4292 = vmatprep.subr.bf16.mxu0 %v4101
      %4293 = vmatpush1.bf16.msra.mxu0 %v4100
      %4294 = vmatprep.subr.bf16.mxu0 %v4103
      %4295 = vmatpush1.bf16.msra.mxu0 %v4102
      %4296 = vmatprep.subr.bf16.mxu0 %v4105
      %4297 = vmatpush1.bf16.msra.mxu0 %v4104
      %4298 = vmatprep.subr.bf16.mxu0 %v4107
      %4299 = vmatpush1.bf16.msra.mxu0 %v4106
      %4300 = vmatprep.subr.bf16.mxu0 %v4109
      %4301 = vmatpush1.bf16.msra.mxu0 %v4108
      %4302 = vmatprep.subr.bf16.mxu0 %v4111
      %4303 = vmatpush1.bf16.msra.mxu0 %v4110
      %4304 = vmatprep.subr.bf16.mxu0 %v4113
      %4305 = vmatpush1.bf16.msra.mxu0 %v4112
      %4306 = vmatprep.subr.bf16.mxu0 %v4115
      %4307 = vmatpush1.bf16.msra.mxu0 %v4114
      %4308 = vmatprep.subr.bf16.mxu0 %v4117
      %4309 = vmatpush1.bf16.msra.mxu0 %v4116
      %4310 = vmatprep.subr.bf16.mxu0 %v4119
      %4311 = vmatpush1.bf16.msra.mxu0 %v4118
      %4312 = vmatprep.subr.bf16.mxu0 %v4121
      %4313 = vmatpush1.bf16.msra.mxu0 %v4120
      %4314 = vmatprep.mubr.bf16.mxu0 %v237
      %4315 = vmatmul.mubr.bf16.gmra.mrb[0].mxu0 %v236
      %v4316 = vpop.f32.mrb[0].mxu0
      %v4317 = vadd.f32 0.0, %v4316
      %v4318 = vpop.f32.mrb[0].mxu0
      %v4319 = vadd.f32 0.0, %v4318
      %v4320 = vpop.f32.mrb[0].mxu0
      %v4321 = vadd.f32 0.0, %v4320
      %v4322 = vpop.f32.mrb[0].mxu0
      %v4323 = vadd.f32 0.0, %v4322
      %4324 = vmatprep.mubr.bf16.mxu0 %v239
      %4325 = vmatmul.mubr.bf16.gmra.mrb[0].mxu0 %v238
      %v4326 = vpop.f32.mrb[0].mxu0
      %v4327 = vadd.f32 0.0, %v4326
      %v4328 = vpop.f32.mrb[0].mxu0
      %v4329 = vadd.f32 0.0, %v4328
      %v4330 = vpop.f32.mrb[0].mxu0
      %v4331 = vadd.f32 0.0, %v4330
      %v4332 = vpop.f32.mrb[0].mxu0
      %v4333 = vadd.f32 0.0, %v4332
      %4334 = vmatprep.mubr.bf16.mxu0 %v241
      %4335 = vmatmul.mubr.bf16.gmra.mrb[0].mxu0 %v240
      %v4336 = vpop.f32.mrb[0].mxu0
      %v4337 = vadd.f32 0.0, %v4336
      %v4338 = vpop.f32.mrb[0].mxu0
      %v4339 = vadd.f32 0.0, %v4338
      %v4340 = vpop.f32.mrb[0].mxu0
      %v4341 = vadd.f32 0.0, %v4340
      %v4342 = vpop.f32.mrb[0].mxu0
      %v4343 = vadd.f32 0.0, %v4342
      %4344 = vmatprep.mubr.bf16.mxu0 %v243
      %4345 = vmatmul.mubr.bf16.gmra.mrb[0].mxu0 %v242
      %v4346 = vpop.f32.mrb[0].mxu0
      %v4347 = vadd.f32 0.0, %v4346
      %v4348 = vpop.f32.mrb[0].mxu0
      %v4349 = vadd.f32 0.0, %v4348
      %v4350 = vpop.f32.mrb[0].mxu0
      %v4351 = vadd.f32 0.0, %v4350
      %v4352 = vpop.f32.mrb[0].mxu0
      %v4353 = vadd.f32 0.0, %v4352
      %4354 = vmatprep.mubr.bf16.mxu0 %v245
      %4355 = vmatmul.mubr.bf16.gmra.mrb[0].mxu0 %v244
      %v4356 = vpop.f32.mrb[0].mxu0
      %v4357 = vadd.f32 0.0, %v4356
      %v4358 = vpop.f32.mrb[0].mxu0
      %v4359 = vadd.f32 0.0, %v4358
      %v4360 = vpop.f32.mrb[0].mxu0
      %v4361 = vadd.f32 0.0, %v4360
      %v4362 = vpop.f32.mrb[0].mxu0
      %v4363 = vadd.f32 0.0, %v4362
      %4364 = vmatprep.mubr.bf16.mxu0 %v247
      %4365 = vmatmul.mubr.bf16.gmra.mrb[0].mxu0 %v246
      %v4366 = vpop.f32.mrb[0].mxu0
      %v4367 = vadd.f32 0.0, %v4366
      %v4368 = vpop.f32.mrb[0].mxu0
      %v4369 = vadd.f32 0.0, %v4368
      %v4370 = vpop.f32.mrb[0].mxu0
      %v4371 = vadd.f32 0.0, %v4370
      %v4372 = vpop.f32.mrb[0].mxu0
      %v4373 = vadd.f32 0.0, %v4372
      %4374 = vmatprep.mubr.bf16.mxu0 %v249
      %4375 = vmatmul.mubr.bf16.gmra.mrb[0].mxu0 %v248
      %v4376 = vpop.f32.mrb[0].mxu0
      %v4377 = vadd.f32 0.0, %v4376
      %v4378 = vpop.f32.mrb[0].mxu0
      %v4379 = vadd.f32 0.0, %v4378
      %v4380 = vpop.f32.mrb[0].mxu0
      %v4381 = vadd.f32 0.0, %v4380
      %v4382 = vpop.f32.mrb[0].mxu0
      %v4383 = vadd.f32 0.0, %v4382
      %4384 = vmatprep.mubr.bf16.mxu0 %v251
      %4385 = vmatmul.mubr.bf16.gmra.mrb[0].mxu0 %v250
      %v4386 = vpop.f32.mrb[0].mxu0
      %v4387 = vadd.f32 0.0, %v4386
      %v4388 = vpop.f32.mrb[0].mxu0
      %v4389 = vadd.f32 0.0, %v4388
      %v4390 = vpop.f32.mrb[0].mxu0
      %v4391 = vadd.f32 0.0, %v4390
      %v4392 = vpop.f32.mrb[0].mxu0
      %v4393 = vadd.f32 0.0, %v4392
      %4394 = vmatprep.mubr.bf16.mxu0 %v257
      %4395 = vmatmul.mubr.bf16.gmra.mrb[0].mxu0 %v256
      %v4396 = vpop.f32.mrb[0].mxu0
      %v4397 = vadd.f32 0.0, %v4396
      %v4398 = vpop.f32.mrb[0].mxu0
      %v4399 = vadd.f32 0.0, %v4398
      %v4400 = vpop.f32.mrb[0].mxu0
      %v4401 = vadd.f32 0.0, %v4400
      %v4402 = vpop.f32.mrb[0].mxu0
      %v4403 = vadd.f32 0.0, %v4402
      %4404 = vmatprep.mubr.bf16.mxu0 %v259
      %4405 = vmatmul.mubr.bf16.gmra.mrb[0].mxu0 %v258
      %v4406 = vpop.f32.mrb[0].mxu0
      %v4407 = vadd.f32 0.0, %v4406
      %v4408 = vpop.f32.mrb[0].mxu0
      %v4409 = vadd.f32 0.0, %v4408
      %v4410 = vpop.f32.mrb[0].mxu0
      %v4411 = vadd.f32 0.0, %v4410
      %v4412 = vpop.f32.mrb[0].mxu0
      %v4413 = vadd.f32 0.0, %v4412
      %4414 = vmatprep.mubr.bf16.mxu0 %v261
      %4415 = vmatmul.mubr.bf16.gmra.mrb[0].mxu0 %v260
      %v4416 = vpop.f32.mrb[0].mxu0
      %v4417 = vadd.f32 0.0, %v4416
      %v4418 = vpop.f32.mrb[0].mxu0
      %v4419 = vadd.f32 0.0, %v4418
      %v4420 = vpop.f32.mrb[0].mxu0
      %v4421 = vadd.f32 0.0, %v4420
      %v4422 = vpop.f32.mrb[0].mxu0
      %v4423 = vadd.f32 0.0, %v4422
      %4424 = vmatprep.mubr.bf16.mxu0 %v263
      %4425 = vmatmul.mubr.bf16.gmra.mrb[0].mxu0 %v262
      %v4426 = vpop.f32.mrb[0].mxu0
      %v4427 = vadd.f32 0.0, %v4426
      %v4428 = vpop.f32.mrb[0].mxu0
      %v4429 = vadd.f32 0.0, %v4428
      %v4430 = vpop.f32.mrb[0].mxu0
      %v4431 = vadd.f32 0.0, %v4430
      %v4432 = vpop.f32.mrb[0].mxu0
      %v4433 = vadd.f32 0.0, %v4432
      %4434 = vmatprep.mubr.bf16.mxu0 %v265
      %4435 = vmatmul.mubr.bf16.gmra.mrb[0].mxu0 %v264
      %v4436 = vpop.f32.mrb[0].mxu0
      %v4437 = vadd.f32 0.0, %v4436
      %v4438 = vpop.f32.mrb[0].mxu0
      %v4439 = vadd.f32 0.0, %v4438
      %v4440 = vpop.f32.mrb[0].mxu0
      %v4441 = vadd.f32 0.0, %v4440
      %v4442 = vpop.f32.mrb[0].mxu0
      %v4443 = vadd.f32 0.0, %v4442
      %4444 = vmatprep.mubr.bf16.mxu0 %v267
      %4445 = vmatmul.mubr.bf16.gmra.mrb[0].mxu0 %v266
      %v4446 = vpop.f32.mrb[0].mxu0
      %v4447 = vadd.f32 0.0, %v4446
      %v4448 = vpop.f32.mrb[0].mxu0
      %v4449 = vadd.f32 0.0, %v4448
      %v4450 = vpop.f32.mrb[0].mxu0
      %v4451 = vadd.f32 0.0, %v4450
      %v4452 = vpop.f32.mrb[0].mxu0
      %v4453 = vadd.f32 0.0, %v4452
      %4454 = vmatprep.mubr.bf16.mxu0 %v269
      %4455 = vmatmul.mubr.bf16.gmra.mrb[0].mxu0 %v268
      %v4456 = vpop.f32.mrb[0].mxu0
      %v4457 = vadd.f32 0.0, %v4456
      %v4458 = vpop.f32.mrb[0].mxu0
      %v4459 = vadd.f32 0.0, %v4458
      %v4460 = vpop.f32.mrb[0].mxu0
      %v4461 = vadd.f32 0.0, %v4460
      %v4462 = vpop.f32.mrb[0].mxu0
      %v4463 = vadd.f32 0.0, %v4462
      %4464 = vmatprep.mubr.bf16.mxu0 %v271
      %4465 = vmatmul.mubr.bf16.gmra.mrb[0].mxu0 %v270
      %v4466 = vpop.f32.mrb[0].mxu0
      %v4467 = vadd.f32 0.0, %v4466
      %v4468 = vpop.f32.mrb[0].mxu0
      %v4469 = vadd.f32 0.0, %v4468
      %v4470 = vpop.f32.mrb[0].mxu0
      %v4471 = vadd.f32 0.0, %v4470
      %v4472 = vpop.f32.mrb[0].mxu0
      %v4473 = vadd.f32 0.0, %v4472
      %4474 = vdwg.mxu0
      %4475 = vmatprep.subr.bf16.mxu0 %v4123
      %4476 = vmatpush1.bf16.msra.mxu0 %v4122
      %4477 = vmatprep.subr.bf16.mxu0 %v4125
      %4478 = vmatpush1.bf16.msra.mxu0 %v4124
      %4479 = vmatprep.subr.bf16.mxu0 %v4127
      %4480 = vmatpush1.bf16.msra.mxu0 %v4126
      %4481 = vmatprep.subr.bf16.mxu0 %v4129
      %4482 = vmatpush1.bf16.msra.mxu0 %v4128
      %4483 = vmatprep.subr.bf16.mxu0 %v4131
      %4484 = vmatpush1.bf16.msra.mxu0 %v4130
      %4485 = vmatprep.subr.bf16.mxu0 %v4133
      %4486 = vmatpush1.bf16.msra.mxu0 %v4132
      %4487 = vmatprep.subr.bf16.mxu0 %v4135
      %4488 = vmatpush1.bf16.msra.mxu0 %v4134
      %4489 = vmatprep.subr.bf16.mxu0 %v4137
      %4490 = vmatpush1.bf16.msra.mxu0 %v4136
      %4491 = vmatprep.subr.bf16.mxu0 %v4139
      %4492 = vmatpush1.bf16.msra.mxu0 %v4138
      %4493 = vmatprep.subr.bf16.mxu0 %v4141
      %4494 = vmatpush1.bf16.msra.mxu0 %v4140
      %4495 = vmatprep.subr.bf16.mxu0 %v4143
      %4496 = vmatpush1.bf16.msra.mxu0 %v4142
      %4497 = vmatprep.subr.bf16.mxu0 %v4145
      %4498 = vmatpush1.bf16.msra.mxu0 %v4144
      %4499 = vmatprep.subr.bf16.mxu0 %v4147
      %4500 = vmatpush1.bf16.msra.mxu0 %v4146
      %4501 = vmatprep.subr.bf16.mxu0 %v4149
      %4502 = vmatpush1.bf16.msra.mxu0 %v4148
      %4503 = vmatprep.subr.bf16.mxu0 %v4151
      %4504 = vmatpush1.bf16.msra.mxu0 %v4150
      %4505 = vmatprep.subr.bf16.mxu0 %v4153
      %4506 = vmatpush1.bf16.msra.mxu0 %v4152
      %4507 = vmatprep.mubr.bf16.mxu0 %v704
      %4508 = vmatmul.mubr.bf16.gmra.mrb[0].mxu0 %v692
      %v4509 = vpop.f32.mrb[0].mxu0
      %v4510 = vadd.f32 %v4317, %v4509
      %v4511 = vpop.f32.mrb[0].mxu0
      %v4512 = vadd.f32 %v4319, %v4511
      %v4513 = vpop.f32.mrb[0].mxu0
      %v4514 = vadd.f32 %v4321, %v4513
      %v4515 = vpop.f32.mrb[0].mxu0
      %v4516 = vadd.f32 %v4323, %v4515
      %4517 = vmatprep.mubr.bf16.mxu0 %v728
      %4518 = vmatmul.mubr.bf16.gmra.mrb[0].mxu0 %v716
      %v4519 = vpop.f32.mrb[0].mxu0
      %v4520 = vadd.f32 %v4327, %v4519
      %v4521 = vpop.f32.mrb[0].mxu0
      %v4522 = vadd.f32 %v4329, %v4521
      %v4523 = vpop.f32.mrb[0].mxu0
      %v4524 = vadd.f32 %v4331, %v4523
      %v4525 = vpop.f32.mrb[0].mxu0
      %v4526 = vadd.f32 %v4333, %v4525
      %4527 = vmatprep.mubr.bf16.mxu0 %v752
      %4528 = vmatmul.mubr.bf16.gmra.mrb[0].mxu0 %v740
      %v4529 = vpop.f32.mrb[0].mxu0
      %v4530 = vadd.f32 %v4337, %v4529
      %v4531 = vpop.f32.mrb[0].mxu0
      %v4532 = vadd.f32 %v4339, %v4531
      %v4533 = vpop.f32.mrb[0].mxu0
      %v4534 = vadd.f32 %v4341, %v4533
      %v4535 = vpop.f32.mrb[0].mxu0
      %v4536 = vadd.f32 %v4343, %v4535
      %4537 = vmatprep.mubr.bf16.mxu0 %v776
      %4538 = vmatmul.mubr.bf16.gmra.mrb[0].mxu0 %v764
      %v4539 = vpop.f32.mrb[0].mxu0
      %v4540 = vadd.f32 %v4347, %v4539
      %v4541 = vpop.f32.mrb[0].mxu0
      %v4542 = vadd.f32 %v4349, %v4541
      %v4543 = vpop.f32.mrb[0].mxu0
      %v4544 = vadd.f32 %v4351, %v4543
      %v4545 = vpop.f32.mrb[0].mxu0
      %v4546 = vadd.f32 %v4353, %v4545
      %4547 = vmatprep.mubr.bf16.mxu0 %v800
      %4548 = vmatmul.mubr.bf16.gmra.mrb[0].mxu0 %v788
      %v4549 = vpop.f32.mrb[0].mxu0
      %v4550 = vadd.f32 %v4357, %v4549
      %v4551 = vpop.f32.mrb[0].mxu0
      %v4552 = vadd.f32 %v4359, %v4551
      %v4553 = vpop.f32.mrb[0].mxu0
      %v4554 = vadd.f32 %v4361, %v4553
      %v4555 = vpop.f32.mrb[0].mxu0
      %v4556 = vadd.f32 %v4363, %v4555
      %4557 = vmatprep.mubr.bf16.mxu0 %v824
      %4558 = vmatmul.mubr.bf16.gmra.mrb[0].mxu0 %v812
      %v4559 = vpop.f32.mrb[0].mxu0
      %v4560 = vadd.f32 %v4367, %v4559
      %v4561 = vpop.f32.mrb[0].mxu0
      %v4562 = vadd.f32 %v4369, %v4561
      %v4563 = vpop.f32.mrb[0].mxu0
      %v4564 = vadd.f32 %v4371, %v4563
      %v4565 = vpop.f32.mrb[0].mxu0
      %v4566 = vadd.f32 %v4373, %v4565
      %4567 = vmatprep.mubr.bf16.mxu0 %v848
      %4568 = vmatmul.mubr.bf16.gmra.mrb[0].mxu0 %v836
      %v4569 = vpop.f32.mrb[0].mxu0
      %v4570 = vadd.f32 %v4377, %v4569
      %v4571 = vpop.f32.mrb[0].mxu0
      %v4572 = vadd.f32 %v4379, %v4571
      %v4573 = vpop.f32.mrb[0].mxu0
      %v4574 = vadd.f32 %v4381, %v4573
      %v4575 = vpop.f32.mrb[0].mxu0
      %v4576 = vadd.f32 %v4383, %v4575
      %4577 = vmatprep.mubr.bf16.mxu0 %v872
      %4578 = vmatmul.mubr.bf16.gmra.mrb[0].mxu0 %v860
      %v4579 = vpop.f32.mrb[0].mxu0
      %v4580 = vadd.f32 %v4387, %v4579
      %v4581 = vpop.f32.mrb[0].mxu0
      %v4582 = vadd.f32 %v4389, %v4581
      %v4583 = vpop.f32.mrb[0].mxu0
      %v4584 = vadd.f32 %v4391, %v4583
      %v4585 = vpop.f32.mrb[0].mxu0
      %v4586 = vadd.f32 %v4393, %v4585
      %4587 = vmatprep.mubr.bf16.mxu0 %v944
      %4588 = vmatmul.mubr.bf16.gmra.mrb[0].mxu0 %v932
      %v4589 = vpop.f32.mrb[0].mxu0
      %v4590 = vadd.f32 %v4397, %v4589
      %v4591 = vpop.f32.mrb[0].mxu0
      %v4592 = vadd.f32 %v4399, %v4591
      %v4593 = vpop.f32.mrb[0].mxu0
      %v4594 = vadd.f32 %v4401, %v4593
      %v4595 = vpop.f32.mrb[0].mxu0
      %v4596 = vadd.f32 %v4403, %v4595
      %4597 = vmatprep.mubr.bf16.mxu0 %v968
      %4598 = vmatmul.mubr.bf16.gmra.mrb[0].mxu0 %v956
      %v4599 = vpop.f32.mrb[0].mxu0
      %v4600 = vadd.f32 %v4407, %v4599
      %v4601 = vpop.f32.mrb[0].mxu0
      %v4602 = vadd.f32 %v4409, %v4601
      %v4603 = vpop.f32.mrb[0].mxu0
      %v4604 = vadd.f32 %v4411, %v4603
      %v4605 = vpop.f32.mrb[0].mxu0
      %v4606 = vadd.f32 %v4413, %v4605
      %4607 = vmatprep.mubr.bf16.mxu0 %v992
      %4608 = vmatmul.mubr.bf16.gmra.mrb[0].mxu0 %v980
      %v4609 = vpop.f32.mrb[0].mxu0
      %v4610 = vadd.f32 %v4417, %v4609
      %v4611 = vpop.f32.mrb[0].mxu0
      %v4612 = vadd.f32 %v4419, %v4611
      %v4613 = vpop.f32.mrb[0].mxu0
      %v4614 = vadd.f32 %v4421, %v4613
      %v4615 = vpop.f32.mrb[0].mxu0
      %v4616 = vadd.f32 %v4423, %v4615
      %4617 = vmatprep.mubr.bf16.mxu0 %v1016
      %4618 = vmatmul.mubr.bf16.gmra.mrb[0].mxu0 %v1004
      %v4619 = vpop.f32.mrb[0].mxu0
      %v4620 = vadd.f32 %v4427, %v4619
      %v4621 = vpop.f32.mrb[0].mxu0
      %v4622 = vadd.f32 %v4429, %v4621
      %v4623 = vpop.f32.mrb[0].mxu0
      %v4624 = vadd.f32 %v4431, %v4623
      %v4625 = vpop.f32.mrb[0].mxu0
      %v4626 = vadd.f32 %v4433, %v4625
      %4627 = vmatprep.mubr.bf16.mxu0 %v1040
      %4628 = vmatmul.mubr.bf16.gmra.mrb[0].mxu0 %v1028
      %v4629 = vpop.f32.mrb[0].mxu0
      %v4630 = vadd.f32 %v4437, %v4629
      %v4631 = vpop.f32.mrb[0].mxu0
      %v4632 = vadd.f32 %v4439, %v4631
      %v4633 = vpop.f32.mrb[0].mxu0
      %v4634 = vadd.f32 %v4441, %v4633
      %v4635 = vpop.f32.mrb[0].mxu0
      %v4636 = vadd.f32 %v4443, %v4635
      %4637 = vmatprep.mubr.bf16.mxu0 %v1064
      %4638 = vmatmul.mubr.bf16.gmra.mrb[0].mxu0 %v1052
      %v4639 = vpop.f32.mrb[0].mxu0
      %v4640 = vadd.f32 %v4447, %v4639
      %v4641 = vpop.f32.mrb[0].mxu0
      %v4642 = vadd.f32 %v4449, %v4641
      %v4643 = vpop.f32.mrb[0].mxu0
      %v4644 = vadd.f32 %v4451, %v4643
      %v4645 = vpop.f32.mrb[0].mxu0
      %v4646 = vadd.f32 %v4453, %v4645
      %4647 = vmatprep.mubr.bf16.mxu0 %v1088
      %4648 = vmatmul.mubr.bf16.gmra.mrb[0].mxu0 %v1076
      %v4649 = vpop.f32.mrb[0].mxu0
      %v4650 = vadd.f32 %v4457, %v4649
      %v4651 = vpop.f32.mrb[0].mxu0
      %v4652 = vadd.f32 %v4459, %v4651
      %v4653 = vpop.f32.mrb[0].mxu0
      %v4654 = vadd.f32 %v4461, %v4653
      %v4655 = vpop.f32.mrb[0].mxu0
      %v4656 = vadd.f32 %v4463, %v4655
      %4657 = vmatprep.mubr.bf16.mxu0 %v1112
      %4658 = vmatmul.mubr.bf16.gmra.mrb[0].mxu0 %v1100
      %v4659 = vpop.f32.mrb[0].mxu0
      %v4660 = vadd.f32 %v4467, %v4659
      %v4661 = vpop.f32.mrb[0].mxu0
      %v4662 = vadd.f32 %v4469, %v4661
      %v4663 = vpop.f32.mrb[0].mxu0
      %v4664 = vadd.f32 %v4471, %v4663
      %v4665 = vpop.f32.mrb[0].mxu0
      %v4666 = vadd.f32 %v4473, %v4665
      %4667 = vdwg.mxu0
      %4668 = vmatprep.subr.bf16.mxu0 %v4155
      %4669 = vmatpush1.bf16.msra.mxu0 %v4154
      %4670 = vmatprep.subr.bf16.mxu0 %v4157
      %4671 = vmatpush1.bf16.msra.mxu0 %v4156
      %4672 = vmatprep.subr.bf16.mxu0 %v4159
      %4673 = vmatpush1.bf16.msra.mxu0 %v4158
      %4674 = vmatprep.subr.bf16.mxu0 %v4161
      %4675 = vmatpush1.bf16.msra.mxu0 %v4160
      %4676 = vmatprep.subr.bf16.mxu0 %v4163
      %4677 = vmatpush1.bf16.msra.mxu0 %v4162
      %4678 = vmatprep.subr.bf16.mxu0 %v4165
      %4679 = vmatpush1.bf16.msra.mxu0 %v4164
      %4680 = vmatprep.subr.bf16.mxu0 %v4167
      %4681 = vmatpush1.bf16.msra.mxu0 %v4166
      %4682 = vmatprep.subr.bf16.mxu0 %v4169
      %4683 = vmatpush1.bf16.msra.mxu0 %v4168
      %4684 = vmatprep.subr.bf16.mxu0 %v4171
      %4685 = vmatpush1.bf16.msra.mxu0 %v4170
      %4686 = vmatprep.subr.bf16.mxu0 %v4173
      %4687 = vmatpush1.bf16.msra.mxu0 %v4172
      %4688 = vmatprep.subr.bf16.mxu0 %v4175
      %4689 = vmatpush1.bf16.msra.mxu0 %v4174
      %4690 = vmatprep.subr.bf16.mxu0 %v4177
      %4691 = vmatpush1.bf16.msra.mxu0 %v4176
      %4692 = vmatprep.subr.bf16.mxu0 %v4179
      %4693 = vmatpush1.bf16.msra.mxu0 %v4178
      %4694 = vmatprep.subr.bf16.mxu0 %v4181
      %4695 = vmatpush1.bf16.msra.mxu0 %v4180
      %4696 = vmatprep.subr.bf16.mxu0 %v4183
      %4697 = vmatpush1.bf16.msra.mxu0 %v4182
      %4698 = vmatprep.subr.bf16.mxu0 %v4185
      %4699 = vmatpush1.bf16.msra.mxu0 %v4184
      %4700 = vmatprep.mubr.bf16.mxu0 %v1251
      %4701 = vmatmul.mubr.bf16.gmra.mrb[0].mxu0 %v1248
      %v4702 = vpop.f32.mrb[0].mxu0
      %v4703 = vadd.f32 %v4510, %v4702
      %v4704 = vpop.f32.mrb[0].mxu0
      %v4705 = vadd.f32 %v4512, %v4704
      %v4706 = vpop.f32.mrb[0].mxu0
      %v4707 = vadd.f32 %v4514, %v4706
      %v4708 = vpop.f32.mrb[0].mxu0
      %v4709 = vadd.f32 %v4516, %v4708
      %4710 = vmatprep.mubr.bf16.mxu0 %v1257
      %4711 = vmatmul.mubr.bf16.gmra.mrb[0].mxu0 %v1254
      %v4712 = vpop.f32.mrb[0].mxu0
      %v4713 = vadd.f32 %v4520, %v4712
      %v4714 = vpop.f32.mrb[0].mxu0
      %v4715 = vadd.f32 %v4522, %v4714
      %v4716 = vpop.f32.mrb[0].mxu0
      %v4717 = vadd.f32 %v4524, %v4716
      %v4718 = vpop.f32.mrb[0].mxu0
      %v4719 = vadd.f32 %v4526, %v4718
      %4720 = vmatprep.mubr.bf16.mxu0 %v1263
      %4721 = vmatmul.mubr.bf16.gmra.mrb[0].mxu0 %v1260
      %v4722 = vpop.f32.mrb[0].mxu0
      %v4723 = vadd.f32 %v4530, %v4722
      %v4724 = vpop.f32.mrb[0].mxu0
      %v4725 = vadd.f32 %v4532, %v4724
      %v4726 = vpop.f32.mrb[0].mxu0
      %v4727 = vadd.f32 %v4534, %v4726
      %v4728 = vpop.f32.mrb[0].mxu0
      %v4729 = vadd.f32 %v4536, %v4728
      %4730 = vmatprep.mubr.bf16.mxu0 %v1269
      %4731 = vmatmul.mubr.bf16.gmra.mrb[0].mxu0 %v1266
      %v4732 = vpop.f32.mrb[0].mxu0
      %v4733 = vadd.f32 %v4540, %v4732
      %v4734 = vpop.f32.mrb[0].mxu0
      %v4735 = vadd.f32 %v4542, %v4734
      %v4736 = vpop.f32.mrb[0].mxu0
      %v4737 = vadd.f32 %v4544, %v4736
      %v4738 = vpop.f32.mrb[0].mxu0
      %v4739 = vadd.f32 %v4546, %v4738
      %4740 = vmatprep.mubr.bf16.mxu0 %v1275
      %4741 = vmatmul.mubr.bf16.gmra.mrb[0].mxu0 %v1272
      %v4742 = vpop.f32.mrb[0].mxu0
      %v4743 = vadd.f32 %v4550, %v4742
      %v4744 = vpop.f32.mrb[0].mxu0
      %v4745 = vadd.f32 %v4552, %v4744
      %v4746 = vpop.f32.mrb[0].mxu0
      %v4747 = vadd.f32 %v4554, %v4746
      %v4748 = vpop.f32.mrb[0].mxu0
      %v4749 = vadd.f32 %v4556, %v4748
      %4750 = vmatprep.mubr.bf16.mxu0 %v1281
      %4751 = vmatmul.mubr.bf16.gmra.mrb[0].mxu0 %v1278
      %v4752 = vpop.f32.mrb[0].mxu0
      %v4753 = vadd.f32 %v4560, %v4752
      %v4754 = vpop.f32.mrb[0].mxu0
      %v4755 = vadd.f32 %v4562, %v4754
      %v4756 = vpop.f32.mrb[0].mxu0
      %v4757 = vadd.f32 %v4564, %v4756
      %v4758 = vpop.f32.mrb[0].mxu0
      %v4759 = vadd.f32 %v4566, %v4758
      %4760 = vmatprep.mubr.bf16.mxu0 %v1287
      %4761 = vmatmul.mubr.bf16.gmra.mrb[0].mxu0 %v1284
      %v4762 = vpop.f32.mrb[0].mxu0
      %v4763 = vadd.f32 %v4570, %v4762
      %v4764 = vpop.f32.mrb[0].mxu0
      %v4765 = vadd.f32 %v4572, %v4764
      %v4766 = vpop.f32.mrb[0].mxu0
      %v4767 = vadd.f32 %v4574, %v4766
      %v4768 = vpop.f32.mrb[0].mxu0
      %v4769 = vadd.f32 %v4576, %v4768
      %4770 = vmatprep.mubr.bf16.mxu0 %v1293
      %4771 = vmatmul.mubr.bf16.gmra.mrb[0].mxu0 %v1290
      %v4772 = vpop.f32.mrb[0].mxu0
      %v4773 = vadd.f32 %v4580, %v4772
      %v4774 = vpop.f32.mrb[0].mxu0
      %v4775 = vadd.f32 %v4582, %v4774
      %v4776 = vpop.f32.mrb[0].mxu0
      %v4777 = vadd.f32 %v4584, %v4776
      %v4778 = vpop.f32.mrb[0].mxu0
      %v4779 = vadd.f32 %v4586, %v4778
      %4780 = vmatprep.mubr.bf16.mxu0 %v1311
      %4781 = vmatmul.mubr.bf16.gmra.mrb[0].mxu0 %v1308
      %v4782 = vpop.f32.mrb[0].mxu0
      %v4783 = vadd.f32 %v4590, %v4782
      %v4784 = vpop.f32.mrb[0].mxu0
      %v4785 = vadd.f32 %v4592, %v4784
      %v4786 = vpop.f32.mrb[0].mxu0
      %v4787 = vadd.f32 %v4594, %v4786
      %v4788 = vpop.f32.mrb[0].mxu0
      %v4789 = vadd.f32 %v4596, %v4788
      %4790 = vmatprep.mubr.bf16.mxu0 %v1317
      %4791 = vmatmul.mubr.bf16.gmra.mrb[0].mxu0 %v1314
      %v4792 = vpop.f32.mrb[0].mxu0
      %v4793 = vadd.f32 %v4600, %v4792
      %v4794 = vpop.f32.mrb[0].mxu0
      %v4795 = vadd.f32 %v4602, %v4794
      %v4796 = vpop.f32.mrb[0].mxu0
      %v4797 = vadd.f32 %v4604, %v4796
      %v4798 = vpop.f32.mrb[0].mxu0
      %v4799 = vadd.f32 %v4606, %v4798
      %4800 = vmatprep.mubr.bf16.mxu0 %v1323
      %4801 = vmatmul.mubr.bf16.gmra.mrb[0].mxu0 %v1320
      %v4802 = vpop.f32.mrb[0].mxu0
      %v4803 = vadd.f32 %v4610, %v4802
      %v4804 = vpop.f32.mrb[0].mxu0
      %v4805 = vadd.f32 %v4612, %v4804
      %v4806 = vpop.f32.mrb[0].mxu0
      %v4807 = vadd.f32 %v4614, %v4806
      %v4808 = vpop.f32.mrb[0].mxu0
      %v4809 = vadd.f32 %v4616, %v4808
      %4810 = vmatprep.mubr.bf16.mxu0 %v1329
      %4811 = vmatmul.mubr.bf16.gmra.mrb[0].mxu0 %v1326
      %v4812 = vpop.f32.mrb[0].mxu0
      %v4813 = vadd.f32 %v4620, %v4812
      %v4814 = vpop.f32.mrb[0].mxu0
      %v4815 = vadd.f32 %v4622, %v4814
      %v4816 = vpop.f32.mrb[0].mxu0
      %v4817 = vadd.f32 %v4624, %v4816
      %v4818 = vpop.f32.mrb[0].mxu0
      %v4819 = vadd.f32 %v4626, %v4818
      %4820 = vmatprep.mubr.bf16.mxu0 %v1335
      %4821 = vmatmul.mubr.bf16.gmra.mrb[0].mxu0 %v1332
      %v4822 = vpop.f32.mrb[0].mxu0
      %v4823 = vadd.f32 %v4630, %v4822
      %v4824 = vpop.f32.mrb[0].mxu0
      %v4825 = vadd.f32 %v4632, %v4824
      %v4826 = vpop.f32.mrb[0].mxu0
      %v4827 = vadd.f32 %v4634, %v4826
      %v4828 = vpop.f32.mrb[0].mxu0
      %v4829 = vadd.f32 %v4636, %v4828
      %4830 = vmatprep.mubr.bf16.mxu0 %v1341
      %4831 = vmatmul.mubr.bf16.gmra.mrb[0].mxu0 %v1338
      %v4832 = vpop.f32.mrb[0].mxu0
      %v4833 = vadd.f32 %v4640, %v4832
      %v4834 = vpop.f32.mrb[0].mxu0
      %v4835 = vadd.f32 %v4642, %v4834
      %v4836 = vpop.f32.mrb[0].mxu0
      %v4837 = vadd.f32 %v4644, %v4836
      %v4838 = vpop.f32.mrb[0].mxu0
      %v4839 = vadd.f32 %v4646, %v4838
      %4840 = vmatprep.mubr.bf16.mxu0 %v1347
      %4841 = vmatmul.mubr.bf16.gmra.mrb[0].mxu0 %v1344
      %v4842 = vpop.f32.mrb[0].mxu0
      %v4843 = vadd.f32 %v4650, %v4842
      %v4844 = vpop.f32.mrb[0].mxu0
      %v4845 = vadd.f32 %v4652, %v4844
      %v4846 = vpop.f32.mrb[0].mxu0
      %v4847 = vadd.f32 %v4654, %v4846
      %v4848 = vpop.f32.mrb[0].mxu0
      %v4849 = vadd.f32 %v4656, %v4848
      %4850 = vmatprep.mubr.bf16.mxu0 %v1353
      %4851 = vmatmul.mubr.bf16.gmra.mrb[0].mxu0 %v1350
      %v4852 = vpop.f32.mrb[0].mxu0
      %v4853 = vadd.f32 %v4660, %v4852
      %v4854 = vpop.f32.mrb[0].mxu0
      %v4855 = vadd.f32 %v4662, %v4854
      %v4856 = vpop.f32.mrb[0].mxu0
      %v4857 = vadd.f32 %v4664, %v4856
      %v4858 = vpop.f32.mrb[0].mxu0
      %v4859 = vadd.f32 %v4666, %v4858
      %4860 = vdwg.mxu0
      %v4861 = vadd.f32 %v3547, %v4703
      %v4862 = vadd.f32 %v3549, %v4705
      %v4863 = vadd.f32 %v3551, %v4707
      %v4864 = vadd.f32 %v3553, %v4709
      %v4865 = vadd.f32 %v3557, %v4713
      %v4866 = vadd.f32 %v3559, %v4715
      %v4867 = vadd.f32 %v3561, %v4717
      %v4868 = vadd.f32 %v3563, %v4719
      %v4869 = vadd.f32 %v3567, %v4723
      %v4870 = vadd.f32 %v3569, %v4725
      %v4871 = vadd.f32 %v3571, %v4727
      %v4872 = vadd.f32 %v3573, %v4729
      %v4873 = vadd.f32 %v3577, %v4733
      %v4874 = vadd.f32 %v3579, %v4735
      %v4875 = vadd.f32 %v3581, %v4737
      %v4876 = vadd.f32 %v3583, %v4739
      %v4877 = vadd.f32 %v3587, %v4743
      %v4878 = vadd.f32 %v3589, %v4745
      %v4879 = vadd.f32 %v3591, %v4747
      %v4880 = vadd.f32 %v3593, %v4749
      %v4881 = vadd.f32 %v3597, %v4753
      %v4882 = vadd.f32 %v3599, %v4755
      %v4883 = vadd.f32 %v3601, %v4757
      %v4884 = vadd.f32 %v3603, %v4759
      %v4885 = vadd.f32 %v3607, %v4763
      %v4886 = vadd.f32 %v3609, %v4765
      %v4887 = vadd.f32 %v3611, %v4767
      %v4888 = vadd.f32 %v3613, %v4769
      %v4889 = vadd.f32 %v3617, %v4773
      %v4890 = vadd.f32 %v3619, %v4775
      %v4891 = vadd.f32 %v3621, %v4777
      %v4892 = vadd.f32 %v3623, %v4779
      %v4893 = vadd.f32 %v3627, %v4783
      %v4894 = vadd.f32 %v3629, %v4785
      %v4895 = vadd.f32 %v3631, %v4787
      %v4896 = vadd.f32 %v3633, %v4789
      %v4897 = vadd.f32 %v3637, %v4793
      %v4898 = vadd.f32 %v3639, %v4795
      %v4899 = vadd.f32 %v3641, %v4797
      %v4900 = vadd.f32 %v3643, %v4799
      %v4901 = vadd.f32 %v3647, %v4803
      %v4902 = vadd.f32 %v3649, %v4805
      %v4903 = vadd.f32 %v3651, %v4807
      %v4904 = vadd.f32 %v3653, %v4809
      %v4905 = vadd.f32 %v3657, %v4813
      %v4906 = vadd.f32 %v3659, %v4815
      %v4907 = vadd.f32 %v3661, %v4817
      %v4908 = vadd.f32 %v3663, %v4819
      %v4909 = vadd.f32 %v3667, %v4823
      %v4910 = vadd.f32 %v3669, %v4825
      %v4911 = vadd.f32 %v3671, %v4827
      %v4912 = vadd.f32 %v3673, %v4829
      %v4913 = vadd.f32 %v3677, %v4833
      %v4914 = vadd.f32 %v3679, %v4835
      %v4915 = vadd.f32 %v3681, %v4837
      %v4916 = vadd.f32 %v3683, %v4839
      %v4917 = vadd.f32 %v3687, %v4843
      %v4918 = vadd.f32 %v3689, %v4845
      %v4919 = vadd.f32 %v3691, %v4847
      %v4920 = vadd.f32 %v3693, %v4849
      %v4921 = vadd.f32 %v3697, %v4853
      %v4922 = vadd.f32 %v3699, %v4855
      %v4923 = vadd.f32 %v3701, %v4857
      %v4924 = vadd.f32 %v3703, %v4859
      %v4925 = vlaneseq
      %v4926 = vshrl.u32 %v4925, 7
      %v4927 = vadd.s32 %v4926, 8
      %vm4928 = vcmp.lt.s32.totalorder %v4926, 8
      %vm4929 = vcmp.lt.s32.totalorder %v4927, 8
      %v4930 = vsel %vm4928, 1, 0
      %v4931 = vsel %vm4929, 1, 0
      %v4932 = vcvt.s32.f32 %v4930
      %v4933 = vcvt.s32.f32 %v4931
      %v4934 = vmul.f32 %v4861, %v4932
      %v4935 = vmul.f32 %v4862, %v4932
      %v4936 = vmul.f32 %v4863, %v4933
      %v4937 = vmul.f32 %v4864, %v4933
      %v4938 = vmul.f32 %v4865, %v4932
      %v4939 = vmul.f32 %v4866, %v4932
      %v4940 = vmul.f32 %v4867, %v4933
      %v4941 = vmul.f32 %v4868, %v4933
      %v4942 = vmul.f32 %v4869, %v4932
      %v4943 = vmul.f32 %v4870, %v4932
      %v4944 = vmul.f32 %v4871, %v4933
      %v4945 = vmul.f32 %v4872, %v4933
      %v4946 = vmul.f32 %v4873, %v4932
      %v4947 = vmul.f32 %v4874, %v4932
      %v4948 = vmul.f32 %v4875, %v4933
      %v4949 = vmul.f32 %v4876, %v4933
      %v4950 = vmul.f32 %v4877, %v4932
      %v4951 = vmul.f32 %v4878, %v4932
      %v4952 = vmul.f32 %v4879, %v4933
      %v4953 = vmul.f32 %v4880, %v4933
      %v4954 = vmul.f32 %v4881, %v4932
      %v4955 = vmul.f32 %v4882, %v4932
      %v4956 = vmul.f32 %v4883, %v4933
      %v4957 = vmul.f32 %v4884, %v4933
      %v4958 = vmul.f32 %v4885, %v4932
      %v4959 = vmul.f32 %v4886, %v4932
      %v4960 = vmul.f32 %v4887, %v4933
      %v4961 = vmul.f32 %v4888, %v4933
      %v4962 = vmul.f32 %v4889, %v4932
      %v4963 = vmul.f32 %v4890, %v4932
      %v4964 = vmul.f32 %v4891, %v4933
      %v4965 = vmul.f32 %v4892, %v4933
      %v4966 = vmul.f32 %v4893, %v4932
      %v4967 = vmul.f32 %v4894, %v4932
      %v4968 = vmul.f32 %v4895, %v4933
      %v4969 = vmul.f32 %v4896, %v4933
      %v4970 = vmul.f32 %v4897, %v4932
      %v4971 = vmul.f32 %v4898, %v4932
      %v4972 = vmul.f32 %v4899, %v4933
      %v4973 = vmul.f32 %v4900, %v4933
      %v4974 = vmul.f32 %v4901, %v4932
      %v4975 = vmul.f32 %v4902, %v4932
      %v4976 = vmul.f32 %v4903, %v4933
      %v4977 = vmul.f32 %v4904, %v4933
      %v4978 = vmul.f32 %v4905, %v4932
      %v4979 = vmul.f32 %v4906, %v4932
      %v4980 = vmul.f32 %v4907, %v4933
      %v4981 = vmul.f32 %v4908, %v4933
      %v4982 = vmul.f32 %v4909, %v4932
      %v4983 = vmul.f32 %v4910, %v4932
      %v4984 = vmul.f32 %v4911, %v4933
      %v4985 = vmul.f32 %v4912, %v4933
      %v4986 = vmul.f32 %v4913, %v4932
      %v4987 = vmul.f32 %v4914, %v4932
      %v4988 = vmul.f32 %v4915, %v4933
      %v4989 = vmul.f32 %v4916, %v4933
      %v4990 = vmul.f32 %v4917, %v4932
      %v4991 = vmul.f32 %v4918, %v4932
      %v4992 = vmul.f32 %v4919, %v4933
      %v4993 = vmul.f32 %v4920, %v4933
      %v4994 = vmul.f32 %v4921, %v4932
      %v4995 = vmul.f32 %v4922, %v4932
      %v4996 = vmul.f32 %v4923, %v4933
      %v4997 = vmul.f32 %v4924, %v4933
      %v4998 = vadd.f32 %v4934, %v4936
      %v4999 = vadd.f32 %v4998, %v4938
      %v5000 = vadd.f32 %v4999, %v4940
      %v5001 = vadd.f32 %v5000, %v4942
      %v5002 = vadd.f32 %v5001, %v4944
      %v5003 = vadd.f32 %v5002, %v4946
      %v5004 = vadd.f32 %v5003, %v4948
      %v5005 = vadd.f32 %v5004, %v4950
      %v5006 = vadd.f32 %v5005, %v4952
      %v5007 = vadd.f32 %v5006, %v4954
      %v5008 = vadd.f32 %v5007, %v4956
      %v5009 = vadd.f32 %v5008, %v4958
      %v5010 = vadd.f32 %v5009, %v4960
      %v5011 = vadd.f32 %v5010, %v4962
      %v5012 = vadd.f32 %v5011, %v4964
      %v5013 = vrot.slane %v5012, 4
      %v5014 = vadd.f32 %v5012, %v5013
      %v5015 = vrot.slane %v5014, 2
      %v5016 = vadd.f32 %v5014, %v5015
      %v5017 = vrot.slane %v5016, 1
      %v5018 = vadd.f32 %v5016, %v5017
      %v5019 = vadd.f32 %v4935, %v4937
      %v5020 = vadd.f32 %v5019, %v4939
      %v5021 = vadd.f32 %v5020, %v4941
      %v5022 = vadd.f32 %v5021, %v4943
      %v5023 = vadd.f32 %v5022, %v4945
      %v5024 = vadd.f32 %v5023, %v4947
      %v5025 = vadd.f32 %v5024, %v4949
      %v5026 = vadd.f32 %v5025, %v4951
      %v5027 = vadd.f32 %v5026, %v4953
      %v5028 = vadd.f32 %v5027, %v4955
      %v5029 = vadd.f32 %v5028, %v4957
      %v5030 = vadd.f32 %v5029, %v4959
      %v5031 = vadd.f32 %v5030, %v4961
      %v5032 = vadd.f32 %v5031, %v4963
      %v5033 = vadd.f32 %v5032, %v4965
      %v5034 = vrot.slane %v5033, 4
      %v5035 = vadd.f32 %v5033, %v5034
      %v5036 = vrot.slane %v5035, 2
      %v5037 = vadd.f32 %v5035, %v5036
      %v5038 = vrot.slane %v5037, 1
      %v5039 = vadd.f32 %v5037, %v5038
      %v5040 = vadd.f32 %v4966, %v4968
      %v5041 = vadd.f32 %v5040, %v4970
      %v5042 = vadd.f32 %v5041, %v4972
      %v5043 = vadd.f32 %v5042, %v4974
      %v5044 = vadd.f32 %v5043, %v4976
      %v5045 = vadd.f32 %v5044, %v4978
      %v5046 = vadd.f32 %v5045, %v4980
      %v5047 = vadd.f32 %v5046, %v4982
      %v5048 = vadd.f32 %v5047, %v4984
      %v5049 = vadd.f32 %v5048, %v4986
      %v5050 = vadd.f32 %v5049, %v4988
      %v5051 = vadd.f32 %v5050, %v4990
      %v5052 = vadd.f32 %v5051, %v4992
      %v5053 = vadd.f32 %v5052, %v4994
      %v5054 = vadd.f32 %v5053, %v4996
      %v5055 = vrot.slane %v5054, 4
      %v5056 = vadd.f32 %v5054, %v5055
      %v5057 = vrot.slane %v5056, 2
      %v5058 = vadd.f32 %v5056, %v5057
      %v5059 = vrot.slane %v5058, 1
      %v5060 = vadd.f32 %v5058, %v5059
      %v5061 = vadd.f32 %v4967, %v4969
      %v5062 = vadd.f32 %v5061, %v4971
      %v5063 = vadd.f32 %v5062, %v4973
      %v5064 = vadd.f32 %v5063, %v4975
      %v5065 = vadd.f32 %v5064, %v4977
      %v5066 = vadd.f32 %v5065, %v4979
      %v5067 = vadd.f32 %v5066, %v4981
      %v5068 = vadd.f32 %v5067, %v4983
      %v5069 = vadd.f32 %v5068, %v4985
      %v5070 = vadd.f32 %v5069, %v4987
      %v5071 = vadd.f32 %v5070, %v4989
      %v5072 = vadd.f32 %v5071, %v4991
      %v5073 = vadd.f32 %v5072, %v4993
      %v5074 = vadd.f32 %v5073, %v4995
      %v5075 = vadd.f32 %v5074, %v4997
      %v5076 = vrot.slane %v5075, 4
      %v5077 = vadd.f32 %v5075, %v5076
      %v5078 = vrot.slane %v5077, 2
      %v5079 = vadd.f32 %v5077, %v5078
      %v5080 = vrot.slane %v5079, 1
      %v5081 = vadd.f32 %v5079, %v5080
      %v5082 = vmul.f32 %v4934, %v4934
      %v5083 = vmul.f32 %v4935, %v4935
      %v5084 = vmul.f32 %v4936, %v4936
      %v5085 = vmul.f32 %v4937, %v4937
      %v5086 = vmul.f32 %v4938, %v4938
      %v5087 = vmul.f32 %v4939, %v4939
      %v5088 = vmul.f32 %v4940, %v4940
      %v5089 = vmul.f32 %v4941, %v4941
      %v5090 = vmul.f32 %v4942, %v4942
      %v5091 = vmul.f32 %v4943, %v4943
      %v5092 = vmul.f32 %v4944, %v4944
      %v5093 = vmul.f32 %v4945, %v4945
      %v5094 = vmul.f32 %v4946, %v4946
      %v5095 = vmul.f32 %v4947, %v4947
      %v5096 = vmul.f32 %v4948, %v4948
      %v5097 = vmul.f32 %v4949, %v4949
      %v5098 = vmul.f32 %v4950, %v4950
      %v5099 = vmul.f32 %v4951, %v4951
      %v5100 = vmul.f32 %v4952, %v4952
      %v5101 = vmul.f32 %v4953, %v4953
      %v5102 = vmul.f32 %v4954, %v4954
      %v5103 = vmul.f32 %v4955, %v4955
      %v5104 = vmul.f32 %v4956, %v4956
      %v5105 = vmul.f32 %v4957, %v4957
      %v5106 = vmul.f32 %v4958, %v4958
      %v5107 = vmul.f32 %v4959, %v4959
      %v5108 = vmul.f32 %v4960, %v4960
      %v5109 = vmul.f32 %v4961, %v4961
      %v5110 = vmul.f32 %v4962, %v4962
      %v5111 = vmul.f32 %v4963, %v4963
      %v5112 = vmul.f32 %v4964, %v4964
      %v5113 = vmul.f32 %v4965, %v4965
      %v5114 = vmul.f32 %v4966, %v4966
      %v5115 = vmul.f32 %v4967, %v4967
      %v5116 = vmul.f32 %v4968, %v4968
      %v5117 = vmul.f32 %v4969, %v4969
      %v5118 = vmul.f32 %v4970, %v4970
      %v5119 = vmul.f32 %v4971, %v4971
      %v5120 = vmul.f32 %v4972, %v4972
      %v5121 = vmul.f32 %v4973, %v4973
      %v5122 = vmul.f32 %v4974, %v4974
      %v5123 = vmul.f32 %v4975, %v4975
      %v5124 = vmul.f32 %v4976, %v4976
      %v5125 = vmul.f32 %v4977, %v4977
      %v5126 = vmul.f32 %v4978, %v4978
      %v5127 = vmul.f32 %v4979, %v4979
      %v5128 = vmul.f32 %v4980, %v4980
      %v5129 = vmul.f32 %v4981, %v4981
      %v5130 = vmul.f32 %v4982, %v4982
      %v5131 = vmul.f32 %v4983, %v4983
      %v5132 = vmul.f32 %v4984, %v4984
      %v5133 = vmul.f32 %v4985, %v4985
      %v5134 = vmul.f32 %v4986, %v4986
      %v5135 = vmul.f32 %v4987, %v4987
      %v5136 = vmul.f32 %v4988, %v4988
      %v5137 = vmul.f32 %v4989, %v4989
      %v5138 = vmul.f32 %v4990, %v4990
      %v5139 = vmul.f32 %v4991, %v4991
      %v5140 = vmul.f32 %v4992, %v4992
      %v5141 = vmul.f32 %v4993, %v4993
      %v5142 = vmul.f32 %v4994, %v4994
      %v5143 = vmul.f32 %v4995, %v4995
      %v5144 = vmul.f32 %v4996, %v4996
      %v5145 = vmul.f32 %v4997, %v4997
      %v5146 = vadd.f32 %v5082, %v5084
      %v5147 = vadd.f32 %v5146, %v5086
      %v5148 = vadd.f32 %v5147, %v5088
      %v5149 = vadd.f32 %v5148, %v5090
      %v5150 = vadd.f32 %v5149, %v5092
      %v5151 = vadd.f32 %v5150, %v5094
      %v5152 = vadd.f32 %v5151, %v5096
      %v5153 = vadd.f32 %v5152, %v5098
      %v5154 = vadd.f32 %v5153, %v5100
      %v5155 = vadd.f32 %v5154, %v5102
      %v5156 = vadd.f32 %v5155, %v5104
      %v5157 = vadd.f32 %v5156, %v5106
      %v5158 = vadd.f32 %v5157, %v5108
      %v5159 = vadd.f32 %v5158, %v5110
      %v5160 = vadd.f32 %v5159, %v5112
      %v5161 = vrot.slane %v5160, 4
      %v5162 = vadd.f32 %v5160, %v5161
      %v5163 = vrot.slane %v5162, 2
      %v5164 = vadd.f32 %v5162, %v5163
      %v5165 = vrot.slane %v5164, 1
      %v5166 = vadd.f32 %v5164, %v5165
      %v5167 = vadd.f32 %v5083, %v5085
      %v5168 = vadd.f32 %v5167, %v5087
      %v5169 = vadd.f32 %v5168, %v5089
      %v5170 = vadd.f32 %v5169, %v5091
      %v5171 = vadd.f32 %v5170, %v5093
      %v5172 = vadd.f32 %v5171, %v5095
      %v5173 = vadd.f32 %v5172, %v5097
      %v5174 = vadd.f32 %v5173, %v5099
      %v5175 = vadd.f32 %v5174, %v5101
      %v5176 = vadd.f32 %v5175, %v5103
      %v5177 = vadd.f32 %v5176, %v5105
      %v5178 = vadd.f32 %v5177, %v5107
      %v5179 = vadd.f32 %v5178, %v5109
      %v5180 = vadd.f32 %v5179, %v5111
      %v5181 = vadd.f32 %v5180, %v5113
      %v5182 = vrot.slane %v5181, 4
      %v5183 = vadd.f32 %v5181, %v5182
      %v5184 = vrot.slane %v5183, 2
      %v5185 = vadd.f32 %v5183, %v5184
      %v5186 = vrot.slane %v5185, 1
      %v5187 = vadd.f32 %v5185, %v5186
      %v5188 = vadd.f32 %v5114, %v5116
      %v5189 = vadd.f32 %v5188, %v5118
      %v5190 = vadd.f32 %v5189, %v5120
      %v5191 = vadd.f32 %v5190, %v5122
      %v5192 = vadd.f32 %v5191, %v5124
      %v5193 = vadd.f32 %v5192, %v5126
      %v5194 = vadd.f32 %v5193, %v5128
      %v5195 = vadd.f32 %v5194, %v5130
      %v5196 = vadd.f32 %v5195, %v5132
      %v5197 = vadd.f32 %v5196, %v5134
      %v5198 = vadd.f32 %v5197, %v5136
      %v5199 = vadd.f32 %v5198, %v5138
      %v5200 = vadd.f32 %v5199, %v5140
      %v5201 = vadd.f32 %v5200, %v5142
      %v5202 = vadd.f32 %v5201, %v5144
      %v5203 = vrot.slane %v5202, 4
      %v5204 = vadd.f32 %v5202, %v5203
      %v5205 = vrot.slane %v5204, 2
      %v5206 = vadd.f32 %v5204, %v5205
      %v5207 = vrot.slane %v5206, 1
      %v5208 = vadd.f32 %v5206, %v5207
      %v5209 = vadd.f32 %v5115, %v5117
      %v5210 = vadd.f32 %v5209, %v5119
      %v5211 = vadd.f32 %v5210, %v5121
      %v5212 = vadd.f32 %v5211, %v5123
      %v5213 = vadd.f32 %v5212, %v5125
      %v5214 = vadd.f32 %v5213, %v5127
      %v5215 = vadd.f32 %v5214, %v5129
      %v5216 = vadd.f32 %v5215, %v5131
      %v5217 = vadd.f32 %v5216, %v5133
      %v5218 = vadd.f32 %v5217, %v5135
      %v5219 = vadd.f32 %v5218, %v5137
      %v5220 = vadd.f32 %v5219, %v5139
      %v5221 = vadd.f32 %v5220, %v5141
      %v5222 = vadd.f32 %v5221, %v5143
      %v5223 = vadd.f32 %v5222, %v5145
      %v5224 = vrot.slane %v5223, 4
      %v5225 = vadd.f32 %v5223, %v5224
      %v5226 = vrot.slane %v5225, 2
      %v5227 = vadd.f32 %v5225, %v5226
      %v5228 = vrot.slane %v5227, 1
      %v5229 = vadd.f32 %v5227, %v5228
      %v5230 = vmul.f32 %v5018, 0.015625
      %v5231 = vmul.f32 %v5039, 0.015625
      %v5232 = vmul.f32 %v5060, 0.015625
      %v5233 = vmul.f32 %v5081, 0.015625
      %v5234 = vmul.f32 %v5166, 0.015625
      %v5235 = vmul.f32 %v5187, 0.015625
      %v5236 = vmul.f32 %v5208, 0.015625
      %v5237 = vmul.f32 %v5229, 0.015625
      %v5238 = vmul.f32 %v5230, %v5230
      %v5239 = vmul.f32 %v5231, %v5231
      %v5240 = vmul.f32 %v5232, %v5232
      %v5241 = vmul.f32 %v5233, %v5233
      %v5242 = vsub.f32 %v5234, %v5238
      %v5243 = vsub.f32 %v5235, %v5239
      %v5244 = vsub.f32 %v5236, %v5240
      %v5245 = vsub.f32 %v5237, %v5241
      %v5246 = vmax.f32 %v5242, 0.0
      %v5247 = vmax.f32 %v5243, 0.0
      %v5248 = vmax.f32 %v5244, 0.0
      %v5249 = vmax.f32 %v5245, 0.0
      %v5250 = vsub.f32 %v4861, %v5230
      %v5251 = vsub.f32 %v4862, %v5231
      %v5252 = vsub.f32 %v4863, %v5230
      %v5253 = vsub.f32 %v4864, %v5231
      %v5254 = vsub.f32 %v4865, %v5230
      %v5255 = vsub.f32 %v4866, %v5231
      %v5256 = vsub.f32 %v4867, %v5230
      %v5257 = vsub.f32 %v4868, %v5231
      %v5258 = vsub.f32 %v4869, %v5230
      %v5259 = vsub.f32 %v4870, %v5231
      %v5260 = vsub.f32 %v4871, %v5230
      %v5261 = vsub.f32 %v4872, %v5231
      %v5262 = vsub.f32 %v4873, %v5230
      %v5263 = vsub.f32 %v4874, %v5231
      %v5264 = vsub.f32 %v4875, %v5230
      %v5265 = vsub.f32 %v4876, %v5231
      %v5266 = vsub.f32 %v4877, %v5230
      %v5267 = vsub.f32 %v4878, %v5231
      %v5268 = vsub.f32 %v4879, %v5230
      %v5269 = vsub.f32 %v4880, %v5231
      %v5270 = vsub.f32 %v4881, %v5230
      %v5271 = vsub.f32 %v4882, %v5231
      %v5272 = vsub.f32 %v4883, %v5230
      %v5273 = vsub.f32 %v4884, %v5231
      %v5274 = vsub.f32 %v4885, %v5230
      %v5275 = vsub.f32 %v4886, %v5231
      %v5276 = vsub.f32 %v4887, %v5230
      %v5277 = vsub.f32 %v4888, %v5231
      %v5278 = vsub.f32 %v4889, %v5230
      %v5279 = vsub.f32 %v4890, %v5231
      %v5280 = vsub.f32 %v4891, %v5230
      %v5281 = vsub.f32 %v4892, %v5231
      %v5282 = vsub.f32 %v4893, %v5232
      %v5283 = vsub.f32 %v4894, %v5233
      %v5284 = vsub.f32 %v4895, %v5232
      %v5285 = vsub.f32 %v4896, %v5233
      %v5286 = vsub.f32 %v4897, %v5232
      %v5287 = vsub.f32 %v4898, %v5233
      %v5288 = vsub.f32 %v4899, %v5232
      %v5289 = vsub.f32 %v4900, %v5233
      %v5290 = vsub.f32 %v4901, %v5232
      %v5291 = vsub.f32 %v4902, %v5233
      %v5292 = vsub.f32 %v4903, %v5232
      %v5293 = vsub.f32 %v4904, %v5233
      %v5294 = vsub.f32 %v4905, %v5232
      %v5295 = vsub.f32 %v4906, %v5233
      %v5296 = vsub.f32 %v4907, %v5232
      %v5297 = vsub.f32 %v4908, %v5233
      %v5298 = vsub.f32 %v4909, %v5232
      %v5299 = vsub.f32 %v4910, %v5233
      %v5300 = vsub.f32 %v4911, %v5232
      %v5301 = vsub.f32 %v4912, %v5233
      %v5302 = vsub.f32 %v4913, %v5232
      %v5303 = vsub.f32 %v4914, %v5233
      %v5304 = vsub.f32 %v4915, %v5232
      %v5305 = vsub.f32 %v4916, %v5233
      %v5306 = vsub.f32 %v4917, %v5232
      %v5307 = vsub.f32 %v4918, %v5233
      %v5308 = vsub.f32 %v4919, %v5232
      %v5309 = vsub.f32 %v4920, %v5233
      %v5310 = vsub.f32 %v4921, %v5232
      %v5311 = vsub.f32 %v4922, %v5233
      %v5312 = vsub.f32 %v4923, %v5232
      %v5313 = vsub.f32 %v4924, %v5233
      %v5314 = vadd.f32 %v5246, 1e-05
      %v5315 = vadd.f32 %v5247, 1e-05
      %v5316 = vadd.f32 %v5248, 1e-05
      %v5317 = vadd.f32 %v5249, 1e-05
      %v5318 = vrsqrt.pop %v5314
      %v5319 = vrsqrt.pop %v5315
      %v5320 = vrsqrt.pop %v5316
      %v5321 = vrsqrt.pop %v5317
      %v5322 = vmul.f32 %v5250, %v5318
      %v5323 = vmul.f32 %v5251, %v5319
      %v5324 = vmul.f32 %v5252, %v5318
      %v5325 = vmul.f32 %v5253, %v5319
      %v5326 = vmul.f32 %v5254, %v5318
      %v5327 = vmul.f32 %v5255, %v5319
      %v5328 = vmul.f32 %v5256, %v5318
      %v5329 = vmul.f32 %v5257, %v5319
      %v5330 = vmul.f32 %v5258, %v5318
      %v5331 = vmul.f32 %v5259, %v5319
      %v5332 = vmul.f32 %v5260, %v5318
      %v5333 = vmul.f32 %v5261, %v5319
      %v5334 = vmul.f32 %v5262, %v5318
      %v5335 = vmul.f32 %v5263, %v5319
      %v5336 = vmul.f32 %v5264, %v5318
      %v5337 = vmul.f32 %v5265, %v5319
      %v5338 = vmul.f32 %v5266, %v5318
      %v5339 = vmul.f32 %v5267, %v5319
      %v5340 = vmul.f32 %v5268, %v5318
      %v5341 = vmul.f32 %v5269, %v5319
      %v5342 = vmul.f32 %v5270, %v5318
      %v5343 = vmul.f32 %v5271, %v5319
      %v5344 = vmul.f32 %v5272, %v5318
      %v5345 = vmul.f32 %v5273, %v5319
      %v5346 = vmul.f32 %v5274, %v5318
      %v5347 = vmul.f32 %v5275, %v5319
      %v5348 = vmul.f32 %v5276, %v5318
      %v5349 = vmul.f32 %v5277, %v5319
      %v5350 = vmul.f32 %v5278, %v5318
      %v5351 = vmul.f32 %v5279, %v5319
      %v5352 = vmul.f32 %v5280, %v5318
      %v5353 = vmul.f32 %v5281, %v5319
      %v5354 = vmul.f32 %v5282, %v5320
      %v5355 = vmul.f32 %v5283, %v5321
      %v5356 = vmul.f32 %v5284, %v5320
      %v5357 = vmul.f32 %v5285, %v5321
      %v5358 = vmul.f32 %v5286, %v5320
      %v5359 = vmul.f32 %v5287, %v5321
      %v5360 = vmul.f32 %v5288, %v5320
      %v5361 = vmul.f32 %v5289, %v5321
      %v5362 = vmul.f32 %v5290, %v5320
      %v5363 = vmul.f32 %v5291, %v5321
      %v5364 = vmul.f32 %v5292, %v5320
      %v5365 = vmul.f32 %v5293, %v5321
      %v5366 = vmul.f32 %v5294, %v5320
      %v5367 = vmul.f32 %v5295, %v5321
      %v5368 = vmul.f32 %v5296, %v5320
      %v5369 = vmul.f32 %v5297, %v5321
      %v5370 = vmul.f32 %v5298, %v5320
      %v5371 = vmul.f32 %v5299, %v5321
      %v5372 = vmul.f32 %v5300, %v5320
      %v5373 = vmul.f32 %v5301, %v5321
      %v5374 = vmul.f32 %v5302, %v5320
      %v5375 = vmul.f32 %v5303, %v5321
      %v5376 = vmul.f32 %v5304, %v5320
      %v5377 = vmul.f32 %v5305, %v5321
      %v5378 = vmul.f32 %v5306, %v5320
      %v5379 = vmul.f32 %v5307, %v5321
      %v5380 = vmul.f32 %v5308, %v5320
      %v5381 = vmul.f32 %v5309, %v5321
      %v5382 = vmul.f32 %v5310, %v5320
      %v5383 = vmul.f32 %v5311, %v5321
      %v5384 = vmul.f32 %v5312, %v5320
      %v5385 = vmul.f32 %v5313, %v5321
      %v5386 = vmax.f32 %v5322, 0.0
      %v5387 = vmax.f32 %v5323, 0.0
      %v5388 = vmax.f32 %v5324, 0.0
      %v5389 = vmax.f32 %v5325, 0.0
      %v5390 = vmax.f32 %v5326, 0.0
      %v5391 = vmax.f32 %v5327, 0.0
      %v5392 = vmax.f32 %v5328, 0.0
      %v5393 = vmax.f32 %v5329, 0.0
      %v5394 = vmax.f32 %v5330, 0.0
      %v5395 = vmax.f32 %v5331, 0.0
      %v5396 = vmax.f32 %v5332, 0.0
      %v5397 = vmax.f32 %v5333, 0.0
      %v5398 = vmax.f32 %v5334, 0.0
      %v5399 = vmax.f32 %v5335, 0.0
      %v5400 = vmax.f32 %v5336, 0.0
      %v5401 = vmax.f32 %v5337, 0.0
      %v5402 = vmax.f32 %v5338, 0.0
      %v5403 = vmax.f32 %v5339, 0.0
      %v5404 = vmax.f32 %v5340, 0.0
      %v5405 = vmax.f32 %v5341, 0.0
      %v5406 = vmax.f32 %v5342, 0.0
      %v5407 = vmax.f32 %v5343, 0.0
      %v5408 = vmax.f32 %v5344, 0.0
      %v5409 = vmax.f32 %v5345, 0.0
      %v5410 = vmax.f32 %v5346, 0.0
      %v5411 = vmax.f32 %v5347, 0.0
      %v5412 = vmax.f32 %v5348, 0.0
      %v5413 = vmax.f32 %v5349, 0.0
      %v5414 = vmax.f32 %v5350, 0.0
      %v5415 = vmax.f32 %v5351, 0.0
      %v5416 = vmax.f32 %v5352, 0.0
      %v5417 = vmax.f32 %v5353, 0.0
      %v5418 = vmax.f32 %v5354, 0.0
      %v5419 = vmax.f32 %v5355, 0.0
      %v5420 = vmax.f32 %v5356, 0.0
      %v5421 = vmax.f32 %v5357, 0.0
      %v5422 = vmax.f32 %v5358, 0.0
      %v5423 = vmax.f32 %v5359, 0.0
      %v5424 = vmax.f32 %v5360, 0.0
      %v5425 = vmax.f32 %v5361, 0.0
      %v5426 = vmax.f32 %v5362, 0.0
      %v5427 = vmax.f32 %v5363, 0.0
      %v5428 = vmax.f32 %v5364, 0.0
      %v5429 = vmax.f32 %v5365, 0.0
      %v5430 = vmax.f32 %v5366, 0.0
      %v5431 = vmax.f32 %v5367, 0.0
      %v5432 = vmax.f32 %v5368, 0.0
      %v5433 = vmax.f32 %v5369, 0.0
      %v5434 = vmax.f32 %v5370, 0.0
      %v5435 = vmax.f32 %v5371, 0.0
      %v5436 = vmax.f32 %v5372, 0.0
      %v5437 = vmax.f32 %v5373, 0.0
      %v5438 = vmax.f32 %v5374, 0.0
      %v5439 = vmax.f32 %v5375, 0.0
      %v5440 = vmax.f32 %v5376, 0.0
      %v5441 = vmax.f32 %v5377, 0.0
      %v5442 = vmax.f32 %v5378, 0.0
      %v5443 = vmax.f32 %v5379, 0.0
      %v5444 = vmax.f32 %v5380, 0.0
      %v5445 = vmax.f32 %v5381, 0.0
      %v5446 = vmax.f32 %v5382, 0.0
      %v5447 = vmax.f32 %v5383, 0.0
      %v5448 = vmax.f32 %v5384, 0.0
      %v5449 = vmax.f32 %v5385, 0.0
      %s5450 = scalar_lea.vmem %s143, 48
      %v5451 = vld [vmem:[%s5450] sm:$0xfe]
      %v5452 = vld [vmem:[%s5450 + $0x8] sm:$0xfe]
      %v5453 = vld [vmem:[%s5450 + $0x10] sm:$0xff]
      %v5454 = vld [vmem:[%s5450 + $0x18] sm:$0xff]
      %v5455 = vld [vmem:[%s5450 + $0x20] sm:$0x1]
      %v5456 = vld [vmem:[%s5450 + $0x28] sm:$0x1]
      %v5457 = vld [vmem:[%s5450 + $0x30] sm:$0xfe]
      %v5458 = vld [vmem:[%s5450 + $0x38] sm:$0xfe]
      %v5459 = vld [vmem:[%s5450 + $0x40] sm:$0xff]
      %v5460 = vld [vmem:[%s5450 + $0x48] sm:$0xff]
      %v5461 = vld [vmem:[%s5450 + $0x50] sm:$0x1]
      %v5462 = vld [vmem:[%s5450 + $0x58] sm:$0x1]
      %v5463 = vld [vmem:[%s5450 + $0x60] sm:$0xfe]
      %v5464 = vld [vmem:[%s5450 + $0x68] sm:$0xfe]
      %v5465 = vld [vmem:[%s5450 + $0x70] sm:$0xff]
      %v5466 = vld [vmem:[%s5450 + $0x78] sm:$0xff]
      %v5467 = vld [vmem:[%s5450 + $0x80] sm:$0x1]
      %v5468 = vld [vmem:[%s5450 + $0x88] sm:$0x1]
      %v5469 = vld [vmem:[%s5450 + $0x90] sm:$0xfe]
      %v5470 = vld [vmem:[%s5450 + $0x98] sm:$0xfe]
      %v5471 = vld [vmem:[%s5450 + $0xa0] sm:$0xff]
      %v5472 = vld [vmem:[%s5450 + $0xa8] sm:$0xff]
      %v5473 = vld [vmem:[%s5450 + $0xb0] sm:$0x1]
      %v5474 = vld [vmem:[%s5450 + $0xb8] sm:$0x1]
      %v5475 = vld [vmem:[%s5450 + $0xc0] sm:$0xfe]
      %v5476 = vld [vmem:[%s5450 + $0xc8] sm:$0xfe]
      %v5477 = vld [vmem:[%s5450 + $0xd0] sm:$0xff]
      %v5478 = vld [vmem:[%s5450 + $0xd8] sm:$0xff]
      %v5479 = vld [vmem:[%s5450 + $0xe0] sm:$0x1]
      %v5480 = vld [vmem:[%s5450 + $0xe8] sm:$0x1]
      %v5481 = vld [vmem:[%s5450 + $0xf0] sm:$0xfe]
      %v5482 = vld [vmem:[%s5450 + $0xf8] sm:$0xfe]
      %v5483 = vld [vmem:[%s5450 + $0x100] sm:$0xff]
      %v5484 = vld [vmem:[%s5450 + $0x108] sm:$0xff]
      %v5485 = vld [vmem:[%s5450 + $0x110] sm:$0x1]
      %v5486 = vld [vmem:[%s5450 + $0x118] sm:$0x1]
      %v5487 = vld [vmem:[%s5450 + $0x120] sm:$0xfe]
      %v5488 = vld [vmem:[%s5450 + $0x128] sm:$0xfe]
      %v5489 = vld [vmem:[%s5450 + $0x130] sm:$0xff]
      %v5490 = vld [vmem:[%s5450 + $0x138] sm:$0xff]
      %v5491 = vld [vmem:[%s5450 + $0x140] sm:$0x1]
      %v5492 = vld [vmem:[%s5450 + $0x148] sm:$0x1]
      %v5493 = vld [vmem:[%s5450 + $0x150] sm:$0xfe]
      %v5494 = vld [vmem:[%s5450 + $0x158] sm:$0xfe]
      %v5495 = vld [vmem:[%s5450 + $0x160] sm:$0xff]
      %v5496 = vld [vmem:[%s5450 + $0x168] sm:$0xff]
      %v5497 = vld [vmem:[%s5450 + $0x170] sm:$0x1]
      %v5498 = vld [vmem:[%s5450 + $0x178] sm:$0x1]
      %v5499 = vld [vmem:[%s5450 + $0x1e0] sm:$0xfe]
      %v5500 = vld [vmem:[%s5450 + $0x1e8] sm:$0xfe]
      %v5501 = vld [vmem:[%s5450 + $0x1f0] sm:$0xff]
      %v5502 = vld [vmem:[%s5450 + $0x1f8] sm:$0xff]
      %v5503 = vld [vmem:[%s5450 + $0x200] sm:$0x1]
      %v5504 = vld [vmem:[%s5450 + $0x208] sm:$0x1]
      %v5505 = vld [vmem:[%s5450 + $0x210] sm:$0xfe]
      %v5506 = vld [vmem:[%s5450 + $0x218] sm:$0xfe]
      %v5507 = vld [vmem:[%s5450 + $0x220] sm:$0xff]
      %v5508 = vld [vmem:[%s5450 + $0x228] sm:$0xff]
      %v5509 = vld [vmem:[%s5450 + $0x230] sm:$0x1]
      %v5510 = vld [vmem:[%s5450 + $0x238] sm:$0x1]
      %v5511 = vld [vmem:[%s5450 + $0x240] sm:$0xfe]
      %v5512 = vld [vmem:[%s5450 + $0x248] sm:$0xfe]
      %v5513 = vld [vmem:[%s5450 + $0x250] sm:$0xff]
      %v5514 = vld [vmem:[%s5450 + $0x258] sm:$0xff]
      %v5515 = vld [vmem:[%s5450 + $0x260] sm:$0x1]
      %v5516 = vld [vmem:[%s5450 + $0x268] sm:$0x1]
      %v5517 = vld [vmem:[%s5450 + $0x270] sm:$0xfe]
      %v5518 = vld [vmem:[%s5450 + $0x278] sm:$0xfe]
      %v5519 = vld [vmem:[%s5450 + $0x280] sm:$0xff]
      %v5520 = vld [vmem:[%s5450 + $0x288] sm:$0xff]
      %v5521 = vld [vmem:[%s5450 + $0x290] sm:$0x1]
      %v5522 = vld [vmem:[%s5450 + $0x298] sm:$0x1]
      %v5523 = vld [vmem:[%s5450 + $0x2a0] sm:$0xfe]
      %v5524 = vld [vmem:[%s5450 + $0x2a8] sm:$0xfe]
      %v5525 = vld [vmem:[%s5450 + $0x2b0] sm:$0xff]
      %v5526 = vld [vmem:[%s5450 + $0x2b8] sm:$0xff]
      %v5527 = vld [vmem:[%s5450 + $0x2c0] sm:$0x1]
      %v5528 = vld [vmem:[%s5450 + $0x2c8] sm:$0x1]
      %v5529 = vld [vmem:[%s5450 + $0x2d0] sm:$0xfe]
      %v5530 = vld [vmem:[%s5450 + $0x2d8] sm:$0xfe]
      %v5531 = vld [vmem:[%s5450 + $0x2e0] sm:$0xff]
      %v5532 = vld [vmem:[%s5450 + $0x2e8] sm:$0xff]
      %v5533 = vld [vmem:[%s5450 + $0x2f0] sm:$0x1]
      %v5534 = vld [vmem:[%s5450 + $0x2f8] sm:$0x1]
      %v5535 = vld [vmem:[%s5450 + $0x300] sm:$0xfe]
      %v5536 = vld [vmem:[%s5450 + $0x308] sm:$0xfe]
      %v5537 = vld [vmem:[%s5450 + $0x310] sm:$0xff]
      %v5538 = vld [vmem:[%s5450 + $0x318] sm:$0xff]
      %v5539 = vld [vmem:[%s5450 + $0x320] sm:$0x1]
      %v5540 = vld [vmem:[%s5450 + $0x328] sm:$0x1]
      %v5541 = vld [vmem:[%s5450 + $0x330] sm:$0xfe]
      %v5542 = vld [vmem:[%s5450 + $0x338] sm:$0xfe]
      %v5543 = vld [vmem:[%s5450 + $0x340] sm:$0xff]
      %v5544 = vld [vmem:[%s5450 + $0x348] sm:$0xff]
      %v5545 = vld [vmem:[%s5450 + $0x350] sm:$0x1]
      %v5546 = vld [vmem:[%s5450 + $0x358] sm:$0x1]
      %vm5611 = vcmask 1040384
      %v5612 = vrot.slane %v5386, 7
      %v5613 = vrot.slane %v5387, 7
      %v5614 = vrot.slane %v5388, 7
      %v5615 = vsel %vm5611, %v5612, %v5614
      %v5616 = vrot.slane %v5389, 7
      %v5617 = vsel %vm5611, %v5613, %v5616
      %v5618 = vrot.slane %v5390, 7
      %v5619 = vrot.slane %v5391, 7
      %v5620 = vrot.slane %v5392, 7
      %v5621 = vsel %vm5611, %v5618, %v5620
      %v5622 = vrot.slane %v5393, 7
      %v5623 = vsel %vm5611, %v5619, %v5622
      %v5624 = vrot.slane %v5394, 7
      %v5625 = vrot.slane %v5395, 7
      %v5626 = vrot.slane %v5396, 7
      %v5627 = vsel %vm5611, %v5624, %v5626
      %v5628 = vrot.slane %v5397, 7
      %v5629 = vsel %vm5611, %v5625, %v5628
      %v5630 = vrot.slane %v5398, 7
      %v5631 = vrot.slane %v5399, 7
      %v5632 = vrot.slane %v5400, 7
      %v5633 = vsel %vm5611, %v5630, %v5632
      %v5634 = vrot.slane %v5401, 7
      %v5635 = vsel %vm5611, %v5631, %v5634
      %v5636 = vrot.slane %v5402, 7
      %v5637 = vrot.slane %v5403, 7
      %v5638 = vrot.slane %v5404, 7
      %v5639 = vsel %vm5611, %v5636, %v5638
      %v5640 = vrot.slane %v5405, 7
      %v5641 = vsel %vm5611, %v5637, %v5640
      %v5642 = vrot.slane %v5406, 7
      %v5643 = vrot.slane %v5407, 7
      %v5644 = vrot.slane %v5408, 7
      %v5645 = vsel %vm5611, %v5642, %v5644
      %v5646 = vrot.slane %v5409, 7
      %v5647 = vsel %vm5611, %v5643, %v5646
      %v5648 = vrot.slane %v5410, 7
      %v5649 = vrot.slane %v5411, 7
      %v5650 = vrot.slane %v5412, 7
      %v5651 = vsel %vm5611, %v5648, %v5650
      %v5652 = vrot.slane %v5413, 7
      %v5653 = vsel %vm5611, %v5649, %v5652
      %v5654 = vrot.slane %v5414, 7
      %v5655 = vrot.slane %v5415, 7
      %v5656 = vrot.slane %v5416, 7
      %v5657 = vsel %vm5611, %v5654, %v5656
      %v5658 = vrot.slane %v5417, 7
      %v5659 = vsel %vm5611, %v5655, %v5658
      %v5660 = vrot.slane %v5418, 7
      %v5661 = vrot.slane %v5419, 7
      %v5662 = vrot.slane %v5420, 7
      %v5663 = vsel %vm5611, %v5660, %v5662
      %v5664 = vrot.slane %v5421, 7
      %v5665 = vsel %vm5611, %v5661, %v5664
      %v5666 = vrot.slane %v5422, 7
      %v5667 = vrot.slane %v5423, 7
      %v5668 = vrot.slane %v5424, 7
      %v5669 = vsel %vm5611, %v5666, %v5668
      %v5670 = vrot.slane %v5425, 7
      %v5671 = vsel %vm5611, %v5667, %v5670
      %v5672 = vrot.slane %v5426, 7
      %v5673 = vrot.slane %v5427, 7
      %v5674 = vrot.slane %v5428, 7
      %v5675 = vsel %vm5611, %v5672, %v5674
      %v5676 = vrot.slane %v5429, 7
      %v5677 = vsel %vm5611, %v5673, %v5676
      %v5678 = vrot.slane %v5430, 7
      %v5679 = vrot.slane %v5431, 7
      %v5680 = vrot.slane %v5432, 7
      %v5681 = vsel %vm5611, %v5678, %v5680
      %v5682 = vrot.slane %v5433, 7
      %v5683 = vsel %vm5611, %v5679, %v5682
      %v5684 = vrot.slane %v5434, 7
      %v5685 = vrot.slane %v5435, 7
      %v5686 = vrot.slane %v5436, 7
      %v5687 = vsel %vm5611, %v5684, %v5686
      %v5688 = vrot.slane %v5437, 7
      %v5689 = vsel %vm5611, %v5685, %v5688
      %v5690 = vrot.slane %v5438, 7
      %v5691 = vrot.slane %v5439, 7
      %v5692 = vrot.slane %v5440, 7
      %v5693 = vsel %vm5611, %v5690, %v5692
      %v5694 = vrot.slane %v5441, 7
      %v5695 = vsel %vm5611, %v5691, %v5694
      %v5696 = vrot.slane %v5442, 7
      %v5697 = vrot.slane %v5443, 7
      %v5698 = vrot.slane %v5444, 7
      %v5699 = vsel %vm5611, %v5696, %v5698
      %v5700 = vrot.slane %v5445, 7
      %v5701 = vsel %vm5611, %v5697, %v5700
      %v5702 = vrot.slane %v5446, 7
      %v5703 = vrot.slane %v5447, 7
      %v5704 = vrot.slane %v5448, 7
      %v5705 = vsel %vm5611, %v5702, %v5704
      %v5706 = vrot.slane %v5449, 7
      %v5707 = vsel %vm5611, %v5703, %v5706
      %v5804 = vadd.f32 %v5451, %v5612
      %v5805 = vadd.f32 %v5452, %v5613
      %v5806 = vadd.f32 %v5453, %v5615
      %v5807 = vadd.f32 %v5454, %v5617
      %v5808 = vadd.f32 %v5455, %v5614
      %v5809 = vadd.f32 %v5456, %v5616
      %v5810 = vadd.f32 %v5457, %v5618
      %v5811 = vadd.f32 %v5458, %v5619
      %v5812 = vadd.f32 %v5459, %v5621
      %v5813 = vadd.f32 %v5460, %v5623
      %v5814 = vadd.f32 %v5461, %v5620
      %v5815 = vadd.f32 %v5462, %v5622
      %v5816 = vadd.f32 %v5463, %v5624
      %v5817 = vadd.f32 %v5464, %v5625
      %v5818 = vadd.f32 %v5465, %v5627
      %v5819 = vadd.f32 %v5466, %v5629
      %v5820 = vadd.f32 %v5467, %v5626
      %v5821 = vadd.f32 %v5468, %v5628
      %v5822 = vadd.f32 %v5469, %v5630
      %v5823 = vadd.f32 %v5470, %v5631
      %v5824 = vadd.f32 %v5471, %v5633
      %v5825 = vadd.f32 %v5472, %v5635
      %v5826 = vadd.f32 %v5473, %v5632
      %v5827 = vadd.f32 %v5474, %v5634
      %v5828 = vadd.f32 %v5475, %v5636
      %v5829 = vadd.f32 %v5476, %v5637
      %v5830 = vadd.f32 %v5477, %v5639
      %v5831 = vadd.f32 %v5478, %v5641
      %v5832 = vadd.f32 %v5479, %v5638
      %v5833 = vadd.f32 %v5480, %v5640
      %v5834 = vadd.f32 %v5481, %v5642
      %v5835 = vadd.f32 %v5482, %v5643
      %v5836 = vadd.f32 %v5483, %v5645
      %v5837 = vadd.f32 %v5484, %v5647
      %v5838 = vadd.f32 %v5485, %v5644
      %v5839 = vadd.f32 %v5486, %v5646
      %v5840 = vadd.f32 %v5487, %v5648
      %v5841 = vadd.f32 %v5488, %v5649
      %v5842 = vadd.f32 %v5489, %v5651
      %v5843 = vadd.f32 %v5490, %v5653
      %v5844 = vadd.f32 %v5491, %v5650
      %v5845 = vadd.f32 %v5492, %v5652
      %v5846 = vadd.f32 %v5493, %v5654
      %v5847 = vadd.f32 %v5494, %v5655
      %v5848 = vadd.f32 %v5495, %v5657
      %v5849 = vadd.f32 %v5496, %v5659
      %v5850 = vadd.f32 %v5497, %v5656
      %v5851 = vadd.f32 %v5498, %v5658
      %v5852 = vadd.f32 %v5499, %v5660
      %v5853 = vadd.f32 %v5500, %v5661
      %v5854 = vadd.f32 %v5501, %v5663
      %v5855 = vadd.f32 %v5502, %v5665
      %v5856 = vadd.f32 %v5503, %v5662
      %v5857 = vadd.f32 %v5504, %v5664
      %v5858 = vadd.f32 %v5505, %v5666
      %v5859 = vadd.f32 %v5506, %v5667
      %v5860 = vadd.f32 %v5507, %v5669
      %v5861 = vadd.f32 %v5508, %v5671
      %v5862 = vadd.f32 %v5509, %v5668
      %v5863 = vadd.f32 %v5510, %v5670
      %v5864 = vadd.f32 %v5511, %v5672
      %v5865 = vadd.f32 %v5512, %v5673
      %v5866 = vadd.f32 %v5513, %v5675
      %v5867 = vadd.f32 %v5514, %v5677
      %v5868 = vadd.f32 %v5515, %v5674
      %v5869 = vadd.f32 %v5516, %v5676
      %v5870 = vadd.f32 %v5517, %v5678
      %v5871 = vadd.f32 %v5518, %v5679
      %v5872 = vadd.f32 %v5519, %v5681
      %v5873 = vadd.f32 %v5520, %v5683
      %v5874 = vadd.f32 %v5521, %v5680
      %v5875 = vadd.f32 %v5522, %v5682
      %v5876 = vadd.f32 %v5523, %v5684
      %v5877 = vadd.f32 %v5524, %v5685
      %v5878 = vadd.f32 %v5525, %v5687
      %v5879 = vadd.f32 %v5526, %v5689
      %v5880 = vadd.f32 %v5527, %v5686
      %v5881 = vadd.f32 %v5528, %v5688
      %v5882 = vadd.f32 %v5529, %v5690
      %v5883 = vadd.f32 %v5530, %v5691
      %v5884 = vadd.f32 %v5531, %v5693
      %v5885 = vadd.f32 %v5532, %v5695
      %v5886 = vadd.f32 %v5533, %v5692
      %v5887 = vadd.f32 %v5534, %v5694
      %v5888 = vadd.f32 %v5535, %v5696
      %v5889 = vadd.f32 %v5536, %v5697
      %v5890 = vadd.f32 %v5537, %v5699
      %v5891 = vadd.f32 %v5538, %v5701
      %v5892 = vadd.f32 %v5539, %v5698
      %v5893 = vadd.f32 %v5540, %v5700
      %v5894 = vadd.f32 %v5541, %v5702
      %v5895 = vadd.f32 %v5542, %v5703
      %v5896 = vadd.f32 %v5543, %v5705
      %v5897 = vadd.f32 %v5544, %v5707
      %v5898 = vadd.f32 %v5545, %v5704
      %v5899 = vadd.f32 %v5546, %v5706
      %vm5996 = vcmask 1046528
      %v5997 = vrot.slane %v5804, 1
      %v5998 = vrot.slane %v5806, 1
      %v5999 = vsel %vm5996, %v5997, %v5998
      %v6000 = vrot.slane %v5805, 1
      %v6001 = vrot.slane %v5807, 1
      %v6002 = vsel %vm5996, %v6000, %v6001
      %v6003 = vrot.slane %v5808, 1
      %v6004 = vsel %vm5996, %v5998, %v6003
      %v6005 = vrot.slane %v5809, 1
      %v6006 = vsel %vm5996, %v6001, %v6005
      %v6007 = vrot.slane %v5810, 1
      %v6008 = vrot.slane %v5812, 1
      %v6009 = vsel %vm5996, %v6007, %v6008
      %v6010 = vrot.slane %v5811, 1
      %v6011 = vrot.slane %v5813, 1
      %v6012 = vsel %vm5996, %v6010, %v6011
      %v6013 = vrot.slane %v5814, 1
      %v6014 = vsel %vm5996, %v6008, %v6013
      %v6015 = vrot.slane %v5815, 1
      %v6016 = vsel %vm5996, %v6011, %v6015
      %v6017 = vrot.slane %v5816, 1
      %v6018 = vrot.slane %v5818, 1
      %v6019 = vsel %vm5996, %v6017, %v6018
      %v6020 = vrot.slane %v5817, 1
      %v6021 = vrot.slane %v5819, 1
      %v6022 = vsel %vm5996, %v6020, %v6021
      %v6023 = vrot.slane %v5820, 1
      %v6024 = vsel %vm5996, %v6018, %v6023
      %v6025 = vrot.slane %v5821, 1
      %v6026 = vsel %vm5996, %v6021, %v6025
      %v6027 = vrot.slane %v5822, 1
      %v6028 = vrot.slane %v5824, 1
      %v6029 = vsel %vm5996, %v6027, %v6028
      %v6030 = vrot.slane %v5823, 1
      %v6031 = vrot.slane %v5825, 1
      %v6032 = vsel %vm5996, %v6030, %v6031
      %v6033 = vrot.slane %v5826, 1
      %v6034 = vsel %vm5996, %v6028, %v6033
      %v6035 = vrot.slane %v5827, 1
      %v6036 = vsel %vm5996, %v6031, %v6035
      %v6037 = vrot.slane %v5828, 1
      %v6038 = vrot.slane %v5830, 1
      %v6039 = vsel %vm5996, %v6037, %v6038
      %v6040 = vrot.slane %v5829, 1
      %v6041 = vrot.slane %v5831, 1
      %v6042 = vsel %vm5996, %v6040, %v6041
      %v6043 = vrot.slane %v5832, 1
      %v6044 = vsel %vm5996, %v6038, %v6043
      %v6045 = vrot.slane %v5833, 1
      %v6046 = vsel %vm5996, %v6041, %v6045
      %v6047 = vrot.slane %v5834, 1
      %v6048 = vrot.slane %v5836, 1
      %v6049 = vsel %vm5996, %v6047, %v6048
      %v6050 = vrot.slane %v5835, 1
      %v6051 = vrot.slane %v5837, 1
      %v6052 = vsel %vm5996, %v6050, %v6051
      %v6053 = vrot.slane %v5838, 1
      %v6054 = vsel %vm5996, %v6048, %v6053
      %v6055 = vrot.slane %v5839, 1
      %v6056 = vsel %vm5996, %v6051, %v6055
      %v6057 = vrot.slane %v5840, 1
      %v6058 = vrot.slane %v5842, 1
      %v6059 = vsel %vm5996, %v6057, %v6058
      %v6060 = vrot.slane %v5841, 1
      %v6061 = vrot.slane %v5843, 1
      %v6062 = vsel %vm5996, %v6060, %v6061
      %v6063 = vrot.slane %v5844, 1
      %v6064 = vsel %vm5996, %v6058, %v6063
      %v6065 = vrot.slane %v5845, 1
      %v6066 = vsel %vm5996, %v6061, %v6065
      %v6067 = vrot.slane %v5846, 1
      %v6068 = vrot.slane %v5848, 1
      %v6069 = vsel %vm5996, %v6067, %v6068
      %v6070 = vrot.slane %v5847, 1
      %v6071 = vrot.slane %v5849, 1
      %v6072 = vsel %vm5996, %v6070, %v6071
      %v6073 = vrot.slane %v5850, 1
      %v6074 = vsel %vm5996, %v6068, %v6073
      %v6075 = vrot.slane %v5851, 1
      %v6076 = vsel %vm5996, %v6071, %v6075
      %v6077 = vrot.slane %v5852, 1
      %v6078 = vrot.slane %v5854, 1
      %v6079 = vsel %vm5996, %v6077, %v6078
      %v6080 = vrot.slane %v5853, 1
      %v6081 = vrot.slane %v5855, 1
      %v6082 = vsel %vm5996, %v6080, %v6081
      %v6083 = vrot.slane %v5856, 1
      %v6084 = vsel %vm5996, %v6078, %v6083
      %v6085 = vrot.slane %v5857, 1
      %v6086 = vsel %vm5996, %v6081, %v6085
      %v6087 = vrot.slane %v5858, 1
      %v6088 = vrot.slane %v5860, 1
      %v6089 = vsel %vm5996, %v6087, %v6088
      %v6090 = vrot.slane %v5859, 1
      %v6091 = vrot.slane %v5861, 1
      %v6092 = vsel %vm5996, %v6090, %v6091
      %v6093 = vrot.slane %v5862, 1
      %v6094 = vsel %vm5996, %v6088, %v6093
      %v6095 = vrot.slane %v5863, 1
      %v6096 = vsel %vm5996, %v6091, %v6095
      %v6097 = vrot.slane %v5864, 1
      %v6098 = vrot.slane %v5866, 1
      %v6099 = vsel %vm5996, %v6097, %v6098
      %v6100 = vrot.slane %v5865, 1
      %v6101 = vrot.slane %v5867, 1
      %v6102 = vsel %vm5996, %v6100, %v6101
      %v6103 = vrot.slane %v5868, 1
      %v6104 = vsel %vm5996, %v6098, %v6103
      %v6105 = vrot.slane %v5869, 1
      %v6106 = vsel %vm5996, %v6101, %v6105
      %v6107 = vrot.slane %v5870, 1
      %v6108 = vrot.slane %v5872, 1
      %v6109 = vsel %vm5996, %v6107, %v6108
      %v6110 = vrot.slane %v5871, 1
      %v6111 = vrot.slane %v5873, 1
      %v6112 = vsel %vm5996, %v6110, %v6111
      %v6113 = vrot.slane %v5874, 1
      %v6114 = vsel %vm5996, %v6108, %v6113
      %v6115 = vrot.slane %v5875, 1
      %v6116 = vsel %vm5996, %v6111, %v6115
      %v6117 = vrot.slane %v5876, 1
      %v6118 = vrot.slane %v5878, 1
      %v6119 = vsel %vm5996, %v6117, %v6118
      %v6120 = vrot.slane %v5877, 1
      %v6121 = vrot.slane %v5879, 1
      %v6122 = vsel %vm5996, %v6120, %v6121
      %v6123 = vrot.slane %v5880, 1
      %v6124 = vsel %vm5996, %v6118, %v6123
      %v6125 = vrot.slane %v5881, 1
      %v6126 = vsel %vm5996, %v6121, %v6125
      %v6127 = vrot.slane %v5882, 1
      %v6128 = vrot.slane %v5884, 1
      %v6129 = vsel %vm5996, %v6127, %v6128
      %v6130 = vrot.slane %v5883, 1
      %v6131 = vrot.slane %v5885, 1
      %v6132 = vsel %vm5996, %v6130, %v6131
      %v6133 = vrot.slane %v5886, 1
      %v6134 = vsel %vm5996, %v6128, %v6133
      %v6135 = vrot.slane %v5887, 1
      %v6136 = vsel %vm5996, %v6131, %v6135
      %v6137 = vrot.slane %v5888, 1
      %v6138 = vrot.slane %v5890, 1
      %v6139 = vsel %vm5996, %v6137, %v6138
      %v6140 = vrot.slane %v5889, 1
      %v6141 = vrot.slane %v5891, 1
      %v6142 = vsel %vm5996, %v6140, %v6141
      %v6143 = vrot.slane %v5892, 1
      %v6144 = vsel %vm5996, %v6138, %v6143
      %v6145 = vrot.slane %v5893, 1
      %v6146 = vsel %vm5996, %v6141, %v6145
      %v6147 = vrot.slane %v5894, 1
      %v6148 = vrot.slane %v5896, 1
      %v6149 = vsel %vm5996, %v6147, %v6148
      %v6150 = vrot.slane %v5895, 1
      %v6151 = vrot.slane %v5897, 1
      %v6152 = vsel %vm5996, %v6150, %v6151
      %v6153 = vrot.slane %v5898, 1
      %v6154 = vsel %vm5996, %v6148, %v6153
      %v6155 = vrot.slane %v5899, 1
      %v6156 = vsel %vm5996, %v6151, %v6155
      %6221 = vst [vmem:[%s150] sm:$0xff] %v5999
      %6222 = vst [vmem:[%s150 + $0x8] sm:$0xff] %v6002
      %6223 = vst [vmem:[%s150 + $0x10] sm:$0xff] %v6004
      %6224 = vst [vmem:[%s150 + $0x18] sm:$0xff] %v6006
      %6225 = vst [vmem:[%s150 + $0x20] sm:$0xff] %v6009
      %6226 = vst [vmem:[%s150 + $0x28] sm:$0xff] %v6012
      %6227 = vst [vmem:[%s150 + $0x30] sm:$0xff] %v6014
      %6228 = vst [vmem:[%s150 + $0x38] sm:$0xff] %v6016
      %6229 = vst [vmem:[%s150 + $0x40] sm:$0xff] %v6019
      %6230 = vst [vmem:[%s150 + $0x48] sm:$0xff] %v6022
      %6231 = vst [vmem:[%s150 + $0x50] sm:$0xff] %v6024
      %6232 = vst [vmem:[%s150 + $0x58] sm:$0xff] %v6026
      %6233 = vst [vmem:[%s150 + $0x60] sm:$0xff] %v6029
      %6234 = vst [vmem:[%s150 + $0x68] sm:$0xff] %v6032
      %6235 = vst [vmem:[%s150 + $0x70] sm:$0xff] %v6034
      %6236 = vst [vmem:[%s150 + $0x78] sm:$0xff] %v6036
      %6237 = vst [vmem:[%s150 + $0x80] sm:$0xff] %v6039
      %6238 = vst [vmem:[%s150 + $0x88] sm:$0xff] %v6042
      %6239 = vst [vmem:[%s150 + $0x90] sm:$0xff] %v6044
      %6240 = vst [vmem:[%s150 + $0x98] sm:$0xff] %v6046
      %6241 = vst [vmem:[%s150 + $0xa0] sm:$0xff] %v6049
      %6242 = vst [vmem:[%s150 + $0xa8] sm:$0xff] %v6052
      %6243 = vst [vmem:[%s150 + $0xb0] sm:$0xff] %v6054
      %6244 = vst [vmem:[%s150 + $0xb8] sm:$0xff] %v6056
      %6245 = vst [vmem:[%s150 + $0xc0] sm:$0xff] %v6059
      %6246 = vst [vmem:[%s150 + $0xc8] sm:$0xff] %v6062
      %6247 = vst [vmem:[%s150 + $0xd0] sm:$0xff] %v6064
      %6248 = vst [vmem:[%s150 + $0xd8] sm:$0xff] %v6066
      %6249 = vst [vmem:[%s150 + $0xe0] sm:$0xff] %v6069
      %6250 = vst [vmem:[%s150 + $0xe8] sm:$0xff] %v6072
      %6251 = vst [vmem:[%s150 + $0xf0] sm:$0xff] %v6074
      %6252 = vst [vmem:[%s150 + $0xf8] sm:$0xff] %v6076
      %6253 = vst [vmem:[%s150 + $0x100] sm:$0xff] %v6079
      %6254 = vst [vmem:[%s150 + $0x108] sm:$0xff] %v6082
      %6255 = vst [vmem:[%s150 + $0x110] sm:$0xff] %v6084
      %6256 = vst [vmem:[%s150 + $0x118] sm:$0xff] %v6086
      %6257 = vst [vmem:[%s150 + $0x120] sm:$0xff] %v6089
      %6258 = vst [vmem:[%s150 + $0x128] sm:$0xff] %v6092
      %6259 = vst [vmem:[%s150 + $0x130] sm:$0xff] %v6094
      %6260 = vst [vmem:[%s150 + $0x138] sm:$0xff] %v6096
      %6261 = vst [vmem:[%s150 + $0x140] sm:$0xff] %v6099
      %6262 = vst [vmem:[%s150 + $0x148] sm:$0xff] %v6102
      %6263 = vst [vmem:[%s150 + $0x150] sm:$0xff] %v6104
      %6264 = vst [vmem:[%s150 + $0x158] sm:$0xff] %v6106
      %6265 = vst [vmem:[%s150 + $0x160] sm:$0xff] %v6109
      %6266 = vst [vmem:[%s150 + $0x168] sm:$0xff] %v6112
      %6267 = vst [vmem:[%s150 + $0x170] sm:$0xff] %v6114
      %6268 = vst [vmem:[%s150 + $0x178] sm:$0xff] %v6116
      %6269 = vst [vmem:[%s150 + $0x180] sm:$0xff] %v6119
      %6270 = vst [vmem:[%s150 + $0x188] sm:$0xff] %v6122
      %6271 = vst [vmem:[%s150 + $0x190] sm:$0xff] %v6124
      %6272 = vst [vmem:[%s150 + $0x198] sm:$0xff] %v6126
      %6273 = vst [vmem:[%s150 + $0x1a0] sm:$0xff] %v6129
      %6274 = vst [vmem:[%s150 + $0x1a8] sm:$0xff] %v6132
      %6275 = vst [vmem:[%s150 + $0x1b0] sm:$0xff] %v6134
      %6276 = vst [vmem:[%s150 + $0x1b8] sm:$0xff] %v6136
      %6277 = vst [vmem:[%s150 + $0x1c0] sm:$0xff] %v6139
      %6278 = vst [vmem:[%s150 + $0x1c8] sm:$0xff] %v6142
      %6279 = vst [vmem:[%s150 + $0x1d0] sm:$0xff] %v6144
      %6280 = vst [vmem:[%s150 + $0x1d8] sm:$0xff] %v6146
      %6281 = vst [vmem:[%s150 + $0x1e0] sm:$0xff] %v6149
      %6282 = vst [vmem:[%s150 + $0x1e8] sm:$0xff] %v6152
      %6283 = vst [vmem:[%s150 + $0x1f0] sm:$0xff] %v6154
      %6284 = vst [vmem:[%s150 + $0x1f8] sm:$0xff] %v6156
      %s6285 = smul.u32 2, %s13
      %p6286 = scmp.lt.s32.totalorder %s6285, 3
      %s6287 = scalar_select %p6286, %s6285, 3
      %s6288 = smul.addr %s6287, 32
      %s6289 = smul.addr %s6288, 8
      %s6290 = scalar_lea.vmem %s2, %s6289
      // Predicated region
      $region29: #{res_block.1} parent=27 // pred_check
        %p6291 = pneg %p78
      $region30: #{res_block.1} parent=27 // pred_check_branch
        %6293 = sbr.rel (%p6291) target = $region32
      $region31: #{res_block.1} parent=27 // pred_region
        %s6294 = smul.u32 2, %s13
      $region32: #{res_block.1} parent=27 // pred_fallthru
        _
    $region28: #{res_block.1} parent=5 // pred_fallthru
      _
    %p6295 = scmp.le.s32.totalorder 2, %s8
    // Predicated region
    $region33: #{res_block.1} parent=5 // pred_check
      %p6296 = pneg %p6295
    $region34: #{res_block.1} parent=5 // pred_check_branch
      %6298 = sbr.rel (%p6296) target = $region36
    $region35: #{res_block.1} parent=5 // pred_region
      %s6299 = ssub.s32 %s8, 2
      // Predicated region
      $region37: #{res_block.1} parent=35 // pred_check
        %p6300 = pneg %p84
      $region38: #{res_block.1} parent=35 // pred_check_branch
        %6302 = sbr.rel (%p6300) target = $region40
      $region39: #{res_block.1} parent=35 // pred_region
        %s6303 = smul.u32 2, %s14
        %p6304 = scmp.lt.s32.totalorder %s6303, 3
        %s6305 = scalar_select %p6304, %s6303, 3
        %s6306 = smul.addr %s6305, 32
        %s6307 = smul.addr %s6306, 8
        %s6308 = scalar_lea.vmem %s2, %s6307
      $region40: #{res_block.1} parent=35 // pred_fallthru
        _
    $region36: #{res_block.1} parent=5 // pred_fallthru
      _
  $region6: #{res_block.1} parent=0 // loop_footer
    %s12 = sadd.s32 1, %s8
  $region7: #{res_block.1} parent=0 // loop_footer_branch
    %7 = sbr.rel target = $region3
  $region8: #{res_block.1} parent=0 // loop_exit
    _

</llo_original>
